<compile_context>
chip_gen: v7x
topology: tpu7x:2x2x1
jax: 0.10.0
libtpu: 0.0.40
codegen_flags: <defaults>
</compile_context>

<pallas_src>
import functools

import numpy as np
import jax
import jax.numpy as jnp
from jax import lax
from jax.experimental import pallas as pl
from jax.experimental.pallas import tpu as pltpu

# ----------------------------- configuration --------------------------------
PAD = 2                          # cfg.VOCODER.MEL_FRAME_PAD
UPSAMPLE_FACTORS = (2, 2)        # cfg.VOCODER.UPSAMPLE_FACTORS
FEAT_DIMS = 8                    # cfg.VOCODER.INPUT_DIM
COMPUTE_DIMS = 32                # cfg.VOCODER.COMPUTE_DIMS
RES_OUT_DIMS = 32                # cfg.VOCODER.RES_OUT_DIMS
RES_BLOCKS = 2                   # cfg.VOCODER.RES_BLOCKS
RNN_DIMS = 32                    # cfg.VOCODER.RNN_DIMS
FC_DIMS = 32                     # cfg.VOCODER.FC_DIMS
N_CLASSES = 30                   # mode == 'mu_law' -> 30
AUX_DIMS = RES_OUT_DIMS // 4
BN_EPS = 1e-5

DOT_DT = jnp.bfloat16            # matmul operand dtype (epilogues stay f32)
TILE_M = 512                     # row tile for slab kernels (VMEM-safe on v5e/v6e/v7x)
GRU_STEPS_PER_BLOCK = 8          # time steps processed per grid iteration
VMEM_LIMIT = 32 * 1024 * 1024


# ------------------------------ helpers --------------------------------------
def _round_up(x, m):
    return (x + m - 1) // m * m


def _full_spec(arr):
    nd = arr.ndim
    return pl.BlockSpec(arr.shape, lambda i, _nd=nd: (0,) * _nd)


def _row_tiled_call(kernel, slabs, weights, out_cols):
    """Run `kernel` over row tiles of 2-D `slabs` (each (M, K_i)); `weights` are
    passed whole (VMEM-resident).  Produces one (M, n) f32 output per out_cols."""
    m = slabs[0].shape[0]
    tm = min(TILE_M, _round_up(m, 8))
    mp = _round_up(m, tm)
    slabs = [jnp.pad(s, ((0, mp - m), (0, 0))) if mp != m else s for s in slabs]

    in_specs = [pl.BlockSpec((tm, int(s.shape[1])), lambda i: (i, 0)) for s in slabs]
    in_specs += [_full_spec(w) for w in weights]
    out_specs = [pl.BlockSpec((tm, int(n)), lambda i: (i, 0)) for n in out_cols]
    out_shape = tuple(jax.ShapeDtypeStruct((mp, int(n)), jnp.float32) for n in out_cols)

    outs = pl.pallas_call(
        kernel,
        out_shape=out_shape,
        grid_spec=pltpu.PrefetchScalarGridSpec(
            num_scalar_prefetch=0,
            grid=(mp // tm,),
            in_specs=in_specs,
            out_specs=out_specs),
        compiler_params=pltpu.CompilerParams(
            dimension_semantics=("parallel",),
            vmem_limit_bytes=VMEM_LIMIT),
    )(*slabs, *weights)
    if not isinstance(outs, (list, tuple)):
        outs = (outs,)
    return [o[:m] for o in outs]


def _bn_affine(bn):
    scale = bn['gamma'] / jnp.sqrt(bn['var'] + BN_EPS)
    shift = bn['beta'] - bn['mean'] * scale
    return scale, shift


# ----------------------- fused MelResNet kernel -------------------------------
def _melresnet_kernel(x_ref, w_in_ref, b_in_ref, rw1_ref, rb1_ref, rw2_ref, rb2_ref,
                      w_out_ref, b_out_ref, o_ref):
    """conv_in(+BN folded)+relu -> RES_BLOCKS residual blocks -> 1x1 conv_out."""
    x = jnp.dot(x_ref[...], w_in_ref[...], preferred_element_type=jnp.float32)
    x = jnp.maximum(x + b_in_ref[...], 0.0)
    for i in range(RES_BLOCKS):
        r = x
        t = jnp.dot(x.astype(DOT_DT), rw1_ref[i], preferred_element_type=jnp.float32)
        t = jnp.maximum(t + rb1_ref[i], 0.0)
        t = jnp.dot(t.astype(DOT_DT), rw2_ref[i], preferred_element_type=jnp.float32)
        x = t + rb2_ref[i] + r
    y = jnp.dot(x.astype(DOT_DT), w_out_ref[...], preferred_element_type=jnp.float32)
    o_ref[...] = (y + b_out_ref[...]).astype(o_ref.dtype)


def mel_resnet(mels, p):
    """mels: (B, FEAT, L) -> (B, RES_OUT, L - 2*pad), single fused pallas_call."""
    B, F, L = mels.shape
    k = 2 * PAD + 1
    Lo = L - k + 1
    # im2col: valid conv (no padding), matches PyTorch conv_in.
    idx = jnp.arange(Lo)[:, None] + jnp.arange(k)[None, :]
    patches = mels[:, :, idx].transpose(0, 2, 1, 3).reshape(B * Lo, F * k)

    # Fold BN scale into the (bias-free) conv weights; BN shift becomes the bias.
    s0, sh0 = _bn_affine(p['bn0'])
    w_in = (p['conv_in_w'].reshape(COMPUTE_DIMS, F * k) * s0[:, None]).T   # (F*k, C)
    b_in = sh0.reshape(1, COMPUTE_DIMS)

    rw1, rb1, rw2, rb2 = [], [], [], []
    for blk in p['res']:
        s1, sh1 = _bn_affine(blk['bn1'])
        s2, sh2 = _bn_affine(blk['bn2'])
        rw1.append((blk['w1'] * s1[:, None]).T)
        rb1.append(sh1.reshape(1, COMPUTE_DIMS))
        rw2.append((blk['w2'] * s2[:, None]).T)
        rb2.append(sh2.reshape(1, COMPUTE_DIMS))
    rw1 = jnp.stack(rw1); rb1 = jnp.stack(rb1)
    rw2 = jnp.stack(rw2); rb2 = jnp.stack(rb2)

    w_out = p['conv_out_w'].T                                              # (C, RES_OUT)
    b_out = p['conv_out_b'].reshape(1, RES_OUT_DIMS)

    (x,) = _row_tiled_call(
        _melresnet_kernel,
        slabs=[patches.astype(DOT_DT)],
        weights=[w_in.astype(DOT_DT), b_in,
                 rw1.astype(DOT_DT), rb1, rw2.astype(DOT_DT), rb2,
                 w_out.astype(DOT_DT), b_out],
        out_cols=[RES_OUT_DIMS])
    return x.reshape(B, Lo, RES_OUT_DIMS).transpose(0, 2, 1)


# ------------------------- upsample network (glue) ----------------------------
def upsample_network(mels, p):
    """Returns (mels_up: (B,T,FEAT), aux: (B,T,RES_OUT)),
    T = (L - 2*pad) * prod(upsample_factors)."""
    # TODO(synk): Stretch2d + the 1-channel smoothing Conv2d stay as XLA glue
    # (nearest-neighbor repeat + tiny 1-D filter) — no benefit from a Pallas kernel.
    total = int(np.prod(UPSAMPLE_FACTORS))
    aux = mel_resnet(mels, p['resnet'])                       # (B, RES_OUT, Lo)
    aux = jnp.repeat(aux, total, axis=-1)                     # Stretch2d(total,1)

    m = mels
    for s, w in zip(UPSAMPLE_FACTORS, p['up_convs']):
        m = jnp.repeat(m, s, axis=-1)                         # Stretch2d(s,1)
        kk = 2 * s + 1                                        # Conv2d(1,1,(1,kk)),pad s
        L = m.shape[-1]
        mp = jnp.pad(m, ((0, 0), (0, 0), (s, s)))
        acc = jnp.zeros_like(m)
        for j in range(kk):
            acc = acc + w[j] * mp[:, :, j:j + L]
        m = acc

    indent = PAD * total
    m = m[:, :, indent:-indent]
    return m.transpose(0, 2, 1), aux.transpose(0, 2, 1)


# ------------------ fused input-projection kernel (I + gates) -----------------
def _proj_kernel(xi_ref, a2_ref, iw_ref, ib_ref, wih1_ref, bih1_ref,
                 wih2a_ref, bih2_ref, xres_ref, gx1_ref, gx2a_ref):
    """x_I = I(xi); gx1 = rnn1 input gates of x_I; gx2a = rnn2 input gates of a2."""
    xI = jnp.dot(xi_ref[...], iw_ref[...], preferred_element_type=jnp.float32)
    xI = xI + ib_ref[...]
    gx1 = jnp.dot(xI.astype(DOT_DT), wih1_ref[...],
                  preferred_element_type=jnp.float32) + bih1_ref[...]
    gx2a = jnp.dot(a2_ref[...], wih2a_ref[...],
                   preferred_element_type=jnp.float32) + bih2_ref[...]
    xres_ref[...] = xI
    gx1_ref[...] = gx1
    gx2a_ref[...] = gx2a


# ---------------- fused double-GRU recurrence kernel (rnn1 + rnn2) -------------
def _dgru_kernel(gx1_ref, gx2a_ref, xres_ref, whh1_ref, bhh1_ref,
                 whh2_ref, bhh2_ref, wih2h_ref, y_ref, h1_sc, h2_sc, *, tt, h):
    """tt time steps per grid iteration; both hidden states carried in VMEM.
    y = (rnn2(concat(rnn1(x)+x, a2)) + (rnn1(x)+x))   -- PyTorch nn.GRU semantics."""
    @pl.when(pl.program_id(0) == 0)
    def _():
        h1_sc[...] = jnp.zeros_like(h1_sc)
        h2_sc[...] = jnp.zeros_like(h2_sc)

    whh1 = whh1_ref[...]; bhh1 = bhh1_ref[...]
    whh2 = whh2_ref[...]; bhh2 = bhh2_ref[...]
    wih2h = wih2h_ref[...]

    def step(t, carry):
        h1 = h1_sc[...]
        h2 = h2_sc[...]
        # --- rnn1: one (B,H) @ (H,3H) MXU dot for all three hidden gates ---
        gh1 = jnp.dot(h1, whh1, preferred_element_type=jnp.float32) + bhh1
        gx1 = gx1_ref[t]                                           # (B, 3H)
        r1 = jax.nn.sigmoid(gx1[:, :h] + gh1[:, :h])
        z1 = jax.nn.sigmoid(gx1[:, h:2 * h] + gh1[:, h:2 * h])
        n1 = jnp.tanh(gx1[:, 2 * h:] + r1 * gh1[:, 2 * h:])
        h1n = (1.0 - z1) * n1 + z1 * h1
        y1 = h1n + xres_ref[t]                                     # residual 1
        # --- rnn2: aux part of the input gates was precomputed (gx2a) ---
        gi2 = jnp.dot(y1, wih2h, preferred_element_type=jnp.float32) + gx2a_ref[t]
        gh2 = jnp.dot(h2, whh2, preferred_element_type=jnp.float32) + bhh2
        r2 = jax.nn.sigmoid(gi2[:, :h] + gh2[:, :h])
        z2 = jax.nn.sigmoid(gi2[:, h:2 * h] + gh2[:, h:2 * h])
        n2 = jnp.tanh(gi2[:, 2 * h:] + r2 * gh2[:, 2 * h:])
        h2n = (1.0 - z2) * n2 + z2 * h2

        h1_sc[...] = h1n
        h2_sc[...] = h2n
        y_ref[t] = h2n + y1                                        # residual 2
        return carry

    lax.fori_loop(0, tt, step, 0, unroll=True)


def double_gru(xres, gx1, gx2a, p1, p2):
    """xres/gx1/gx2a: time-major (T, B, ·) f32.  Returns y: (T, B, H) f32."""
    T, B, H = xres.shape
    tt = min(GRU_STEPS_PER_BLOCK, T)
    T_pad = _round_up(T, tt)
    if T_pad != T:
        pad = ((0, T_pad - T), (0, 0), (0, 0))
        xres = jnp.pad(xres, pad)
        gx1 = jnp.pad(gx1, pad)
        gx2a = jnp.pad(gx2a, pad)

    whh1 = p1['w_hh'].T.astype(jnp.float32)          # (H, 3H)
    bhh1 = p1['b_hh'].reshape(1, 3 * H).astype(jnp.float32)
    whh2 = p2['w_hh'].T.astype(jnp.float32)
    bhh2 = p2['b_hh'].reshape(1, 3 * H).astype(jnp.float32)
    wih2h = p2['w_ih'][:, :H].T.astype(jnp.float32)  # rnn2 input gates on the h-part

    grid_spec = pltpu.PrefetchScalarGridSpec(
        num_scalar_prefetch=0,
        grid=(T_pad // tt,),
        in_specs=[
            pl.BlockSpec((tt, B, 3 * H), lambda i: (i, 0, 0)),
            pl.BlockSpec((tt, B, 3 * H), lambda i: (i, 0, 0)),
            pl.BlockSpec((tt, B, H), lambda i: (i, 0, 0)),
            pl.BlockSpec((H, 3 * H), lambda i: (0, 0)),
            pl.BlockSpec((1, 3 * H), lambda i: (0, 0)),
            pl.BlockSpec((H, 3 * H), lambda i: (0, 0)),
            pl.BlockSpec((1, 3 * H), lambda i: (0, 0)),
            pl.BlockSpec((H, 3 * H), lambda i: (0, 0)),
        ],
        out_specs=pl.BlockSpec((tt, B, H), lambda i: (i, 0, 0)),
        scratch_shapes=[pltpu.VMEM((B, H), jnp.float32),
                        pltpu.VMEM((B, H), jnp.float32)],
    )
    y = pl.pallas_call(
        functools.partial(_dgru_kernel, tt=tt, h=H),
        out_shape=jax.ShapeDtypeStruct((T_pad, B, H), jnp.float32),
        grid_spec=grid_spec,
        compiler_params=pltpu.CompilerParams(
            dimension_semantics=("arbitrary",),     # sequential recurrence: must NOT be parallel
            vmem_limit_bytes=VMEM_LIMIT),
    )(gx1, gx2a, xres, whh1, bhh1, whh2, bhh2, wih2h)
    return y[:T]


# ----------------------- fused FC head kernel (fc1+fc2+fc3) -------------------
def _head_kernel(y_ref, a3_ref, a4_ref, w1y_ref, w1a_ref, b1_ref,
                 w2h_ref, w2a_ref, b2_ref, w3_ref, b3_ref, o_ref):
    h1 = jnp.dot(y_ref[...], w1y_ref[...], preferred_element_type=jnp.float32)
    h1 = h1 + jnp.dot(a3_ref[...], w1a_ref[...], preferred_element_type=jnp.float32)
    h1 = jnp.maximum(h1 + b1_ref[...], 0.0)
    h2 = jnp.dot(h1.astype(DOT_DT), w2h_ref[...], preferred_element_type=jnp.float32)
    h2 = h2 + jnp.dot(a4_ref[...], w2a_ref[...], preferred_element_type=jnp.float32)
    h2 = jnp.maximum(h2 + b2_ref[...], 0.0)
    out = jnp.dot(h2.astype(DOT_DT), w3_ref[...], preferred_element_type=jnp.float32)
    o_ref[...] = (out + b3_ref[...]).astype(o_ref.dtype)


# ------------------------------ full forward ----------------------------------
def wavernn_forward(x, mels, p):
    """x: (B, T) waveform samples, mels: (B, FEAT, L). Returns (B, T, N_CLASSES)."""
    B, T = x.shape
    H, A = RNN_DIMS, AUX_DIMS
    mels_up, aux = upsample_network(mels, p['upsample'])      # (B,T,F), (B,T,4A)
    a1 = aux[..., 0 * A:1 * A]
    a2 = aux[..., 1 * A:2 * A]
    a3 = aux[..., 2 * A:3 * A]
    a4 = aux[..., 3 * A:4 * A]

    # --- fused input projections, written directly in time-major layout ---
    xi = jnp.concatenate([x[..., None], mels_up, a1], axis=2)  # (B, T, 1+F+A)
    Din = xi.shape[-1]
    xi_tm = xi.transpose(1, 0, 2).reshape(T * B, Din)
    a2_tm = a2.transpose(1, 0, 2).reshape(T * B, A)

    Iw = p['I_w'].T; Ib = p['I_b'].reshape(1, H)
    Wih1 = p['rnn1']['w_ih'].T; bih1 = p['rnn1']['b_ih'].reshape(1, 3 * H)
    Wih2a = p['rnn2']['w_ih'][:, H:].T; bih2 = p['rnn2']['b_ih'].reshape(1, 3 * H)

    xres, gx1, gx2a = _row_tiled_call(
        _proj_kernel,
        slabs=[xi_tm.astype(DOT_DT), a2_tm.astype(DOT_DT)],
        weights=[Iw.astype(DOT_DT), Ib, Wih1.astype(DOT_DT), bih1,
                 Wih2a.astype(DOT_DT), bih2],
        out_cols=[H, 3 * H, 3 * H])
    xres = xres.reshape(T, B, H)
    gx1 = gx1.reshape(T, B, 3 * H)
    gx2a = gx2a.reshape(T, B, 3 * H)

    # --- fused rnn1 + rnn2 recurrence (residual adds inside) ---
    y = double_gru(xres, gx1, gx2a, p['rnn1'], p['rnn2'])      # (T, B, H)
    y_bm = y.transpose(1, 0, 2).reshape(B * T, H)

    # --- fused fc1 + fc2 + fc3 head ---
    w1y = p['fc1_w'][:, :H].T; w1a = p['fc1_w'][:, H:].T
    b1 = p['fc1_b'].reshape(1, FC_DIMS)
    w2h = p['fc2_w'][:, :FC_DIMS].T; w2a = p['fc2_w'][:, FC_DIMS:].T
    b2 = p['fc2_b'].reshape(1, FC_DIMS)
    w3 = p['fc3_w'].T; b3 = p['fc3_b'].reshape(1, N_CLASSES)

    (logits,) = _row_tiled_call(
        _head_kernel,
        slabs=[y_bm.astype(DOT_DT),
               a3.reshape(B * T, A).astype(DOT_DT),
               a4.reshape(B * T, A).astype(DOT_DT)],
        weights=[w1y.astype(DOT_DT), w1a.astype(DOT_DT), b1,
                 w2h.astype(DOT_DT), w2a.astype(DOT_DT), b2,
                 w3.astype(DOT_DT), b3],
        out_cols=[N_CLASSES])
    return logits.reshape(B, T, N_CLASSES)


# --------------------------- deterministic params ----------------------------
def init_params(key):
    keys = iter(jax.random.split(key, 128))

    def nrm(shape, scale=0.1):
        return scale * jax.random.normal(next(keys), shape, dtype=jnp.float32)

    def bn(dims):
        return dict(gamma=1.0 + nrm((dims,), 0.05),
                    beta=nrm((dims,), 0.05),
                    mean=nrm((dims,), 0.05),
                    var=1.0 + 0.1 * jax.random.uniform(next(keys), (dims,),
                                                       dtype=jnp.float32))

    k = 2 * PAD + 1
    resnet = dict(
        conv_in_w=nrm((COMPUTE_DIMS, FEAT_DIMS, k)),
        bn0=bn(COMPUTE_DIMS),
        res=[dict(w1=nrm((COMPUTE_DIMS, COMPUTE_DIMS)),
                  w2=nrm((COMPUTE_DIMS, COMPUTE_DIMS)),
                  bn1=bn(COMPUTE_DIMS), bn2=bn(COMPUTE_DIMS))
             for _ in range(RES_BLOCKS)],
        conv_out_w=nrm((RES_OUT_DIMS, COMPUTE_DIMS)),
        conv_out_b=nrm((RES_OUT_DIMS,)),
    )
    # learned upsample smoothing filters, initialized to 1/kernel_size as in PyTorch
    up_convs = [jnp.full((2 * s + 1,), 1.0 / (2 * s + 1), dtype=jnp.float32)
                for s in UPSAMPLE_FACTORS]

    def gru_params(in_dim):
        return dict(w_ih=nrm((3 * RNN_DIMS, in_dim)),
                    b_ih=nrm((3 * RNN_DIMS,)),
                    w_hh=nrm((3 * RNN_DIMS, RNN_DIMS)),
                    b_hh=nrm((3 * RNN_DIMS,)))

    return dict(
        upsample=dict(resnet=resnet, up_convs=up_convs),
        I_w=nrm((RNN_DIMS, FEAT_DIMS + AUX_DIMS + 1)),
        I_b=nrm((RNN_DIMS,)),
        rnn1=gru_params(RNN_DIMS),
        rnn2=gru_params(RNN_DIMS + AUX_DIMS),
        fc1_w=nrm((FC_DIMS, RNN_DIMS + AUX_DIMS)),
        fc1_b=nrm((FC_DIMS,)),
        fc2_w=nrm((FC_DIMS, FC_DIMS + AUX_DIMS)),
        fc2_b=nrm((FC_DIMS,)),
        fc3_w=nrm((N_CLASSES, FC_DIMS)),
        fc3_b=nrm((N_CLASSES,)),
    )


# ----------------------------------- main ------------------------------------
if __name__ == "__main__":
    key = jax.random.PRNGKey(0)
    kp, kx, km = jax.random.split(key, 3)
    params = init_params(kp)

    B = 2
    n_frames = 12
    total_scale = int(np.prod(UPSAMPLE_FACTORS))
    T = (n_frames - 2 * PAD) * total_scale                    # = 32

    x = jax.random.uniform(kx, (B, T), jnp.float32, -1.0, 1.0)
    mels = jax.random.normal(km, (B, FEAT_DIMS, n_frames), dtype=jnp.float32)

    out = jax.jit(wavernn_forward)(x, mels, params)
    out = jax.block_until_ready(out)
    assert out.shape == (B, T, N_CLASSES), out.shape
    assert jnp.all(jnp.isfinite(out))
    print("KERNEL_OK")
</pallas_src>

<mosaic_0001>
module attributes {stable_mosaic.version = 11 : i64} {
  func.func @_melresnet_kernel(%arg0: i32, %arg1: memref<16x40xbf16, #tpu.memory_space<vmem>>, %arg2: memref<40x32xbf16, #tpu.memory_space<vmem>>, %arg3: memref<1x32xf32, #tpu.memory_space<vmem>>, %arg4: memref<2x32x32xbf16, #tpu.memory_space<vmem>>, %arg5: memref<2x1x32xf32, #tpu.memory_space<vmem>>, %arg6: memref<2x32x32xbf16, #tpu.memory_space<vmem>>, %arg7: memref<2x1x32xf32, #tpu.memory_space<vmem>>, %arg8: memref<32x32xbf16, #tpu.memory_space<vmem>>, %arg9: memref<1x32xf32, #tpu.memory_space<vmem>>, %arg10: memref<16x32xf32, #tpu.memory_space<vmem>>) attributes {dimension_semantics = [#tpu.dimension_semantics<parallel>], iteration_bounds = array<i64: 1>, scalar_prefetch = 0 : i64, scratch_operands = 0 : i64, tpu.core_type = #tpu.core_type<tc>, window_params = [{transform_indices = @transform_0, window_bounds = array<i64: 16, 40>}, {pipeline_mode = #tpu.pipeline_mode<synchronous>, transform_indices = @transform_1, window_bounds = array<i64: 40, 32>}, {pipeline_mode = #tpu.pipeline_mode<synchronous>, transform_indices = @transform_2, window_bounds = array<i64: 1, 32>}, {pipeline_mode = #tpu.pipeline_mode<synchronous>, transform_indices = @transform_3, window_bounds = array<i64: 2, 32, 32>}, {pipeline_mode = #tpu.pipeline_mode<synchronous>, transform_indices = @transform_4, window_bounds = array<i64: 2, 1, 32>}, {pipeline_mode = #tpu.pipeline_mode<synchronous>, transform_indices = @transform_5, window_bounds = array<i64: 2, 32, 32>}, {pipeline_mode = #tpu.pipeline_mode<synchronous>, transform_indices = @transform_6, window_bounds = array<i64: 2, 1, 32>}, {pipeline_mode = #tpu.pipeline_mode<synchronous>, transform_indices = @transform_7, window_bounds = array<i64: 32, 32>}, {pipeline_mode = #tpu.pipeline_mode<synchronous>, transform_indices = @transform_8, window_bounds = array<i64: 1, 32>}, {transform_indices = @transform_9, window_bounds = array<i64: 16, 32>}]} {
    %c0 = arith.constant 0 : index
    %c0_0 = arith.constant 0 : index
    %0 = vector.load %arg1[%c0, %c0_0] : memref<16x40xbf16, #tpu.memory_space<vmem>>, vector<16x40xbf16>
    %c0_1 = arith.constant 0 : index
    %c0_2 = arith.constant 0 : index
    %1 = vector.load %arg2[%c0_1, %c0_2] : memref<40x32xbf16, #tpu.memory_space<vmem>>, vector<40x32xbf16>
    %cst = arith.constant dense<0.000000e+00> : vector<16x32xf32>
    %2 = tpu.matmul %0, %1, %cst {dimension_numbers = #tpu.dot_dimension_numbers<[1], [0], [0], [1], [0, 0, 1, 1], [], []>} : vector<16x40xbf16>, vector<40x32xbf16>, vector<16x32xf32> -> vector<16x32xf32>
    %c0_3 = arith.constant 0 : index
    %c0_4 = arith.constant 0 : index
    %3 = vector.load %arg3[%c0_3, %c0_4] : memref<1x32xf32, #tpu.memory_space<vmem>>, vector<1x32xf32>
    %4 = vector.broadcast %3 : vector<1x32xf32> to vector<16x32xf32>
    %5 = arith.addf %2, %4 : vector<16x32xf32>
    %cst_5 = arith.constant 0.000000e+00 : f32
    %6 = vector.broadcast %cst_5 : f32 to vector<16x32xf32>
    %7 = arith.maximumf %5, %6 : vector<16x32xf32>
    %8 = arith.truncf %7 : vector<16x32xf32> to vector<16x32xbf16>
    %c0_6 = arith.constant 0 : index
    %c0_7 = arith.constant 0 : index
    %c0_8 = arith.constant 0 : index
    %9 = vector.load %arg4[%c0_6, %c0_7, %c0_8] : memref<2x32x32xbf16, #tpu.memory_space<vmem>>, vector<1x32x32xbf16>
    %10 = vector.shape_cast %9 : vector<1x32x32xbf16> to vector<32x32xbf16>
    %cst_9 = arith.constant dense<0.000000e+00> : vector<16x32xf32>
    %11 = tpu.matmul %8, %10, %cst_9 {dimension_numbers = #tpu.dot_dimension_numbers<[1], [0], [0], [1], [0, 0, 1, 1], [], []>} : vector<16x32xbf16>, vector<32x32xbf16>, vector<16x32xf32> -> vector<16x32xf32>
    %c0_10 = arith.constant 0 : index
    %c0_11 = arith.constant 0 : index
    %c0_12 = arith.constant 0 : index
    %12 = vector.load %arg5[%c0_10, %c0_11, %c0_12] : memref<2x1x32xf32, #tpu.memory_space<vmem>>, vector<1x1x32xf32>
    %13 = vector.shape_cast %12 : vector<1x1x32xf32> to vector<1x32xf32>
    %14 = vector.broadcast %13 : vector<1x32xf32> to vector<16x32xf32>
    %15 = arith.addf %11, %14 : vector<16x32xf32>
    %cst_13 = arith.constant 0.000000e+00 : f32
    %16 = vector.broadcast %cst_13 : f32 to vector<16x32xf32>
    %17 = arith.maximumf %15, %16 : vector<16x32xf32>
    %18 = arith.truncf %17 : vector<16x32xf32> to vector<16x32xbf16>
    %c0_14 = arith.constant 0 : index
    %c0_15 = arith.constant 0 : index
    %c0_16 = arith.constant 0 : index
    %19 = vector.load %arg6[%c0_14, %c0_15, %c0_16] : memref<2x32x32xbf16, #tpu.memory_space<vmem>>, vector<1x32x32xbf16>
    %20 = vector.shape_cast %19 : vector<1x32x32xbf16> to vector<32x32xbf16>
    %cst_17 = arith.constant dense<0.000000e+00> : vector<16x32xf32>
    %21 = tpu.matmul %18, %20, %cst_17 {dimension_numbers = #tpu.dot_dimension_numbers<[1], [0], [0], [1], [0, 0, 1, 1], [], []>} : vector<16x32xbf16>, vector<32x32xbf16>, vector<16x32xf32> -> vector<16x32xf32>
    %c0_18 = arith.constant 0 : index
    %c0_19 = arith.constant 0 : index
    %c0_20 = arith.constant 0 : index
    %22 = vector.load %arg7[%c0_18, %c0_19, %c0_20] : memref<2x1x32xf32, #tpu.memory_space<vmem>>, vector<1x1x32xf32>
    %23 = vector.shape_cast %22 : vector<1x1x32xf32> to vector<1x32xf32>
    %24 = vector.broadcast %23 : vector<1x32xf32> to vector<16x32xf32>
    %25 = arith.addf %21, %24 : vector<16x32xf32>
    %26 = arith.addf %25, %7 : vector<16x32xf32>
    %27 = arith.truncf %26 : vector<16x32xf32> to vector<16x32xbf16>
    %c1 = arith.constant 1 : index
    %c0_21 = arith.constant 0 : index
    %c0_22 = arith.constant 0 : index
    %28 = vector.load %arg4[%c1, %c0_21, %c0_22] : memref<2x32x32xbf16, #tpu.memory_space<vmem>>, vector<1x32x32xbf16>
    %29 = vector.shape_cast %28 : vector<1x32x32xbf16> to vector<32x32xbf16>
    %cst_23 = arith.constant dense<0.000000e+00> : vector<16x32xf32>
    %30 = tpu.matmul %27, %29, %cst_23 {dimension_numbers = #tpu.dot_dimension_numbers<[1], [0], [0], [1], [0, 0, 1, 1], [], []>} : vector<16x32xbf16>, vector<32x32xbf16>, vector<16x32xf32> -> vector<16x32xf32>
    %c1_24 = arith.constant 1 : index
    %c0_25 = arith.constant 0 : index
    %c0_26 = arith.constant 0 : index
    %31 = vector.load %arg5[%c1_24, %c0_25, %c0_26] : memref<2x1x32xf32, #tpu.memory_space<vmem>>, vector<1x1x32xf32>
    %32 = vector.shape_cast %31 : vector<1x1x32xf32> to vector<1x32xf32>
    %33 = vector.broadcast %32 : vector<1x32xf32> to vector<16x32xf32>
    %34 = arith.addf %30, %33 : vector<16x32xf32>
    %cst_27 = arith.constant 0.000000e+00 : f32
    %35 = vector.broadcast %cst_27 : f32 to vector<16x32xf32>
    %36 = arith.maximumf %34, %35 : vector<16x32xf32>
    %37 = arith.truncf %36 : vector<16x32xf32> to vector<16x32xbf16>
    %c1_28 = arith.constant 1 : index
    %c0_29 = arith.constant 0 : index
    %c0_30 = arith.constant 0 : index
    %38 = vector.load %arg6[%c1_28, %c0_29, %c0_30] : memref<2x32x32xbf16, #tpu.memory_space<vmem>>, vector<1x32x32xbf16>
    %39 = vector.shape_cast %38 : vector<1x32x32xbf16> to vector<32x32xbf16>
    %cst_31 = arith.constant dense<0.000000e+00> : vector<16x32xf32>
    %40 = tpu.matmul %37, %39, %cst_31 {dimension_numbers = #tpu.dot_dimension_numbers<[1], [0], [0], [1], [0, 0, 1, 1], [], []>} : vector<16x32xbf16>, vector<32x32xbf16>, vector<16x32xf32> -> vector<16x32xf32>
    %c1_32 = arith.constant 1 : index
    %c0_33 = arith.constant 0 : index
    %c0_34 = arith.constant 0 : index
    %41 = vector.load %arg7[%c1_32, %c0_33, %c0_34] : memref<2x1x32xf32, #tpu.memory_space<vmem>>, vector<1x1x32xf32>
    %42 = vector.shape_cast %41 : vector<1x1x32xf32> to vector<1x32xf32>
    %43 = vector.broadcast %42 : vector<1x32xf32> to vector<16x32xf32>
    %44 = arith.addf %40, %43 : vector<16x32xf32>
    %45 = arith.addf %44, %26 : vector<16x32xf32>
    %46 = arith.truncf %45 : vector<16x32xf32> to vector<16x32xbf16>
    %c0_35 = arith.constant 0 : index
    %c0_36 = arith.constant 0 : index
    %47 = vector.load %arg8[%c0_35, %c0_36] : memref<32x32xbf16, #tpu.memory_space<vmem>>, vector<32x32xbf16>
    %cst_37 = arith.constant dense<0.000000e+00> : vector<16x32xf32>
    %48 = tpu.matmul %46, %47, %cst_37 {dimension_numbers = #tpu.dot_dimension_numbers<[1], [0], [0], [1], [0, 0, 1, 1], [], []>} : vector<16x32xbf16>, vector<32x32xbf16>, vector<16x32xf32> -> vector<16x32xf32>
    %c0_38 = arith.constant 0 : index
    %c0_39 = arith.constant 0 : index
    %49 = vector.load %arg9[%c0_38, %c0_39] : memref<1x32xf32, #tpu.memory_space<vmem>>, vector<1x32xf32>
    %50 = vector.broadcast %49 : vector<1x32xf32> to vector<16x32xf32>
    %51 = arith.addf %48, %50 : vector<16x32xf32>
    %c0_40 = arith.constant 0 : index
    %c0_41 = arith.constant 0 : index
    %52 = vector.load %arg10[%c0_40, %c0_41] : memref<16x32xf32, #tpu.memory_space<vmem>>, vector<16x32xf32>
    tpu.vector_store %arg10[%c0_40, %c0_41], %51 {strides = array<i32>} : memref<16x32xf32, #tpu.memory_space<vmem>>, vector<16x32xf32>,
    return
  }
  func.func @transform_0(%arg0: i32) -> (i32, i32) {
    %c0_i32 = arith.constant 0 : i32
    %c0_i32_0 = arith.constant 0 : i32
    return %arg0, %c0_i32 : i32, i32
  }
  func.func @transform_1(%arg0: i32) -> (i32, i32) {
    %c0_i32 = arith.constant 0 : i32
    %c0_i32_0 = arith.constant 0 : i32
    %c0_i32_1 = arith.constant 0 : i32
    return %c0_i32, %c0_i32_0 : i32, i32
  }
  func.func @transform_2(%arg0: i32) -> (i32, i32) {
    %c0_i32 = arith.constant 0 : i32
    %c0_i32_0 = arith.constant 0 : i32
    %c0_i32_1 = arith.constant 0 : i32
    return %c0_i32, %c0_i32_0 : i32, i32
  }
  func.func @transform_3(%arg0: i32) -> (i32, i32, i32) {
    %c0_i32 = arith.constant 0 : i32
    %c0_i32_0 = arith.constant 0 : i32
    %c0_i32_1 = arith.constant 0 : i32
    %c0_i32_2 = arith.constant 0 : i32
    return %c0_i32, %c0_i32_0, %c0_i32_1 : i32, i32, i32
  }
  func.func @transform_4(%arg0: i32) -> (i32, i32, i32) {
    %c0_i32 = arith.constant 0 : i32
    %c0_i32_0 = arith.constant 0 : i32
    %c0_i32_1 = arith.constant 0 : i32
    %c0_i32_2 = arith.constant 0 : i32
    return %c0_i32, %c0_i32_0, %c0_i32_1 : i32, i32, i32
  }
  func.func @transform_5(%arg0: i32) -> (i32, i32, i32) {
    %c0_i32 = arith.constant 0 : i32
    %c0_i32_0 = arith.constant 0 : i32
    %c0_i32_1 = arith.constant 0 : i32
    %c0_i32_2 = arith.constant 0 : i32
    return %c0_i32, %c0_i32_0, %c0_i32_1 : i32, i32, i32
  }
  func.func @transform_6(%arg0: i32) -> (i32, i32, i32) {
    %c0_i32 = arith.constant 0 : i32
    %c0_i32_0 = arith.constant 0 : i32
    %c0_i32_1 = arith.constant 0 : i32
    %c0_i32_2 = arith.constant 0 : i32
    return %c0_i32, %c0_i32_0, %c0_i32_1 : i32, i32, i32
  }
  func.func @transform_7(%arg0: i32) -> (i32, i32) {
    %c0_i32 = arith.constant 0 : i32
    %c0_i32_0 = arith.constant 0 : i32
    %c0_i32_1 = arith.constant 0 : i32
    return %c0_i32, %c0_i32_0 : i32, i32
  }
  func.func @transform_8(%arg0: i32) -> (i32, i32) {
    %c0_i32 = arith.constant 0 : i32
    %c0_i32_0 = arith.constant 0 : i32
    %c0_i32_1 = arith.constant 0 : i32
    return %c0_i32, %c0_i32_0 : i32, i32
  }
  func.func @transform_9(%arg0: i32) -> (i32, i32) {
    %c0_i32 = arith.constant 0 : i32
    %c0_i32_0 = arith.constant 0 : i32
    return %arg0, %c0_i32 : i32, i32
  }
}

module attributes {stable_mosaic.version = 11 : i64} {
  func.func @_proj_kernel(%arg0: i32, %arg1: memref<64x17xbf16, #tpu.memory_space<vmem>>, %arg2: memref<64x8xbf16, #tpu.memory_space<vmem>>, %arg3: memref<17x32xbf16, #tpu.memory_space<vmem>>, %arg4: memref<1x32xf32, #tpu.memory_space<vmem>>, %arg5: memref<32x96xbf16, #tpu.memory_space<vmem>>, %arg6: memref<1x96xf32, #tpu.memory_space<vmem>>, %arg7: memref<8x96xbf16, #tpu.memory_space<vmem>>, %arg8: memref<1x96xf32, #tpu.memory_space<vmem>>, %arg9: memref<64x32xf32, #tpu.memory_space<vmem>>, %arg10: memref<64x96xf32, #tpu.memory_space<vmem>>, %arg11: memref<64x96xf32, #tpu.memory_space<vmem>>) attributes {dimension_semantics = [#tpu.dimension_semantics<parallel>], iteration_bounds = array<i64: 1>, scalar_prefetch = 0 : i64, scratch_operands = 0 : i64, tpu.core_type = #tpu.core_type<tc>, window_params = [{transform_indices = @transform_0, window_bounds = array<i64: 64, 17>}, {transform_indices = @transform_1, window_bounds = array<i64: 64, 8>}, {pipeline_mode = #tpu.pipeline_mode<synchronous>, transform_indices = @transform_2, window_bounds = array<i64: 17, 32>}, {pipeline_mode = #tpu.pipeline_mode<synchronous>, transform_indices = @transform_3, window_bounds = array<i64: 1, 32>}, {pipeline_mode = #tpu.pipeline_mode<synchronous>, transform_indices = @transform_4, window_bounds = array<i64: 32, 96>}, {pipeline_mode = #tpu.pipeline_mode<synchronous>, transform_indices = @transform_5, window_bounds = array<i64: 1, 96>}, {pipeline_mode = #tpu.pipeline_mode<synchronous>, transform_indices = @transform_6, window_bounds = array<i64: 8, 96>}, {pipeline_mode = #tpu.pipeline_mode<synchronous>, transform_indices = @transform_7, window_bounds = array<i64: 1, 96>}, {transform_indices = @transform_8, window_bounds = array<i64: 64, 32>}, {transform_indices = @transform_9, window_bounds = array<i64: 64, 96>}, {transform_indices = @transform_10, window_bounds = array<i64: 64, 96>}]} {
    %c0 = arith.constant 0 : index
    %c0_0 = arith.constant 0 : index
    %0 = vector.load %arg1[%c0, %c0_0] : memref<64x17xbf16, #tpu.memory_space<vmem>>, vector<64x17xbf16>
    %c0_1 = arith.constant 0 : index
    %c0_2 = arith.constant 0 : index
    %1 = vector.load %arg3[%c0_1, %c0_2] : memref<17x32xbf16, #tpu.memory_space<vmem>>, vector<17x32xbf16>
    %cst = arith.constant dense<0.000000e+00> : vector<64x32xf32>
    %2 = tpu.matmul %0, %1, %cst {dimension_numbers = #tpu.dot_dimension_numbers<[1], [0], [0], [1], [0, 0, 1, 1], [], []>} : vector<64x17xbf16>, vector<17x32xbf16>, vector<64x32xf32> -> vector<64x32xf32>
    %c0_3 = arith.constant 0 : index
    %c0_4 = arith.constant 0 : index
    %3 = vector.load %arg4[%c0_3, %c0_4] : memref<1x32xf32, #tpu.memory_space<vmem>>, vector<1x32xf32>
    %4 = vector.broadcast %3 : vector<1x32xf32> to vector<64x32xf32>
    %5 = arith.addf %2, %4 : vector<64x32xf32>
    %6 = arith.truncf %5 : vector<64x32xf32> to vector<64x32xbf16>
    %c0_5 = arith.constant 0 : index
    %c0_6 = arith.constant 0 : index
    %7 = vector.load %arg5[%c0_5, %c0_6] : memref<32x96xbf16, #tpu.memory_space<vmem>>, vector<32x96xbf16>
    %cst_7 = arith.constant dense<0.000000e+00> : vector<64x96xf32>
    %8 = tpu.matmul %6, %7, %cst_7 {dimension_numbers = #tpu.dot_dimension_numbers<[1], [0], [0], [1], [0, 0, 1, 1], [], []>} : vector<64x32xbf16>, vector<32x96xbf16>, vector<64x96xf32> -> vector<64x96xf32>
    %c0_8 = arith.constant 0 : index
    %c0_9 = arith.constant 0 : index
    %9 = vector.load %arg6[%c0_8, %c0_9] : memref<1x96xf32, #tpu.memory_space<vmem>>, vector<1x96xf32>
    %10 = vector.broadcast %9 : vector<1x96xf32> to vector<64x96xf32>
    %11 = arith.addf %8, %10 : vector<64x96xf32>
    %c0_10 = arith.constant 0 : index
    %c0_11 = arith.constant 0 : index
    %12 = vector.load %arg2[%c0_10, %c0_11] : memref<64x8xbf16, #tpu.memory_space<vmem>>, vector<64x8xbf16>
    %c0_12 = arith.constant 0 : index
    %c0_13 = arith.constant 0 : index
    %13 = vector.load %arg7[%c0_12, %c0_13] : memref<8x96xbf16, #tpu.memory_space<vmem>>, vector<8x96xbf16>
    %cst_14 = arith.constant dense<0.000000e+00> : vector<64x96xf32>
    %14 = tpu.matmul %12, %13, %cst_14 {dimension_numbers = #tpu.dot_dimension_numbers<[1], [0], [0], [1], [0, 0, 1, 1], [], []>} : vector<64x8xbf16>, vector<8x96xbf16>, vector<64x96xf32> -> vector<64x96xf32>
    %c0_15 = arith.constant 0 : index
    %c0_16 = arith.constant 0 : index
    %15 = vector.load %arg8[%c0_15, %c0_16] : memref<1x96xf32, #tpu.memory_space<vmem>>, vector<1x96xf32>
    %16 = vector.broadcast %15 : vector<1x96xf32> to vector<64x96xf32>
    %17 = arith.addf %14, %16 : vector<64x96xf32>
    %c0_17 = arith.constant 0 : index
    %c0_18 = arith.constant 0 : index
    %18 = vector.load %arg9[%c0_17, %c0_18] : memref<64x32xf32, #tpu.memory_space<vmem>>, vector<64x32xf32>
    tpu.vector_store %arg9[%c0_17, %c0_18], %5 {strides = array<i32>} : memref<64x32xf32, #tpu.memory_space<vmem>>, vector<64x32xf32>,
    %c0_19 = arith.constant 0 : index
    %c0_20 = arith.constant 0 : index
    %19 = vector.load %arg10[%c0_19, %c0_20] : memref<64x96xf32, #tpu.memory_space<vmem>>, vector<64x96xf32>
    tpu.vector_store %arg10[%c0_19, %c0_20], %11 {strides = array<i32>} : memref<64x96xf32, #tpu.memory_space<vmem>>, vector<64x96xf32>,
    %c0_21 = arith.constant 0 : index
    %c0_22 = arith.constant 0 : index
    %20 = vector.load %arg11[%c0_21, %c0_22] : memref<64x96xf32, #tpu.memory_space<vmem>>, vector<64x96xf32>
    tpu.vector_store %arg11[%c0_21, %c0_22], %17 {strides = array<i32>} : memref<64x96xf32, #tpu.memory_space<vmem>>, vector<64x96xf32>,
    return
  }
  func.func @transform_0(%arg0: i32) -> (i32, i32) {
    %c0_i32 = arith.constant 0 : i32
    %c0_i32_0 = arith.constant 0 : i32
    return %arg0, %c0_i32 : i32, i32
  }
  func.func @transform_1(%arg0: i32) -> (i32, i32) {
    %c0_i32 = arith.constant 0 : i32
    %c0_i32_0 = arith.constant 0 : i32
    return %arg0, %c0_i32 : i32, i32
  }
  func.func @transform_2(%arg0: i32) -> (i32, i32) {
    %c0_i32 = arith.constant 0 : i32
    %c0_i32_0 = arith.constant 0 : i32
    %c0_i32_1 = arith.constant 0 : i32
    return %c0_i32, %c0_i32_0 : i32, i32
  }
  func.func @transform_3(%arg0: i32) -> (i32, i32) {
    %c0_i32 = arith.constant 0 : i32
    %c0_i32_0 = arith.constant 0 : i32
    %c0_i32_1 = arith.constant 0 : i32
    return %c0_i32, %c0_i32_0 : i32, i32
  }
  func.func @transform_4(%arg0: i32) -> (i32, i32) {
    %c0_i32 = arith.constant 0 : i32
    %c0_i32_0 = arith.constant 0 : i32
    %c0_i32_1 = arith.constant 0 : i32
    return %c0_i32, %c0_i32_0 : i32, i32
  }
  func.func @transform_5(%arg0: i32) -> (i32, i32) {
    %c0_i32 = arith.constant 0 : i32
    %c0_i32_0 = arith.constant 0 : i32
    %c0_i32_1 = arith.constant 0 : i32
    return %c0_i32, %c0_i32_0 : i32, i32
  }
  func.func @transform_6(%arg0: i32) -> (i32, i32) {
    %c0_i32 = arith.constant 0 : i32
    %c0_i32_0 = arith.constant 0 : i32
    %c0_i32_1 = arith.constant 0 : i32
    return %c0_i32, %c0_i32_0 : i32, i32
  }
  func.func @transform_7(%arg0: i32) -> (i32, i32) {
    %c0_i32 = arith.constant 0 : i32
    %c0_i32_0 = arith.constant 0 : i32
    %c0_i32_1 = arith.constant 0 : i32
    return %c0_i32, %c0_i32_0 : i32, i32
  }
  func.func @transform_8(%arg0: i32) -> (i32, i32) {
    %c0_i32 = arith.constant 0 : i32
    %c0_i32_0 = arith.constant 0 : i32
    return %arg0, %c0_i32 : i32, i32
  }
  func.func @transform_9(%arg0: i32) -> (i32, i32) {
    %c0_i32 = arith.constant 0 : i32
    %c0_i32_0 = arith.constant 0 : i32
    return %arg0, %c0_i32 : i32, i32
  }
  func.func @transform_10(%arg0: i32) -> (i32, i32) {
    %c0_i32 = arith.constant 0 : i32
    %c0_i32_0 = arith.constant 0 : i32
    return %arg0, %c0_i32 : i32, i32
  }
}

module attributes {stable_mosaic.version = 11 : i64} {
  func.func @_dgru_kernel(%arg0: i32, %arg1: memref<8x2x96xf32, #tpu.memory_space<vmem>>, %arg2: memref<8x2x96xf32, #tpu.memory_space<vmem>>, %arg3: memref<8x2x32xf32, #tpu.memory_space<vmem>>, %arg4: memref<32x96xf32, #tpu.memory_space<vmem>>, %arg5: memref<1x96xf32, #tpu.memory_space<vmem>>, %arg6: memref<32x96xf32, #tpu.memory_space<vmem>>, %arg7: memref<1x96xf32, #tpu.memory_space<vmem>>, %arg8: memref<32x96xf32, #tpu.memory_space<vmem>>, %arg9: memref<8x2x32xf32, #tpu.memory_space<vmem>>, %arg10: memref<2x32xf32, #tpu.memory_space<vmem>>, %arg11: memref<2x32xf32, #tpu.memory_space<vmem>>) attributes {dimension_semantics = [#tpu.dimension_semantics<arbitrary>], iteration_bounds = array<i64: 4>, scalar_prefetch = 0 : i64, scratch_operands = 2 : i64, tpu.core_type = #tpu.core_type<tc>, window_params = [{transform_indices = @transform_0, window_bounds = array<i64: 8, 2, 96>}, {transform_indices = @transform_1, window_bounds = array<i64: 8, 2, 96>}, {transform_indices = @transform_2, window_bounds = array<i64: 8, 2, 32>}, {pipeline_mode = #tpu.pipeline_mode<synchronous>, transform_indices = @transform_3, window_bounds = array<i64: 32, 96>}, {pipeline_mode = #tpu.pipeline_mode<synchronous>, transform_indices = @transform_4, window_bounds = array<i64: 1, 96>}, {pipeline_mode = #tpu.pipeline_mode<synchronous>, transform_indices = @transform_5, window_bounds = array<i64: 32, 96>}, {pipeline_mode = #tpu.pipeline_mode<synchronous>, transform_indices = @transform_6, window_bounds = array<i64: 1, 96>}, {pipeline_mode = #tpu.pipeline_mode<synchronous>, transform_indices = @transform_7, window_bounds = array<i64: 32, 96>}, {transform_indices = @transform_8, window_bounds = array<i64: 8, 2, 32>}]} {
    %c0_i32 = arith.constant 0 : i32
    %0 = arith.cmpi eq, %arg0, %c0_i32 : i32
    %1 = arith.extui %0 : i1 to i32
    %c0_i32_0 = arith.constant 0 : i32
    %2 = arith.cmpi ne, %1, %c0_i32_0 : i32
    scf.if %2 {
      %cst_210 = arith.constant 0.000000e+00 : f32
      %640 = vector.broadcast %cst_210 : f32 to vector<2x32xf32>
      %c0_211 = arith.constant 0 : index
      %c0_212 = arith.constant 0 : index
      %641 = vector.load %arg10[%c0_211, %c0_212] : memref<2x32xf32, #tpu.memory_space<vmem>>, vector<2x32xf32>
      tpu.vector_store %arg10[%c0_211, %c0_212], %640 {strides = array<i32>} : memref<2x32xf32, #tpu.memory_space<vmem>>, vector<2x32xf32>,
      %cst_213 = arith.constant 0.000000e+00 : f32
      %642 = vector.broadcast %cst_213 : f32 to vector<2x32xf32>
      %c0_214 = arith.constant 0 : index
      %c0_215 = arith.constant 0 : index
      %643 = vector.load %arg11[%c0_214, %c0_215] : memref<2x32xf32, #tpu.memory_space<vmem>>, vector<2x32xf32>
      tpu.vector_store %arg11[%c0_214, %c0_215], %642 {strides = array<i32>} : memref<2x32xf32, #tpu.memory_space<vmem>>, vector<2x32xf32>,
    } else {
    }
    %c0 = arith.constant 0 : index
    %c0_1 = arith.constant 0 : index
    %3 = vector.load %arg4[%c0, %c0_1] : memref<32x96xf32, #tpu.memory_space<vmem>>, vector<32x96xf32>
    %c0_2 = arith.constant 0 : index
    %c0_3 = arith.constant 0 : index
    %4 = vector.load %arg5[%c0_2, %c0_3] : memref<1x96xf32, #tpu.memory_space<vmem>>, vector<1x96xf32>
    %c0_4 = arith.constant 0 : index
    %c0_5 = arith.constant 0 : index
    %5 = vector.load %arg6[%c0_4, %c0_5] : memref<32x96xf32, #tpu.memory_space<vmem>>, vector<32x96xf32>
    %c0_6 = arith.constant 0 : index
    %c0_7 = arith.constant 0 : index
    %6 = vector.load %arg7[%c0_6, %c0_7] : memref<1x96xf32, #tpu.memory_space<vmem>>, vector<1x96xf32>
    %c0_8 = arith.constant 0 : index
    %c0_9 = arith.constant 0 : index
    %7 = vector.load %arg8[%c0_8, %c0_9] : memref<32x96xf32, #tpu.memory_space<vmem>>, vector<32x96xf32>
    %c0_i32_10 = arith.constant 0 : i32
    %c0_11 = arith.constant 0 : index
    %c0_12 = arith.constant 0 : index
    %8 = vector.load %arg10[%c0_11, %c0_12] : memref<2x32xf32, #tpu.memory_space<vmem>>, vector<2x32xf32>
    %c0_13 = arith.constant 0 : index
    %c0_14 = arith.constant 0 : index
    %9 = vector.load %arg11[%c0_13, %c0_14] : memref<2x32xf32, #tpu.memory_space<vmem>>, vector<2x32xf32>
    %cst = arith.constant dense<0.000000e+00> : vector<2x96xf32>
    %10 = tpu.matmul %8, %3, %cst {dimension_numbers = #tpu.dot_dimension_numbers<[1], [0], [0], [1], [0, 0, 1, 1], [], []>} : vector<2x32xf32>, vector<32x96xf32>, vector<2x96xf32> -> vector<2x96xf32>
    %11 = vector.broadcast %4 : vector<1x96xf32> to vector<2x96xf32>
    %12 = arith.addf %10, %11 : vector<2x96xf32>
    %13 = arith.index_cast %c0_i32_10 : i32 to index
    %c0_15 = arith.constant 0 : index
    %c0_16 = arith.constant 0 : index
    %14 = vector.load %arg1[%13, %c0_15, %c0_16] : memref<8x2x96xf32, #tpu.memory_space<vmem>>, vector<1x2x96xf32>
    %15 = vector.shape_cast %14 : vector<1x2x96xf32> to vector<2x96xf32>
    %16 = vector.extract_strided_slice %15 {offsets = [0, 0], sizes = [2, 32], strides = [1, 1]} : vector<2x96xf32> to vector<2x32xf32>
    %17 = vector.extract_strided_slice %12 {offsets = [0, 0], sizes = [2, 32], strides = [1, 1]} : vector<2x96xf32> to vector<2x32xf32>
    %18 = arith.addf %16, %17 : vector<2x32xf32>
    %19 = arith.negf %18 : vector<2x32xf32>
    %20 = math.exp %19 : vector<2x32xf32>
    %cst_17 = arith.constant 1.000000e+00 : f32
    %21 = vector.broadcast %cst_17 : f32 to vector<2x32xf32>
    %22 = arith.addf %21, %20 : vector<2x32xf32>
    %23 = arith.divf %21, %22 : vector<2x32xf32>
    %24 = vector.extract_strided_slice %15 {offsets = [0, 32], sizes = [2, 32], strides = [1, 1]} : vector<2x96xf32> to vector<2x32xf32>
    %25 = vector.extract_strided_slice %12 {offsets = [0, 32], sizes = [2, 32], strides = [1, 1]} : vector<2x96xf32> to vector<2x32xf32>
    %26 = arith.addf %24, %25 : vector<2x32xf32>
    %27 = arith.negf %26 : vector<2x32xf32>
    %28 = math.exp %27 : vector<2x32xf32>
    %cst_18 = arith.constant 1.000000e+00 : f32
    %29 = vector.broadcast %cst_18 : f32 to vector<2x32xf32>
    %30 = arith.addf %29, %28 : vector<2x32xf32>
    %31 = arith.divf %29, %30 : vector<2x32xf32>
    %32 = vector.extract_strided_slice %15 {offsets = [0, 64], sizes = [2, 32], strides = [1, 1]} : vector<2x96xf32> to vector<2x32xf32>
    %33 = vector.extract_strided_slice %12 {offsets = [0, 64], sizes = [2, 32], strides = [1, 1]} : vector<2x96xf32> to vector<2x32xf32>
    %34 = arith.mulf %23, %33 : vector<2x32xf32>
    %35 = arith.addf %32, %34 : vector<2x32xf32>
    %36 = math.tanh %35 : vector<2x32xf32>
    %cst_19 = arith.constant 1.000000e+00 : f32
    %37 = vector.broadcast %cst_19 : f32 to vector<2x32xf32>
    %38 = arith.subf %37, %31 : vector<2x32xf32>
    %39 = arith.mulf %38, %36 : vector<2x32xf32>
    %40 = arith.mulf %31, %8 : vector<2x32xf32>
    %41 = arith.addf %39, %40 : vector<2x32xf32>
    %42 = arith.index_cast %c0_i32_10 : i32 to index
    %c0_20 = arith.constant 0 : index
    %c0_21 = arith.constant 0 : index
    %43 = vector.load %arg3[%42, %c0_20, %c0_21] : memref<8x2x32xf32, #tpu.memory_space<vmem>>, vector<1x2x32xf32>
    %44 = vector.shape_cast %43 : vector<1x2x32xf32> to vector<2x32xf32>
    %45 = arith.addf %41, %44 : vector<2x32xf32>
    %cst_22 = arith.constant dense<0.000000e+00> : vector<2x96xf32>
    %46 = tpu.matmul %45, %7, %cst_22 {dimension_numbers = #tpu.dot_dimension_numbers<[1], [0], [0], [1], [0, 0, 1, 1], [], []>} : vector<2x32xf32>, vector<32x96xf32>, vector<2x96xf32> -> vector<2x96xf32>
    %47 = arith.index_cast %c0_i32_10 : i32 to index
    %c0_23 = arith.constant 0 : index
    %c0_24 = arith.constant 0 : index
    %48 = vector.load %arg2[%47, %c0_23, %c0_24] : memref<8x2x96xf32, #tpu.memory_space<vmem>>, vector<1x2x96xf32>
    %49 = vector.shape_cast %48 : vector<1x2x96xf32> to vector<2x96xf32>
    %50 = arith.addf %46, %49 : vector<2x96xf32>
    %cst_25 = arith.constant dense<0.000000e+00> : vector<2x96xf32>
    %51 = tpu.matmul %9, %5, %cst_25 {dimension_numbers = #tpu.dot_dimension_numbers<[1], [0], [0], [1], [0, 0, 1, 1], [], []>} : vector<2x32xf32>, vector<32x96xf32>, vector<2x96xf32> -> vector<2x96xf32>
    %52 = vector.broadcast %6 : vector<1x96xf32> to vector<2x96xf32>
    %53 = arith.addf %51, %52 : vector<2x96xf32>
    %54 = vector.extract_strided_slice %50 {offsets = [0, 0], sizes = [2, 32], strides = [1, 1]} : vector<2x96xf32> to vector<2x32xf32>
    %55 = vector.extract_strided_slice %53 {offsets = [0, 0], sizes = [2, 32], strides = [1, 1]} : vector<2x96xf32> to vector<2x32xf32>
    %56 = arith.addf %54, %55 : vector<2x32xf32>
    %57 = arith.negf %56 : vector<2x32xf32>
    %58 = math.exp %57 : vector<2x32xf32>
    %cst_26 = arith.constant 1.000000e+00 : f32
    %59 = vector.broadcast %cst_26 : f32 to vector<2x32xf32>
    %60 = arith.addf %59, %58 : vector<2x32xf32>
    %61 = arith.divf %59, %60 : vector<2x32xf32>
    %62 = vector.extract_strided_slice %50 {offsets = [0, 32], sizes = [2, 32], strides = [1, 1]} : vector<2x96xf32> to vector<2x32xf32>
    %63 = vector.extract_strided_slice %53 {offsets = [0, 32], sizes = [2, 32], strides = [1, 1]} : vector<2x96xf32> to vector<2x32xf32>
    %64 = arith.addf %62, %63 : vector<2x32xf32>
    %65 = arith.negf %64 : vector<2x32xf32>
    %66 = math.exp %65 : vector<2x32xf32>
    %cst_27 = arith.constant 1.000000e+00 : f32
    %67 = vector.broadcast %cst_27 : f32 to vector<2x32xf32>
    %68 = arith.addf %67, %66 : vector<2x32xf32>
    %69 = arith.divf %67, %68 : vector<2x32xf32>
    %70 = vector.extract_strided_slice %50 {offsets = [0, 64], sizes = [2, 32], strides = [1, 1]} : vector<2x96xf32> to vector<2x32xf32>
    %71 = vector.extract_strided_slice %53 {offsets = [0, 64], sizes = [2, 32], strides = [1, 1]} : vector<2x96xf32> to vector<2x32xf32>
    %72 = arith.mulf %61, %71 : vector<2x32xf32>
    %73 = arith.addf %70, %72 : vector<2x32xf32>
    %74 = math.tanh %73 : vector<2x32xf32>
    %cst_28 = arith.constant 1.000000e+00 : f32
    %75 = vector.broadcast %cst_28 : f32 to vector<2x32xf32>
    %76 = arith.subf %75, %69 : vector<2x32xf32>
    %77 = arith.mulf %76, %74 : vector<2x32xf32>
    %78 = arith.mulf %69, %9 : vector<2x32xf32>
    %79 = arith.addf %77, %78 : vector<2x32xf32>
    %c0_29 = arith.constant 0 : index
    %c0_30 = arith.constant 0 : index
    %80 = vector.load %arg10[%c0_29, %c0_30] : memref<2x32xf32, #tpu.memory_space<vmem>>, vector<2x32xf32>
    tpu.vector_store %arg10[%c0_29, %c0_30], %41 {strides = array<i32>} : memref<2x32xf32, #tpu.memory_space<vmem>>, vector<2x32xf32>,
    %c0_31 = arith.constant 0 : index
    %c0_32 = arith.constant 0 : index
    %81 = vector.load %arg11[%c0_31, %c0_32] : memref<2x32xf32, #tpu.memory_space<vmem>>, vector<2x32xf32>
    tpu.vector_store %arg11[%c0_31, %c0_32], %79 {strides = array<i32>} : memref<2x32xf32, #tpu.memory_space<vmem>>, vector<2x32xf32>,
    %82 = arith.addf %79, %45 : vector<2x32xf32>
    %83 = arith.index_cast %c0_i32_10 : i32 to index
    %c0_33 = arith.constant 0 : index
    %c0_34 = arith.constant 0 : index
    %84 = vector.load %arg9[%83, %c0_33, %c0_34] : memref<8x2x32xf32, #tpu.memory_space<vmem>>, vector<1x2x32xf32>
    %85 = vector.shape_cast %84 : vector<1x2x32xf32> to vector<2x32xf32>
    %86 = vector.shape_cast %82 : vector<2x32xf32> to vector<1x2x32xf32>
    tpu.vector_store %arg9[%83, %c0_33, %c0_34], %86 {strides = array<i32>} : memref<8x2x32xf32, #tpu.memory_space<vmem>>, vector<1x2x32xf32>,
    %c1_i32 = arith.constant 1 : i32
    %c0_35 = arith.constant 0 : index
    %c0_36 = arith.constant 0 : index
    %87 = vector.load %arg10[%c0_35, %c0_36] : memref<2x32xf32, #tpu.memory_space<vmem>>, vector<2x32xf32>
    %c0_37 = arith.constant 0 : index
    %c0_38 = arith.constant 0 : index
    %88 = vector.load %arg11[%c0_37, %c0_38] : memref<2x32xf32, #tpu.memory_space<vmem>>, vector<2x32xf32>
    %cst_39 = arith.constant dense<0.000000e+00> : vector<2x96xf32>
    %89 = tpu.matmul %87, %3, %cst_39 {dimension_numbers = #tpu.dot_dimension_numbers<[1], [0], [0], [1], [0, 0, 1, 1], [], []>} : vector<2x32xf32>, vector<32x96xf32>, vector<2x96xf32> -> vector<2x96xf32>
    %90 = vector.broadcast %4 : vector<1x96xf32> to vector<2x96xf32>
    %91 = arith.addf %89, %90 : vector<2x96xf32>
    %92 = arith.index_cast %c1_i32 : i32 to index
    %c0_40 = arith.constant 0 : index
    %c0_41 = arith.constant 0 : index
    %93 = vector.load %arg1[%92, %c0_40, %c0_41] : memref<8x2x96xf32, #tpu.memory_space<vmem>>, vector<1x2x96xf32>
    %94 = vector.shape_cast %93 : vector<1x2x96xf32> to vector<2x96xf32>
    %95 = vector.extract_strided_slice %94 {offsets = [0, 0], sizes = [2, 32], strides = [1, 1]} : vector<2x96xf32> to vector<2x32xf32>
    %96 = vector.extract_strided_slice %91 {offsets = [0, 0], sizes = [2, 32], strides = [1, 1]} : vector<2x96xf32> to vector<2x32xf32>
    %97 = arith.addf %95, %96 : vector<2x32xf32>
    %98 = arith.negf %97 : vector<2x32xf32>
    %99 = math.exp %98 : vector<2x32xf32>
    %cst_42 = arith.constant 1.000000e+00 : f32
    %100 = vector.broadcast %cst_42 : f32 to vector<2x32xf32>
    %101 = arith.addf %100, %99 : vector<2x32xf32>
    %102 = arith.divf %100, %101 : vector<2x32xf32>
    %103 = vector.extract_strided_slice %94 {offsets = [0, 32], sizes = [2, 32], strides = [1, 1]} : vector<2x96xf32> to vector<2x32xf32>
    %104 = vector.extract_strided_slice %91 {offsets = [0, 32], sizes = [2, 32], strides = [1, 1]} : vector<2x96xf32> to vector<2x32xf32>
    %105 = arith.addf %103, %104 : vector<2x32xf32>
    %106 = arith.negf %105 : vector<2x32xf32>
    %107 = math.exp %106 : vector<2x32xf32>
    %cst_43 = arith.constant 1.000000e+00 : f32
    %108 = vector.broadcast %cst_43 : f32 to vector<2x32xf32>
    %109 = arith.addf %108, %107 : vector<2x32xf32>
    %110 = arith.divf %108, %109 : vector<2x32xf32>
    %111 = vector.extract_strided_slice %94 {offsets = [0, 64], sizes = [2, 32], strides = [1, 1]} : vector<2x96xf32> to vector<2x32xf32>
    %112 = vector.extract_strided_slice %91 {offsets = [0, 64], sizes = [2, 32], strides = [1, 1]} : vector<2x96xf32> to vector<2x32xf32>
    %113 = arith.mulf %102, %112 : vector<2x32xf32>
    %114 = arith.addf %111, %113 : vector<2x32xf32>
    %115 = math.tanh %114 : vector<2x32xf32>
    %cst_44 = arith.constant 1.000000e+00 : f32
    %116 = vector.broadcast %cst_44 : f32 to vector<2x32xf32>
    %117 = arith.subf %116, %110 : vector<2x32xf32>
    %118 = arith.mulf %117, %115 : vector<2x32xf32>
    %119 = arith.mulf %110, %87 : vector<2x32xf32>
    %120 = arith.addf %118, %119 : vector<2x32xf32>
    %121 = arith.index_cast %c1_i32 : i32 to index
    %c0_45 = arith.constant 0 : index
    %c0_46 = arith.constant 0 : index
    %122 = vector.load %arg3[%121, %c0_45, %c0_46] : memref<8x2x32xf32, #tpu.memory_space<vmem>>, vector<1x2x32xf32>
    %123 = vector.shape_cast %122 : vector<1x2x32xf32> to vector<2x32xf32>
    %124 = arith.addf %120, %123 : vector<2x32xf32>
    %cst_47 = arith.constant dense<0.000000e+00> : vector<2x96xf32>
    %125 = tpu.matmul %124, %7, %cst_47 {dimension_numbers = #tpu.dot_dimension_numbers<[1], [0], [0], [1], [0, 0, 1, 1], [], []>} : vector<2x32xf32>, vector<32x96xf32>, vector<2x96xf32> -> vector<2x96xf32>
    %126 = arith.index_cast %c1_i32 : i32 to index
    %c0_48 = arith.constant 0 : index
    %c0_49 = arith.constant 0 : index
    %127 = vector.load %arg2[%126, %c0_48, %c0_49] : memref<8x2x96xf32, #tpu.memory_space<vmem>>, vector<1x2x96xf32>
    %128 = vector.shape_cast %127 : vector<1x2x96xf32> to vector<2x96xf32>
    %129 = arith.addf %125, %128 : vector<2x96xf32>
    %cst_50 = arith.constant dense<0.000000e+00> : vector<2x96xf32>
    %130 = tpu.matmul %88, %5, %cst_50 {dimension_numbers = #tpu.dot_dimension_numbers<[1], [0], [0], [1], [0, 0, 1, 1], [], []>} : vector<2x32xf32>, vector<32x96xf32>, vector<2x96xf32> -> vector<2x96xf32>
    %131 = vector.broadcast %6 : vector<1x96xf32> to vector<2x96xf32>
    %132 = arith.addf %130, %131 : vector<2x96xf32>
    %133 = vector.extract_strided_slice %129 {offsets = [0, 0], sizes = [2, 32], strides = [1, 1]} : vector<2x96xf32> to vector<2x32xf32>
    %134 = vector.extract_strided_slice %132 {offsets = [0, 0], sizes = [2, 32], strides = [1, 1]} : vector<2x96xf32> to vector<2x32xf32>
    %135 = arith.addf %133, %134 : vector<2x32xf32>
    %136 = arith.negf %135 : vector<2x32xf32>
    %137 = math.exp %136 : vector<2x32xf32>
    %cst_51 = arith.constant 1.000000e+00 : f32
    %138 = vector.broadcast %cst_51 : f32 to vector<2x32xf32>
    %139 = arith.addf %138, %137 : vector<2x32xf32>
    %140 = arith.divf %138, %139 : vector<2x32xf32>
    %141 = vector.extract_strided_slice %129 {offsets = [0, 32], sizes = [2, 32], strides = [1, 1]} : vector<2x96xf32> to vector<2x32xf32>
    %142 = vector.extract_strided_slice %132 {offsets = [0, 32], sizes = [2, 32], strides = [1, 1]} : vector<2x96xf32> to vector<2x32xf32>
    %143 = arith.addf %141, %142 : vector<2x32xf32>
    %144 = arith.negf %143 : vector<2x32xf32>
    %145 = math.exp %144 : vector<2x32xf32>
    %cst_52 = arith.constant 1.000000e+00 : f32
    %146 = vector.broadcast %cst_52 : f32 to vector<2x32xf32>
    %147 = arith.addf %146, %145 : vector<2x32xf32>
    %148 = arith.divf %146, %147 : vector<2x32xf32>
    %149 = vector.extract_strided_slice %129 {offsets = [0, 64], sizes = [2, 32], strides = [1, 1]} : vector<2x96xf32> to vector<2x32xf32>
    %150 = vector.extract_strided_slice %132 {offsets = [0, 64], sizes = [2, 32], strides = [1, 1]} : vector<2x96xf32> to vector<2x32xf32>
    %151 = arith.mulf %140, %150 : vector<2x32xf32>
    %152 = arith.addf %149, %151 : vector<2x32xf32>
    %153 = math.tanh %152 : vector<2x32xf32>
    %cst_53 = arith.constant 1.000000e+00 : f32
    %154 = vector.broadcast %cst_53 : f32 to vector<2x32xf32>
    %155 = arith.subf %154, %148 : vector<2x32xf32>
    %156 = arith.mulf %155, %153 : vector<2x32xf32>
    %157 = arith.mulf %148, %88 : vector<2x32xf32>
    %158 = arith.addf %156, %157 : vector<2x32xf32>
    %c0_54 = arith.constant 0 : index
    %c0_55 = arith.constant 0 : index
    %159 = vector.load %arg10[%c0_54, %c0_55] : memref<2x32xf32, #tpu.memory_space<vmem>>, vector<2x32xf32>
    tpu.vector_store %arg10[%c0_54, %c0_55], %120 {strides = array<i32>} : memref<2x32xf32, #tpu.memory_space<vmem>>, vector<2x32xf32>,
    %c0_56 = arith.constant 0 : index
    %c0_57 = arith.constant 0 : index
    %160 = vector.load %arg11[%c0_56, %c0_57] : memref<2x32xf32, #tpu.memory_space<vmem>>, vector<2x32xf32>
    tpu.vector_store %arg11[%c0_56, %c0_57], %158 {strides = array<i32>} : memref<2x32xf32, #tpu.memory_space<vmem>>, vector<2x32xf32>,
    %161 = arith.addf %158, %124 : vector<2x32xf32>
    %162 = arith.index_cast %c1_i32 : i32 to index
    %c0_58 = arith.constant 0 : index
    %c0_59 = arith.constant 0 : index
    %163 = vector.load %arg9[%162, %c0_58, %c0_59] : memref<8x2x32xf32, #tpu.memory_space<vmem>>, vector<1x2x32xf32>
    %164 = vector.shape_cast %163 : vector<1x2x32xf32> to vector<2x32xf32>
    %165 = vector.shape_cast %161 : vector<2x32xf32> to vector<1x2x32xf32>
    tpu.vector_store %arg9[%162, %c0_58, %c0_59], %165 {strides = array<i32>} : memref<8x2x32xf32, #tpu.memory_space<vmem>>, vector<1x2x32xf32>,
    %c2_i32 = arith.constant 2 : i32
    %c0_60 = arith.constant 0 : index
    %c0_61 = arith.constant 0 : index
    %166 = vector.load %arg10[%c0_60, %c0_61] : memref<2x32xf32, #tpu.memory_space<vmem>>, vector<2x32xf32>
    %c0_62 = arith.constant 0 : index
    %c0_63 = arith.constant 0 : index
    %167 = vector.load %arg11[%c0_62, %c0_63] : memref<2x32xf32, #tpu.memory_space<vmem>>, vector<2x32xf32>
    %cst_64 = arith.constant dense<0.000000e+00> : vector<2x96xf32>
    %168 = tpu.matmul %166, %3, %cst_64 {dimension_numbers = #tpu.dot_dimension_numbers<[1], [0], [0], [1], [0, 0, 1, 1], [], []>} : vector<2x32xf32>, vector<32x96xf32>, vector<2x96xf32> -> vector<2x96xf32>
    %169 = vector.broadcast %4 : vector<1x96xf32> to vector<2x96xf32>
    %170 = arith.addf %168, %169 : vector<2x96xf32>
    %171 = arith.index_cast %c2_i32 : i32 to index
    %c0_65 = arith.constant 0 : index
    %c0_66 = arith.constant 0 : index
    %172 = vector.load %arg1[%171, %c0_65, %c0_66] : memref<8x2x96xf32, #tpu.memory_space<vmem>>, vector<1x2x96xf32>
    %173 = vector.shape_cast %172 : vector<1x2x96xf32> to vector<2x96xf32>
    %174 = vector.extract_strided_slice %173 {offsets = [0, 0], sizes = [2, 32], strides = [1, 1]} : vector<2x96xf32> to vector<2x32xf32>
    %175 = vector.extract_strided_slice %170 {offsets = [0, 0], sizes = [2, 32], strides = [1, 1]} : vector<2x96xf32> to vector<2x32xf32>
    %176 = arith.addf %174, %175 : vector<2x32xf32>
    %177 = arith.negf %176 : vector<2x32xf32>
    %178 = math.exp %177 : vector<2x32xf32>
    %cst_67 = arith.constant 1.000000e+00 : f32
    %179 = vector.broadcast %cst_67 : f32 to vector<2x32xf32>
    %180 = arith.addf %179, %178 : vector<2x32xf32>
    %181 = arith.divf %179, %180 : vector<2x32xf32>
    %182 = vector.extract_strided_slice %173 {offsets = [0, 32], sizes = [2, 32], strides = [1, 1]} : vector<2x96xf32> to vector<2x32xf32>
    %183 = vector.extract_strided_slice %170 {offsets = [0, 32], sizes = [2, 32], strides = [1, 1]} : vector<2x96xf32> to vector<2x32xf32>
    %184 = arith.addf %182, %183 : vector<2x32xf32>
    %185 = arith.negf %184 : vector<2x32xf32>
    %186 = math.exp %185 : vector<2x32xf32>
    %cst_68 = arith.constant 1.000000e+00 : f32
    %187 = vector.broadcast %cst_68 : f32 to vector<2x32xf32>
    %188 = arith.addf %187, %186 : vector<2x32xf32>
    %189 = arith.divf %187, %188 : vector<2x32xf32>
    %190 = vector.extract_strided_slice %173 {offsets = [0, 64], sizes = [2, 32], strides = [1, 1]} : vector<2x96xf32> to vector<2x32xf32>
    %191 = vector.extract_strided_slice %170 {offsets = [0, 64], sizes = [2, 32], strides = [1, 1]} : vector<2x96xf32> to vector<2x32xf32>
    %192 = arith.mulf %181, %191 : vector<2x32xf32>
    %193 = arith.addf %190, %192 : vector<2x32xf32>
    %194 = math.tanh %193 : vector<2x32xf32>
    %cst_69 = arith.constant 1.000000e+00 : f32
    %195 = vector.broadcast %cst_69 : f32 to vector<2x32xf32>
    %196 = arith.subf %195, %189 : vector<2x32xf32>
    %197 = arith.mulf %196, %194 : vector<2x32xf32>
    %198 = arith.mulf %189, %166 : vector<2x32xf32>
    %199 = arith.addf %197, %198 : vector<2x32xf32>
    %200 = arith.index_cast %c2_i32 : i32 to index
    %c0_70 = arith.constant 0 : index
    %c0_71 = arith.constant 0 : index
    %201 = vector.load %arg3[%200, %c0_70, %c0_71] : memref<8x2x32xf32, #tpu.memory_space<vmem>>, vector<1x2x32xf32>
    %202 = vector.shape_cast %201 : vector<1x2x32xf32> to vector<2x32xf32>
    %203 = arith.addf %199, %202 : vector<2x32xf32>
    %cst_72 = arith.constant dense<0.000000e+00> : vector<2x96xf32>
    %204 = tpu.matmul %203, %7, %cst_72 {dimension_numbers = #tpu.dot_dimension_numbers<[1], [0], [0], [1], [0, 0, 1, 1], [], []>} : vector<2x32xf32>, vector<32x96xf32>, vector<2x96xf32> -> vector<2x96xf32>
    %205 = arith.index_cast %c2_i32 : i32 to index
    %c0_73 = arith.constant 0 : index
    %c0_74 = arith.constant 0 : index
    %206 = vector.load %arg2[%205, %c0_73, %c0_74] : memref<8x2x96xf32, #tpu.memory_space<vmem>>, vector<1x2x96xf32>
    %207 = vector.shape_cast %206 : vector<1x2x96xf32> to vector<2x96xf32>
    %208 = arith.addf %204, %207 : vector<2x96xf32>
    %cst_75 = arith.constant dense<0.000000e+00> : vector<2x96xf32>
    %209 = tpu.matmul %167, %5, %cst_75 {dimension_numbers = #tpu.dot_dimension_numbers<[1], [0], [0], [1], [0, 0, 1, 1], [], []>} : vector<2x32xf32>, vector<32x96xf32>, vector<2x96xf32> -> vector<2x96xf32>
    %210 = vector.broadcast %6 : vector<1x96xf32> to vector<2x96xf32>
    %211 = arith.addf %209, %210 : vector<2x96xf32>
    %212 = vector.extract_strided_slice %208 {offsets = [0, 0], sizes = [2, 32], strides = [1, 1]} : vector<2x96xf32> to vector<2x32xf32>
    %213 = vector.extract_strided_slice %211 {offsets = [0, 0], sizes = [2, 32], strides = [1, 1]} : vector<2x96xf32> to vector<2x32xf32>
    %214 = arith.addf %212, %213 : vector<2x32xf32>
    %215 = arith.negf %214 : vector<2x32xf32>
    %216 = math.exp %215 : vector<2x32xf32>
    %cst_76 = arith.constant 1.000000e+00 : f32
    %217 = vector.broadcast %cst_76 : f32 to vector<2x32xf32>
    %218 = arith.addf %217, %216 : vector<2x32xf32>
    %219 = arith.divf %217, %218 : vector<2x32xf32>
    %220 = vector.extract_strided_slice %208 {offsets = [0, 32], sizes = [2, 32], strides = [1, 1]} : vector<2x96xf32> to vector<2x32xf32>
    %221 = vector.extract_strided_slice %211 {offsets = [0, 32], sizes = [2, 32], strides = [1, 1]} : vector<2x96xf32> to vector<2x32xf32>
    %222 = arith.addf %220, %221 : vector<2x32xf32>
    %223 = arith.negf %222 : vector<2x32xf32>
    %224 = math.exp %223 : vector<2x32xf32>
    %cst_77 = arith.constant 1.000000e+00 : f32
    %225 = vector.broadcast %cst_77 : f32 to vector<2x32xf32>
    %226 = arith.addf %225, %224 : vector<2x32xf32>
    %227 = arith.divf %225, %226 : vector<2x32xf32>
    %228 = vector.extract_strided_slice %208 {offsets = [0, 64], sizes = [2, 32], strides = [1, 1]} : vector<2x96xf32> to vector<2x32xf32>
    %229 = vector.extract_strided_slice %211 {offsets = [0, 64], sizes = [2, 32], strides = [1, 1]} : vector<2x96xf32> to vector<2x32xf32>
    %230 = arith.mulf %219, %229 : vector<2x32xf32>
    %231 = arith.addf %228, %230 : vector<2x32xf32>
    %232 = math.tanh %231 : vector<2x32xf32>
    %cst_78 = arith.constant 1.000000e+00 : f32
    %233 = vector.broadcast %cst_78 : f32 to vector<2x32xf32>
    %234 = arith.subf %233, %227 : vector<2x32xf32>
    %235 = arith.mulf %234, %232 : vector<2x32xf32>
    %236 = arith.mulf %227, %167 : vector<2x32xf32>
    %237 = arith.addf %235, %236 : vector<2x32xf32>
    %c0_79 = arith.constant 0 : index
    %c0_80 = arith.constant 0 : index
    %238 = vector.load %arg10[%c0_79, %c0_80] : memref<2x32xf32, #tpu.memory_space<vmem>>, vector<2x32xf32>
    tpu.vector_store %arg10[%c0_79, %c0_80], %199 {strides = array<i32>} : memref<2x32xf32, #tpu.memory_space<vmem>>, vector<2x32xf32>,
    %c0_81 = arith.constant 0 : index
    %c0_82 = arith.constant 0 : index
    %239 = vector.load %arg11[%c0_81, %c0_82] : memref<2x32xf32, #tpu.memory_space<vmem>>, vector<2x32xf32>
    tpu.vector_store %arg11[%c0_81, %c0_82], %237 {strides = array<i32>} : memref<2x32xf32, #tpu.memory_space<vmem>>, vector<2x32xf32>,
    %240 = arith.addf %237, %203 : vector<2x32xf32>
    %241 = arith.index_cast %c2_i32 : i32 to index
    %c0_83 = arith.constant 0 : index
    %c0_84 = arith.constant 0 : index
    %242 = vector.load %arg9[%241, %c0_83, %c0_84] : memref<8x2x32xf32, #tpu.memory_space<vmem>>, vector<1x2x32xf32>
    %243 = vector.shape_cast %242 : vector<1x2x32xf32> to vector<2x32xf32>
    %244 = vector.shape_cast %240 : vector<2x32xf32> to vector<1x2x32xf32>
    tpu.vector_store %arg9[%241, %c0_83, %c0_84], %244 {strides = array<i32>} : memref<8x2x32xf32, #tpu.memory_space<vmem>>, vector<1x2x32xf32>,
    %c3_i32 = arith.constant 3 : i32
    %c0_85 = arith.constant 0 : index
    %c0_86 = arith.constant 0 : index
    %245 = vector.load %arg10[%c0_85, %c0_86] : memref<2x32xf32, #tpu.memory_space<vmem>>, vector<2x32xf32>
    %c0_87 = arith.constant 0 : index
    %c0_88 = arith.constant 0 : index
    %246 = vector.load %arg11[%c0_87, %c0_88] : memref<2x32xf32, #tpu.memory_space<vmem>>, vector<2x32xf32>
    %cst_89 = arith.constant dense<0.000000e+00> : vector<2x96xf32>
    %247 = tpu.matmul %245, %3, %cst_89 {dimension_numbers = #tpu.dot_dimension_numbers<[1], [0], [0], [1], [0, 0, 1, 1], [], []>} : vector<2x32xf32>, vector<32x96xf32>, vector<2x96xf32> -> vector<2x96xf32>
    %248 = vector.broadcast %4 : vector<1x96xf32> to vector<2x96xf32>
    %249 = arith.addf %247, %248 : vector<2x96xf32>
    %250 = arith.index_cast %c3_i32 : i32 to index
    %c0_90 = arith.constant 0 : index
    %c0_91 = arith.constant 0 : index
    %251 = vector.load %arg1[%250, %c0_90, %c0_91] : memref<8x2x96xf32, #tpu.memory_space<vmem>>, vector<1x2x96xf32>
    %252 = vector.shape_cast %251 : vector<1x2x96xf32> to vector<2x96xf32>
    %253 = vector.extract_strided_slice %252 {offsets = [0, 0], sizes = [2, 32], strides = [1, 1]} : vector<2x96xf32> to vector<2x32xf32>
    %254 = vector.extract_strided_slice %249 {offsets = [0, 0], sizes = [2, 32], strides = [1, 1]} : vector<2x96xf32> to vector<2x32xf32>
    %255 = arith.addf %253, %254 : vector<2x32xf32>
    %256 = arith.negf %255 : vector<2x32xf32>
    %257 = math.exp %256 : vector<2x32xf32>
    %cst_92 = arith.constant 1.000000e+00 : f32
    %258 = vector.broadcast %cst_92 : f32 to vector<2x32xf32>
    %259 = arith.addf %258, %257 : vector<2x32xf32>
    %260 = arith.divf %258, %259 : vector<2x32xf32>
    %261 = vector.extract_strided_slice %252 {offsets = [0, 32], sizes = [2, 32], strides = [1, 1]} : vector<2x96xf32> to vector<2x32xf32>
    %262 = vector.extract_strided_slice %249 {offsets = [0, 32], sizes = [2, 32], strides = [1, 1]} : vector<2x96xf32> to vector<2x32xf32>
    %263 = arith.addf %261, %262 : vector<2x32xf32>
    %264 = arith.negf %263 : vector<2x32xf32>
    %265 = math.exp %264 : vector<2x32xf32>
    %cst_93 = arith.constant 1.000000e+00 : f32
    %266 = vector.broadcast %cst_93 : f32 to vector<2x32xf32>
    %267 = arith.addf %266, %265 : vector<2x32xf32>
    %268 = arith.divf %266, %267 : vector<2x32xf32>
    %269 = vector.extract_strided_slice %252 {offsets = [0, 64], sizes = [2, 32], strides = [1, 1]} : vector<2x96xf32> to vector<2x32xf32>
    %270 = vector.extract_strided_slice %249 {offsets = [0, 64], sizes = [2, 32], strides = [1, 1]} : vector<2x96xf32> to vector<2x32xf32>
    %271 = arith.mulf %260, %270 : vector<2x32xf32>
    %272 = arith.addf %269, %271 : vector<2x32xf32>
    %273 = math.tanh %272 : vector<2x32xf32>
    %cst_94 = arith.constant 1.000000e+00 : f32
    %274 = vector.broadcast %cst_94 : f32 to vector<2x32xf32>
    %275 = arith.subf %274, %268 : vector<2x32xf32>
    %276 = arith.mulf %275, %273 : vector<2x32xf32>
    %277 = arith.mulf %268, %245 : vector<2x32xf32>
    %278 = arith.addf %276, %277 : vector<2x32xf32>
    %279 = arith.index_cast %c3_i32 : i32 to index
    %c0_95 = arith.constant 0 : index
    %c0_96 = arith.constant 0 : index
    %280 = vector.load %arg3[%279, %c0_95, %c0_96] : memref<8x2x32xf32, #tpu.memory_space<vmem>>, vector<1x2x32xf32>
    %281 = vector.shape_cast %280 : vector<1x2x32xf32> to vector<2x32xf32>
    %282 = arith.addf %278, %281 : vector<2x32xf32>
    %cst_97 = arith.constant dense<0.000000e+00> : vector<2x96xf32>
    %283 = tpu.matmul %282, %7, %cst_97 {dimension_numbers = #tpu.dot_dimension_numbers<[1], [0], [0], [1], [0, 0, 1, 1], [], []>} : vector<2x32xf32>, vector<32x96xf32>, vector<2x96xf32> -> vector<2x96xf32>
    %284 = arith.index_cast %c3_i32 : i32 to index
    %c0_98 = arith.constant 0 : index
    %c0_99 = arith.constant 0 : index
    %285 = vector.load %arg2[%284, %c0_98, %c0_99] : memref<8x2x96xf32, #tpu.memory_space<vmem>>, vector<1x2x96xf32>
    %286 = vector.shape_cast %285 : vector<1x2x96xf32> to vector<2x96xf32>
    %287 = arith.addf %283, %286 : vector<2x96xf32>
    %cst_100 = arith.constant dense<0.000000e+00> : vector<2x96xf32>
    %288 = tpu.matmul %246, %5, %cst_100 {dimension_numbers = #tpu.dot_dimension_numbers<[1], [0], [0], [1], [0, 0, 1, 1], [], []>} : vector<2x32xf32>, vector<32x96xf32>, vector<2x96xf32> -> vector<2x96xf32>
    %289 = vector.broadcast %6 : vector<1x96xf32> to vector<2x96xf32>
    %290 = arith.addf %288, %289 : vector<2x96xf32>
    %291 = vector.extract_strided_slice %287 {offsets = [0, 0], sizes = [2, 32], strides = [1, 1]} : vector<2x96xf32> to vector<2x32xf32>
    %292 = vector.extract_strided_slice %290 {offsets = [0, 0], sizes = [2, 32], strides = [1, 1]} : vector<2x96xf32> to vector<2x32xf32>
    %293 = arith.addf %291, %292 : vector<2x32xf32>
    %294 = arith.negf %293 : vector<2x32xf32>
    %295 = math.exp %294 : vector<2x32xf32>
    %cst_101 = arith.constant 1.000000e+00 : f32
    %296 = vector.broadcast %cst_101 : f32 to vector<2x32xf32>
    %297 = arith.addf %296, %295 : vector<2x32xf32>
    %298 = arith.divf %296, %297 : vector<2x32xf32>
    %299 = vector.extract_strided_slice %287 {offsets = [0, 32], sizes = [2, 32], strides = [1, 1]} : vector<2x96xf32> to vector<2x32xf32>
    %300 = vector.extract_strided_slice %290 {offsets = [0, 32], sizes = [2, 32], strides = [1, 1]} : vector<2x96xf32> to vector<2x32xf32>
    %301 = arith.addf %299, %300 : vector<2x32xf32>
    %302 = arith.negf %301 : vector<2x32xf32>
    %303 = math.exp %302 : vector<2x32xf32>
    %cst_102 = arith.constant 1.000000e+00 : f32
    %304 = vector.broadcast %cst_102 : f32 to vector<2x32xf32>
    %305 = arith.addf %304, %303 : vector<2x32xf32>
    %306 = arith.divf %304, %305 : vector<2x32xf32>
    %307 = vector.extract_strided_slice %287 {offsets = [0, 64], sizes = [2, 32], strides = [1, 1]} : vector<2x96xf32> to vector<2x32xf32>
    %308 = vector.extract_strided_slice %290 {offsets = [0, 64], sizes = [2, 32], strides = [1, 1]} : vector<2x96xf32> to vector<2x32xf32>
    %309 = arith.mulf %298, %308 : vector<2x32xf32>
    %310 = arith.addf %307, %309 : vector<2x32xf32>
    %311 = math.tanh %310 : vector<2x32xf32>
    %cst_103 = arith.constant 1.000000e+00 : f32
    %312 = vector.broadcast %cst_103 : f32 to vector<2x32xf32>
    %313 = arith.subf %312, %306 : vector<2x32xf32>
    %314 = arith.mulf %313, %311 : vector<2x32xf32>
    %315 = arith.mulf %306, %246 : vector<2x32xf32>
    %316 = arith.addf %314, %315 : vector<2x32xf32>
    %c0_104 = arith.constant 0 : index
    %c0_105 = arith.constant 0 : index
    %317 = vector.load %arg10[%c0_104, %c0_105] : memref<2x32xf32, #tpu.memory_space<vmem>>, vector<2x32xf32>
    tpu.vector_store %arg10[%c0_104, %c0_105], %278 {strides = array<i32>} : memref<2x32xf32, #tpu.memory_space<vmem>>, vector<2x32xf32>,
    %c0_106 = arith.constant 0 : index
    %c0_107 = arith.constant 0 : index
    %318 = vector.load %arg11[%c0_106, %c0_107] : memref<2x32xf32, #tpu.memory_space<vmem>>, vector<2x32xf32>
    tpu.vector_store %arg11[%c0_106, %c0_107], %316 {strides = array<i32>} : memref<2x32xf32, #tpu.memory_space<vmem>>, vector<2x32xf32>,
    %319 = arith.addf %316, %282 : vector<2x32xf32>
    %320 = arith.index_cast %c3_i32 : i32 to index
    %c0_108 = arith.constant 0 : index
    %c0_109 = arith.constant 0 : index
    %321 = vector.load %arg9[%320, %c0_108, %c0_109] : memref<8x2x32xf32, #tpu.memory_space<vmem>>, vector<1x2x32xf32>
    %322 = vector.shape_cast %321 : vector<1x2x32xf32> to vector<2x32xf32>
    %323 = vector.shape_cast %319 : vector<2x32xf32> to vector<1x2x32xf32>
    tpu.vector_store %arg9[%320, %c0_108, %c0_109], %323 {strides = array<i32>} : memref<8x2x32xf32, #tpu.memory_space<vmem>>, vector<1x2x32xf32>,
    %c4_i32 = arith.constant 4 : i32
    %c0_110 = arith.constant 0 : index
    %c0_111 = arith.constant 0 : index
    %324 = vector.load %arg10[%c0_110, %c0_111] : memref<2x32xf32, #tpu.memory_space<vmem>>, vector<2x32xf32>
    %c0_112 = arith.constant 0 : index
    %c0_113 = arith.constant 0 : index
    %325 = vector.load %arg11[%c0_112, %c0_113] : memref<2x32xf32, #tpu.memory_space<vmem>>, vector<2x32xf32>
    %cst_114 = arith.constant dense<0.000000e+00> : vector<2x96xf32>
    %326 = tpu.matmul %324, %3, %cst_114 {dimension_numbers = #tpu.dot_dimension_numbers<[1], [0], [0], [1], [0, 0, 1, 1], [], []>} : vector<2x32xf32>, vector<32x96xf32>, vector<2x96xf32> -> vector<2x96xf32>
    %327 = vector.broadcast %4 : vector<1x96xf32> to vector<2x96xf32>
    %328 = arith.addf %326, %327 : vector<2x96xf32>
    %329 = arith.index_cast %c4_i32 : i32 to index
    %c0_115 = arith.constant 0 : index
    %c0_116 = arith.constant 0 : index
    %330 = vector.load %arg1[%329, %c0_115, %c0_116] : memref<8x2x96xf32, #tpu.memory_space<vmem>>, vector<1x2x96xf32>
    %331 = vector.shape_cast %330 : vector<1x2x96xf32> to vector<2x96xf32>
    %332 = vector.extract_strided_slice %331 {offsets = [0, 0], sizes = [2, 32], strides = [1, 1]} : vector<2x96xf32> to vector<2x32xf32>
    %333 = vector.extract_strided_slice %328 {offsets = [0, 0], sizes = [2, 32], strides = [1, 1]} : vector<2x96xf32> to vector<2x32xf32>
    %334 = arith.addf %332, %333 : vector<2x32xf32>
    %335 = arith.negf %334 : vector<2x32xf32>
    %336 = math.exp %335 : vector<2x32xf32>
    %cst_117 = arith.constant 1.000000e+00 : f32
    %337 = vector.broadcast %cst_117 : f32 to vector<2x32xf32>
    %338 = arith.addf %337, %336 : vector<2x32xf32>
    %339 = arith.divf %337, %338 : vector<2x32xf32>
    %340 = vector.extract_strided_slice %331 {offsets = [0, 32], sizes = [2, 32], strides = [1, 1]} : vector<2x96xf32> to vector<2x32xf32>
    %341 = vector.extract_strided_slice %328 {offsets = [0, 32], sizes = [2, 32], strides = [1, 1]} : vector<2x96xf32> to vector<2x32xf32>
    %342 = arith.addf %340, %341 : vector<2x32xf32>
    %343 = arith.negf %342 : vector<2x32xf32>
    %344 = math.exp %343 : vector<2x32xf32>
    %cst_118 = arith.constant 1.000000e+00 : f32
    %345 = vector.broadcast %cst_118 : f32 to vector<2x32xf32>
    %346 = arith.addf %345, %344 : vector<2x32xf32>
    %347 = arith.divf %345, %346 : vector<2x32xf32>
    %348 = vector.extract_strided_slice %331 {offsets = [0, 64], sizes = [2, 32], strides = [1, 1]} : vector<2x96xf32> to vector<2x32xf32>
    %349 = vector.extract_strided_slice %328 {offsets = [0, 64], sizes = [2, 32], strides = [1, 1]} : vector<2x96xf32> to vector<2x32xf32>
    %350 = arith.mulf %339, %349 : vector<2x32xf32>
    %351 = arith.addf %348, %350 : vector<2x32xf32>
    %352 = math.tanh %351 : vector<2x32xf32>
    %cst_119 = arith.constant 1.000000e+00 : f32
    %353 = vector.broadcast %cst_119 : f32 to vector<2x32xf32>
    %354 = arith.subf %353, %347 : vector<2x32xf32>
    %355 = arith.mulf %354, %352 : vector<2x32xf32>
    %356 = arith.mulf %347, %324 : vector<2x32xf32>
    %357 = arith.addf %355, %356 : vector<2x32xf32>
    %358 = arith.index_cast %c4_i32 : i32 to index
    %c0_120 = arith.constant 0 : index
    %c0_121 = arith.constant 0 : index
    %359 = vector.load %arg3[%358, %c0_120, %c0_121] : memref<8x2x32xf32, #tpu.memory_space<vmem>>, vector<1x2x32xf32>
    %360 = vector.shape_cast %359 : vector<1x2x32xf32> to vector<2x32xf32>
    %361 = arith.addf %357, %360 : vector<2x32xf32>
    %cst_122 = arith.constant dense<0.000000e+00> : vector<2x96xf32>
    %362 = tpu.matmul %361, %7, %cst_122 {dimension_numbers = #tpu.dot_dimension_numbers<[1], [0], [0], [1], [0, 0, 1, 1], [], []>} : vector<2x32xf32>, vector<32x96xf32>, vector<2x96xf32> -> vector<2x96xf32>
    %363 = arith.index_cast %c4_i32 : i32 to index
    %c0_123 = arith.constant 0 : index
    %c0_124 = arith.constant 0 : index
    %364 = vector.load %arg2[%363, %c0_123, %c0_124] : memref<8x2x96xf32, #tpu.memory_space<vmem>>, vector<1x2x96xf32>
    %365 = vector.shape_cast %364 : vector<1x2x96xf32> to vector<2x96xf32>
    %366 = arith.addf %362, %365 : vector<2x96xf32>
    %cst_125 = arith.constant dense<0.000000e+00> : vector<2x96xf32>
    %367 = tpu.matmul %325, %5, %cst_125 {dimension_numbers = #tpu.dot_dimension_numbers<[1], [0], [0], [1], [0, 0, 1, 1], [], []>} : vector<2x32xf32>, vector<32x96xf32>, vector<2x96xf32> -> vector<2x96xf32>
    %368 = vector.broadcast %6 : vector<1x96xf32> to vector<2x96xf32>
    %369 = arith.addf %367, %368 : vector<2x96xf32>
    %370 = vector.extract_strided_slice %366 {offsets = [0, 0], sizes = [2, 32], strides = [1, 1]} : vector<2x96xf32> to vector<2x32xf32>
    %371 = vector.extract_strided_slice %369 {offsets = [0, 0], sizes = [2, 32], strides = [1, 1]} : vector<2x96xf32> to vector<2x32xf32>
    %372 = arith.addf %370, %371 : vector<2x32xf32>
    %373 = arith.negf %372 : vector<2x32xf32>
    %374 = math.exp %373 : vector<2x32xf32>
    %cst_126 = arith.constant 1.000000e+00 : f32
    %375 = vector.broadcast %cst_126 : f32 to vector<2x32xf32>
    %376 = arith.addf %375, %374 : vector<2x32xf32>
    %377 = arith.divf %375, %376 : vector<2x32xf32>
    %378 = vector.extract_strided_slice %366 {offsets = [0, 32], sizes = [2, 32], strides = [1, 1]} : vector<2x96xf32> to vector<2x32xf32>
    %379 = vector.extract_strided_slice %369 {offsets = [0, 32], sizes = [2, 32], strides = [1, 1]} : vector<2x96xf32> to vector<2x32xf32>
    %380 = arith.addf %378, %379 : vector<2x32xf32>
    %381 = arith.negf %380 : vector<2x32xf32>
    %382 = math.exp %381 : vector<2x32xf32>
    %cst_127 = arith.constant 1.000000e+00 : f32
    %383 = vector.broadcast %cst_127 : f32 to vector<2x32xf32>
    %384 = arith.addf %383, %382 : vector<2x32xf32>
    %385 = arith.divf %383, %384 : vector<2x32xf32>
    %386 = vector.extract_strided_slice %366 {offsets = [0, 64], sizes = [2, 32], strides = [1, 1]} : vector<2x96xf32> to vector<2x32xf32>
    %387 = vector.extract_strided_slice %369 {offsets = [0, 64], sizes = [2, 32], strides = [1, 1]} : vector<2x96xf32> to vector<2x32xf32>
    %388 = arith.mulf %377, %387 : vector<2x32xf32>
    %389 = arith.addf %386, %388 : vector<2x32xf32>
    %390 = math.tanh %389 : vector<2x32xf32>
    %cst_128 = arith.constant 1.000000e+00 : f32
    %391 = vector.broadcast %cst_128 : f32 to vector<2x32xf32>
    %392 = arith.subf %391, %385 : vector<2x32xf32>
    %393 = arith.mulf %392, %390 : vector<2x32xf32>
    %394 = arith.mulf %385, %325 : vector<2x32xf32>
    %395 = arith.addf %393, %394 : vector<2x32xf32>
    %c0_129 = arith.constant 0 : index
    %c0_130 = arith.constant 0 : index
    %396 = vector.load %arg10[%c0_129, %c0_130] : memref<2x32xf32, #tpu.memory_space<vmem>>, vector<2x32xf32>
    tpu.vector_store %arg10[%c0_129, %c0_130], %357 {strides = array<i32>} : memref<2x32xf32, #tpu.memory_space<vmem>>, vector<2x32xf32>,
    %c0_131 = arith.constant 0 : index
    %c0_132 = arith.constant 0 : index
    %397 = vector.load %arg11[%c0_131, %c0_132] : memref<2x32xf32, #tpu.memory_space<vmem>>, vector<2x32xf32>
    tpu.vector_store %arg11[%c0_131, %c0_132], %395 {strides = array<i32>} : memref<2x32xf32, #tpu.memory_space<vmem>>, vector<2x32xf32>,
    %398 = arith.addf %395, %361 : vector<2x32xf32>
    %399 = arith.index_cast %c4_i32 : i32 to index
    %c0_133 = arith.constant 0 : index
    %c0_134 = arith.constant 0 : index
    %400 = vector.load %arg9[%399, %c0_133, %c0_134] : memref<8x2x32xf32, #tpu.memory_space<vmem>>, vector<1x2x32xf32>
    %401 = vector.shape_cast %400 : vector<1x2x32xf32> to vector<2x32xf32>
    %402 = vector.shape_cast %398 : vector<2x32xf32> to vector<1x2x32xf32>
    tpu.vector_store %arg9[%399, %c0_133, %c0_134], %402 {strides = array<i32>} : memref<8x2x32xf32, #tpu.memory_space<vmem>>, vector<1x2x32xf32>,
    %c5_i32 = arith.constant 5 : i32
    %c0_135 = arith.constant 0 : index
    %c0_136 = arith.constant 0 : index
    %403 = vector.load %arg10[%c0_135, %c0_136] : memref<2x32xf32, #tpu.memory_space<vmem>>, vector<2x32xf32>
    %c0_137 = arith.constant 0 : index
    %c0_138 = arith.constant 0 : index
    %404 = vector.load %arg11[%c0_137, %c0_138] : memref<2x32xf32, #tpu.memory_space<vmem>>, vector<2x32xf32>
    %cst_139 = arith.constant dense<0.000000e+00> : vector<2x96xf32>
    %405 = tpu.matmul %403, %3, %cst_139 {dimension_numbers = #tpu.dot_dimension_numbers<[1], [0], [0], [1], [0, 0, 1, 1], [], []>} : vector<2x32xf32>, vector<32x96xf32>, vector<2x96xf32> -> vector<2x96xf32>
    %406 = vector.broadcast %4 : vector<1x96xf32> to vector<2x96xf32>
    %407 = arith.addf %405, %406 : vector<2x96xf32>
    %408 = arith.index_cast %c5_i32 : i32 to index
    %c0_140 = arith.constant 0 : index
    %c0_141 = arith.constant 0 : index
    %409 = vector.load %arg1[%408, %c0_140, %c0_141] : memref<8x2x96xf32, #tpu.memory_space<vmem>>, vector<1x2x96xf32>
    %410 = vector.shape_cast %409 : vector<1x2x96xf32> to vector<2x96xf32>
    %411 = vector.extract_strided_slice %410 {offsets = [0, 0], sizes = [2, 32], strides = [1, 1]} : vector<2x96xf32> to vector<2x32xf32>
    %412 = vector.extract_strided_slice %407 {offsets = [0, 0], sizes = [2, 32], strides = [1, 1]} : vector<2x96xf32> to vector<2x32xf32>
    %413 = arith.addf %411, %412 : vector<2x32xf32>
    %414 = arith.negf %413 : vector<2x32xf32>
    %415 = math.exp %414 : vector<2x32xf32>
    %cst_142 = arith.constant 1.000000e+00 : f32
    %416 = vector.broadcast %cst_142 : f32 to vector<2x32xf32>
    %417 = arith.addf %416, %415 : vector<2x32xf32>
    %418 = arith.divf %416, %417 : vector<2x32xf32>
    %419 = vector.extract_strided_slice %410 {offsets = [0, 32], sizes = [2, 32], strides = [1, 1]} : vector<2x96xf32> to vector<2x32xf32>
    %420 = vector.extract_strided_slice %407 {offsets = [0, 32], sizes = [2, 32], strides = [1, 1]} : vector<2x96xf32> to vector<2x32xf32>
    %421 = arith.addf %419, %420 : vector<2x32xf32>
    %422 = arith.negf %421 : vector<2x32xf32>
    %423 = math.exp %422 : vector<2x32xf32>
    %cst_143 = arith.constant 1.000000e+00 : f32
    %424 = vector.broadcast %cst_143 : f32 to vector<2x32xf32>
    %425 = arith.addf %424, %423 : vector<2x32xf32>
    %426 = arith.divf %424, %425 : vector<2x32xf32>
    %427 = vector.extract_strided_slice %410 {offsets = [0, 64], sizes = [2, 32], strides = [1, 1]} : vector<2x96xf32> to vector<2x32xf32>
    %428 = vector.extract_strided_slice %407 {offsets = [0, 64], sizes = [2, 32], strides = [1, 1]} : vector<2x96xf32> to vector<2x32xf32>
    %429 = arith.mulf %418, %428 : vector<2x32xf32>
    %430 = arith.addf %427, %429 : vector<2x32xf32>
    %431 = math.tanh %430 : vector<2x32xf32>
    %cst_144 = arith.constant 1.000000e+00 : f32
    %432 = vector.broadcast %cst_144 : f32 to vector<2x32xf32>
    %433 = arith.subf %432, %426 : vector<2x32xf32>
    %434 = arith.mulf %433, %431 : vector<2x32xf32>
    %435 = arith.mulf %426, %403 : vector<2x32xf32>
    %436 = arith.addf %434, %435 : vector<2x32xf32>
    %437 = arith.index_cast %c5_i32 : i32 to index
    %c0_145 = arith.constant 0 : index
    %c0_146 = arith.constant 0 : index
    %438 = vector.load %arg3[%437, %c0_145, %c0_146] : memref<8x2x32xf32, #tpu.memory_space<vmem>>, vector<1x2x32xf32>
    %439 = vector.shape_cast %438 : vector<1x2x32xf32> to vector<2x32xf32>
    %440 = arith.addf %436, %439 : vector<2x32xf32>
    %cst_147 = arith.constant dense<0.000000e+00> : vector<2x96xf32>
    %441 = tpu.matmul %440, %7, %cst_147 {dimension_numbers = #tpu.dot_dimension_numbers<[1], [0], [0], [1], [0, 0, 1, 1], [], []>} : vector<2x32xf32>, vector<32x96xf32>, vector<2x96xf32> -> vector<2x96xf32>
    %442 = arith.index_cast %c5_i32 : i32 to index
    %c0_148 = arith.constant 0 : index
    %c0_149 = arith.constant 0 : index
    %443 = vector.load %arg2[%442, %c0_148, %c0_149] : memref<8x2x96xf32, #tpu.memory_space<vmem>>, vector<1x2x96xf32>
    %444 = vector.shape_cast %443 : vector<1x2x96xf32> to vector<2x96xf32>
    %445 = arith.addf %441, %444 : vector<2x96xf32>
    %cst_150 = arith.constant dense<0.000000e+00> : vector<2x96xf32>
    %446 = tpu.matmul %404, %5, %cst_150 {dimension_numbers = #tpu.dot_dimension_numbers<[1], [0], [0], [1], [0, 0, 1, 1], [], []>} : vector<2x32xf32>, vector<32x96xf32>, vector<2x96xf32> -> vector<2x96xf32>
    %447 = vector.broadcast %6 : vector<1x96xf32> to vector<2x96xf32>
    %448 = arith.addf %446, %447 : vector<2x96xf32>
    %449 = vector.extract_strided_slice %445 {offsets = [0, 0], sizes = [2, 32], strides = [1, 1]} : vector<2x96xf32> to vector<2x32xf32>
    %450 = vector.extract_strided_slice %448 {offsets = [0, 0], sizes = [2, 32], strides = [1, 1]} : vector<2x96xf32> to vector<2x32xf32>
    %451 = arith.addf %449, %450 : vector<2x32xf32>
    %452 = arith.negf %451 : vector<2x32xf32>
    %453 = math.exp %452 : vector<2x32xf32>
    %cst_151 = arith.constant 1.000000e+00 : f32
    %454 = vector.broadcast %cst_151 : f32 to vector<2x32xf32>
    %455 = arith.addf %454, %453 : vector<2x32xf32>
    %456 = arith.divf %454, %455 : vector<2x32xf32>
    %457 = vector.extract_strided_slice %445 {offsets = [0, 32], sizes = [2, 32], strides = [1, 1]} : vector<2x96xf32> to vector<2x32xf32>
    %458 = vector.extract_strided_slice %448 {offsets = [0, 32], sizes = [2, 32], strides = [1, 1]} : vector<2x96xf32> to vector<2x32xf32>
    %459 = arith.addf %457, %458 : vector<2x32xf32>
    %460 = arith.negf %459 : vector<2x32xf32>
    %461 = math.exp %460 : vector<2x32xf32>
    %cst_152 = arith.constant 1.000000e+00 : f32
    %462 = vector.broadcast %cst_152 : f32 to vector<2x32xf32>
    %463 = arith.addf %462, %461 : vector<2x32xf32>
    %464 = arith.divf %462, %463 : vector<2x32xf32>
    %465 = vector.extract_strided_slice %445 {offsets = [0, 64], sizes = [2, 32], strides = [1, 1]} : vector<2x96xf32> to vector<2x32xf32>
    %466 = vector.extract_strided_slice %448 {offsets = [0, 64], sizes = [2, 32], strides = [1, 1]} : vector<2x96xf32> to vector<2x32xf32>
    %467 = arith.mulf %456, %466 : vector<2x32xf32>
    %468 = arith.addf %465, %467 : vector<2x32xf32>
    %469 = math.tanh %468 : vector<2x32xf32>
    %cst_153 = arith.constant 1.000000e+00 : f32
    %470 = vector.broadcast %cst_153 : f32 to vector<2x32xf32>
    %471 = arith.subf %470, %464 : vector<2x32xf32>
    %472 = arith.mulf %471, %469 : vector<2x32xf32>
    %473 = arith.mulf %464, %404 : vector<2x32xf32>
    %474 = arith.addf %472, %473 : vector<2x32xf32>
    %c0_154 = arith.constant 0 : index
    %c0_155 = arith.constant 0 : index
    %475 = vector.load %arg10[%c0_154, %c0_155] : memref<2x32xf32, #tpu.memory_space<vmem>>, vector<2x32xf32>
    tpu.vector_store %arg10[%c0_154, %c0_155], %436 {strides = array<i32>} : memref<2x32xf32, #tpu.memory_space<vmem>>, vector<2x32xf32>,
    %c0_156 = arith.constant 0 : index
    %c0_157 = arith.constant 0 : index
    %476 = vector.load %arg11[%c0_156, %c0_157] : memref<2x32xf32, #tpu.memory_space<vmem>>, vector<2x32xf32>
    tpu.vector_store %arg11[%c0_156, %c0_157], %474 {strides = array<i32>} : memref<2x32xf32, #tpu.memory_space<vmem>>, vector<2x32xf32>,
    %477 = arith.addf %474, %440 : vector<2x32xf32>
    %478 = arith.index_cast %c5_i32 : i32 to index
    %c0_158 = arith.constant 0 : index
    %c0_159 = arith.constant 0 : index
    %479 = vector.load %arg9[%478, %c0_158, %c0_159] : memref<8x2x32xf32, #tpu.memory_space<vmem>>, vector<1x2x32xf32>
    %480 = vector.shape_cast %479 : vector<1x2x32xf32> to vector<2x32xf32>
    %481 = vector.shape_cast %477 : vector<2x32xf32> to vector<1x2x32xf32>
    tpu.vector_store %arg9[%478, %c0_158, %c0_159], %481 {strides = array<i32>} : memref<8x2x32xf32, #tpu.memory_space<vmem>>, vector<1x2x32xf32>,
    %c6_i32 = arith.constant 6 : i32
    %c0_160 = arith.constant 0 : index
    %c0_161 = arith.constant 0 : index
    %482 = vector.load %arg10[%c0_160, %c0_161] : memref<2x32xf32, #tpu.memory_space<vmem>>, vector<2x32xf32>
    %c0_162 = arith.constant 0 : index
    %c0_163 = arith.constant 0 : index
    %483 = vector.load %arg11[%c0_162, %c0_163] : memref<2x32xf32, #tpu.memory_space<vmem>>, vector<2x32xf32>
    %cst_164 = arith.constant dense<0.000000e+00> : vector<2x96xf32>
    %484 = tpu.matmul %482, %3, %cst_164 {dimension_numbers = #tpu.dot_dimension_numbers<[1], [0], [0], [1], [0, 0, 1, 1], [], []>} : vector<2x32xf32>, vector<32x96xf32>, vector<2x96xf32> -> vector<2x96xf32>
    %485 = vector.broadcast %4 : vector<1x96xf32> to vector<2x96xf32>
    %486 = arith.addf %484, %485 : vector<2x96xf32>
    %487 = arith.index_cast %c6_i32 : i32 to index
    %c0_165 = arith.constant 0 : index
    %c0_166 = arith.constant 0 : index
    %488 = vector.load %arg1[%487, %c0_165, %c0_166] : memref<8x2x96xf32, #tpu.memory_space<vmem>>, vector<1x2x96xf32>
    %489 = vector.shape_cast %488 : vector<1x2x96xf32> to vector<2x96xf32>
    %490 = vector.extract_strided_slice %489 {offsets = [0, 0], sizes = [2, 32], strides = [1, 1]} : vector<2x96xf32> to vector<2x32xf32>
    %491 = vector.extract_strided_slice %486 {offsets = [0, 0], sizes = [2, 32], strides = [1, 1]} : vector<2x96xf32> to vector<2x32xf32>
    %492 = arith.addf %490, %491 : vector<2x32xf32>
    %493 = arith.negf %492 : vector<2x32xf32>
    %494 = math.exp %493 : vector<2x32xf32>
    %cst_167 = arith.constant 1.000000e+00 : f32
    %495 = vector.broadcast %cst_167 : f32 to vector<2x32xf32>
    %496 = arith.addf %495, %494 : vector<2x32xf32>
    %497 = arith.divf %495, %496 : vector<2x32xf32>
    %498 = vector.extract_strided_slice %489 {offsets = [0, 32], sizes = [2, 32], strides = [1, 1]} : vector<2x96xf32> to vector<2x32xf32>
    %499 = vector.extract_strided_slice %486 {offsets = [0, 32], sizes = [2, 32], strides = [1, 1]} : vector<2x96xf32> to vector<2x32xf32>
    %500 = arith.addf %498, %499 : vector<2x32xf32>
    %501 = arith.negf %500 : vector<2x32xf32>
    %502 = math.exp %501 : vector<2x32xf32>
    %cst_168 = arith.constant 1.000000e+00 : f32
    %503 = vector.broadcast %cst_168 : f32 to vector<2x32xf32>
    %504 = arith.addf %503, %502 : vector<2x32xf32>
    %505 = arith.divf %503, %504 : vector<2x32xf32>
    %506 = vector.extract_strided_slice %489 {offsets = [0, 64], sizes = [2, 32], strides = [1, 1]} : vector<2x96xf32> to vector<2x32xf32>
    %507 = vector.extract_strided_slice %486 {offsets = [0, 64], sizes = [2, 32], strides = [1, 1]} : vector<2x96xf32> to vector<2x32xf32>
    %508 = arith.mulf %497, %507 : vector<2x32xf32>
    %509 = arith.addf %506, %508 : vector<2x32xf32>
    %510 = math.tanh %509 : vector<2x32xf32>
    %cst_169 = arith.constant 1.000000e+00 : f32
    %511 = vector.broadcast %cst_169 : f32 to vector<2x32xf32>
    %512 = arith.subf %511, %505 : vector<2x32xf32>
    %513 = arith.mulf %512, %510 : vector<2x32xf32>
    %514 = arith.mulf %505, %482 : vector<2x32xf32>
    %515 = arith.addf %513, %514 : vector<2x32xf32>
    %516 = arith.index_cast %c6_i32 : i32 to index
    %c0_170 = arith.constant 0 : index
    %c0_171 = arith.constant 0 : index
    %517 = vector.load %arg3[%516, %c0_170, %c0_171] : memref<8x2x32xf32, #tpu.memory_space<vmem>>, vector<1x2x32xf32>
    %518 = vector.shape_cast %517 : vector<1x2x32xf32> to vector<2x32xf32>
    %519 = arith.addf %515, %518 : vector<2x32xf32>
    %cst_172 = arith.constant dense<0.000000e+00> : vector<2x96xf32>
    %520 = tpu.matmul %519, %7, %cst_172 {dimension_numbers = #tpu.dot_dimension_numbers<[1], [0], [0], [1], [0, 0, 1, 1], [], []>} : vector<2x32xf32>, vector<32x96xf32>, vector<2x96xf32> -> vector<2x96xf32>
    %521 = arith.index_cast %c6_i32 : i32 to index
    %c0_173 = arith.constant 0 : index
    %c0_174 = arith.constant 0 : index
    %522 = vector.load %arg2[%521, %c0_173, %c0_174] : memref<8x2x96xf32, #tpu.memory_space<vmem>>, vector<1x2x96xf32>
    %523 = vector.shape_cast %522 : vector<1x2x96xf32> to vector<2x96xf32>
    %524 = arith.addf %520, %523 : vector<2x96xf32>
    %cst_175 = arith.constant dense<0.000000e+00> : vector<2x96xf32>
    %525 = tpu.matmul %483, %5, %cst_175 {dimension_numbers = #tpu.dot_dimension_numbers<[1], [0], [0], [1], [0, 0, 1, 1], [], []>} : vector<2x32xf32>, vector<32x96xf32>, vector<2x96xf32> -> vector<2x96xf32>
    %526 = vector.broadcast %6 : vector<1x96xf32> to vector<2x96xf32>
    %527 = arith.addf %525, %526 : vector<2x96xf32>
    %528 = vector.extract_strided_slice %524 {offsets = [0, 0], sizes = [2, 32], strides = [1, 1]} : vector<2x96xf32> to vector<2x32xf32>
    %529 = vector.extract_strided_slice %527 {offsets = [0, 0], sizes = [2, 32], strides = [1, 1]} : vector<2x96xf32> to vector<2x32xf32>
    %530 = arith.addf %528, %529 : vector<2x32xf32>
    %531 = arith.negf %530 : vector<2x32xf32>
    %532 = math.exp %531 : vector<2x32xf32>
    %cst_176 = arith.constant 1.000000e+00 : f32
    %533 = vector.broadcast %cst_176 : f32 to vector<2x32xf32>
    %534 = arith.addf %533, %532 : vector<2x32xf32>
    %535 = arith.divf %533, %534 : vector<2x32xf32>
    %536 = vector.extract_strided_slice %524 {offsets = [0, 32], sizes = [2, 32], strides = [1, 1]} : vector<2x96xf32> to vector<2x32xf32>
    %537 = vector.extract_strided_slice %527 {offsets = [0, 32], sizes = [2, 32], strides = [1, 1]} : vector<2x96xf32> to vector<2x32xf32>
    %538 = arith.addf %536, %537 : vector<2x32xf32>
    %539 = arith.negf %538 : vector<2x32xf32>
    %540 = math.exp %539 : vector<2x32xf32>
    %cst_177 = arith.constant 1.000000e+00 : f32
    %541 = vector.broadcast %cst_177 : f32 to vector<2x32xf32>
    %542 = arith.addf %541, %540 : vector<2x32xf32>
    %543 = arith.divf %541, %542 : vector<2x32xf32>
    %544 = vector.extract_strided_slice %524 {offsets = [0, 64], sizes = [2, 32], strides = [1, 1]} : vector<2x96xf32> to vector<2x32xf32>
    %545 = vector.extract_strided_slice %527 {offsets = [0, 64], sizes = [2, 32], strides = [1, 1]} : vector<2x96xf32> to vector<2x32xf32>
    %546 = arith.mulf %535, %545 : vector<2x32xf32>
    %547 = arith.addf %544, %546 : vector<2x32xf32>
    %548 = math.tanh %547 : vector<2x32xf32>
    %cst_178 = arith.constant 1.000000e+00 : f32
    %549 = vector.broadcast %cst_178 : f32 to vector<2x32xf32>
    %550 = arith.subf %549, %543 : vector<2x32xf32>
    %551 = arith.mulf %550, %548 : vector<2x32xf32>
    %552 = arith.mulf %543, %483 : vector<2x32xf32>
    %553 = arith.addf %551, %552 : vector<2x32xf32>
    %c0_179 = arith.constant 0 : index
    %c0_180 = arith.constant 0 : index
    %554 = vector.load %arg10[%c0_179, %c0_180] : memref<2x32xf32, #tpu.memory_space<vmem>>, vector<2x32xf32>
    tpu.vector_store %arg10[%c0_179, %c0_180], %515 {strides = array<i32>} : memref<2x32xf32, #tpu.memory_space<vmem>>, vector<2x32xf32>,
    %c0_181 = arith.constant 0 : index
    %c0_182 = arith.constant 0 : index
    %555 = vector.load %arg11[%c0_181, %c0_182] : memref<2x32xf32, #tpu.memory_space<vmem>>, vector<2x32xf32>
    tpu.vector_store %arg11[%c0_181, %c0_182], %553 {strides = array<i32>} : memref<2x32xf32, #tpu.memory_space<vmem>>, vector<2x32xf32>,
    %556 = arith.addf %553, %519 : vector<2x32xf32>
    %557 = arith.index_cast %c6_i32 : i32 to index
    %c0_183 = arith.constant 0 : index
    %c0_184 = arith.constant 0 : index
    %558 = vector.load %arg9[%557, %c0_183, %c0_184] : memref<8x2x32xf32, #tpu.memory_space<vmem>>, vector<1x2x32xf32>
    %559 = vector.shape_cast %558 : vector<1x2x32xf32> to vector<2x32xf32>
    %560 = vector.shape_cast %556 : vector<2x32xf32> to vector<1x2x32xf32>
    tpu.vector_store %arg9[%557, %c0_183, %c0_184], %560 {strides = array<i32>} : memref<8x2x32xf32, #tpu.memory_space<vmem>>, vector<1x2x32xf32>,
    %c7_i32 = arith.constant 7 : i32
    %c0_185 = arith.constant 0 : index
    %c0_186 = arith.constant 0 : index
    %561 = vector.load %arg10[%c0_185, %c0_186] : memref<2x32xf32, #tpu.memory_space<vmem>>, vector<2x32xf32>
    %c0_187 = arith.constant 0 : index
    %c0_188 = arith.constant 0 : index
    %562 = vector.load %arg11[%c0_187, %c0_188] : memref<2x32xf32, #tpu.memory_space<vmem>>, vector<2x32xf32>
    %cst_189 = arith.constant dense<0.000000e+00> : vector<2x96xf32>
    %563 = tpu.matmul %561, %3, %cst_189 {dimension_numbers = #tpu.dot_dimension_numbers<[1], [0], [0], [1], [0, 0, 1, 1], [], []>} : vector<2x32xf32>, vector<32x96xf32>, vector<2x96xf32> -> vector<2x96xf32>
    %564 = vector.broadcast %4 : vector<1x96xf32> to vector<2x96xf32>
    %565 = arith.addf %563, %564 : vector<2x96xf32>
    %566 = arith.index_cast %c7_i32 : i32 to index
    %c0_190 = arith.constant 0 : index
    %c0_191 = arith.constant 0 : index
    %567 = vector.load %arg1[%566, %c0_190, %c0_191] : memref<8x2x96xf32, #tpu.memory_space<vmem>>, vector<1x2x96xf32>
    %568 = vector.shape_cast %567 : vector<1x2x96xf32> to vector<2x96xf32>
    %569 = vector.extract_strided_slice %568 {offsets = [0, 0], sizes = [2, 32], strides = [1, 1]} : vector<2x96xf32> to vector<2x32xf32>
    %570 = vector.extract_strided_slice %565 {offsets = [0, 0], sizes = [2, 32], strides = [1, 1]} : vector<2x96xf32> to vector<2x32xf32>
    %571 = arith.addf %569, %570 : vector<2x32xf32>
    %572 = arith.negf %571 : vector<2x32xf32>
    %573 = math.exp %572 : vector<2x32xf32>
    %cst_192 = arith.constant 1.000000e+00 : f32
    %574 = vector.broadcast %cst_192 : f32 to vector<2x32xf32>
    %575 = arith.addf %574, %573 : vector<2x32xf32>
    %576 = arith.divf %574, %575 : vector<2x32xf32>
    %577 = vector.extract_strided_slice %568 {offsets = [0, 32], sizes = [2, 32], strides = [1, 1]} : vector<2x96xf32> to vector<2x32xf32>
    %578 = vector.extract_strided_slice %565 {offsets = [0, 32], sizes = [2, 32], strides = [1, 1]} : vector<2x96xf32> to vector<2x32xf32>
    %579 = arith.addf %577, %578 : vector<2x32xf32>
    %580 = arith.negf %579 : vector<2x32xf32>
    %581 = math.exp %580 : vector<2x32xf32>
    %cst_193 = arith.constant 1.000000e+00 : f32
    %582 = vector.broadcast %cst_193 : f32 to vector<2x32xf32>
    %583 = arith.addf %582, %581 : vector<2x32xf32>
    %584 = arith.divf %582, %583 : vector<2x32xf32>
    %585 = vector.extract_strided_slice %568 {offsets = [0, 64], sizes = [2, 32], strides = [1, 1]} : vector<2x96xf32> to vector<2x32xf32>
    %586 = vector.extract_strided_slice %565 {offsets = [0, 64], sizes = [2, 32], strides = [1, 1]} : vector<2x96xf32> to vector<2x32xf32>
    %587 = arith.mulf %576, %586 : vector<2x32xf32>
    %588 = arith.addf %585, %587 : vector<2x32xf32>
    %589 = math.tanh %588 : vector<2x32xf32>
    %cst_194 = arith.constant 1.000000e+00 : f32
    %590 = vector.broadcast %cst_194 : f32 to vector<2x32xf32>
    %591 = arith.subf %590, %584 : vector<2x32xf32>
    %592 = arith.mulf %591, %589 : vector<2x32xf32>
    %593 = arith.mulf %584, %561 : vector<2x32xf32>
    %594 = arith.addf %592, %593 : vector<2x32xf32>
    %595 = arith.index_cast %c7_i32 : i32 to index
    %c0_195 = arith.constant 0 : index
    %c0_196 = arith.constant 0 : index
    %596 = vector.load %arg3[%595, %c0_195, %c0_196] : memref<8x2x32xf32, #tpu.memory_space<vmem>>, vector<1x2x32xf32>
    %597 = vector.shape_cast %596 : vector<1x2x32xf32> to vector<2x32xf32>
    %598 = arith.addf %594, %597 : vector<2x32xf32>
    %cst_197 = arith.constant dense<0.000000e+00> : vector<2x96xf32>
    %599 = tpu.matmul %598, %7, %cst_197 {dimension_numbers = #tpu.dot_dimension_numbers<[1], [0], [0], [1], [0, 0, 1, 1], [], []>} : vector<2x32xf32>, vector<32x96xf32>, vector<2x96xf32> -> vector<2x96xf32>
    %600 = arith.index_cast %c7_i32 : i32 to index
    %c0_198 = arith.constant 0 : index
    %c0_199 = arith.constant 0 : index
    %601 = vector.load %arg2[%600, %c0_198, %c0_199] : memref<8x2x96xf32, #tpu.memory_space<vmem>>, vector<1x2x96xf32>
    %602 = vector.shape_cast %601 : vector<1x2x96xf32> to vector<2x96xf32>
    %603 = arith.addf %599, %602 : vector<2x96xf32>
    %cst_200 = arith.constant dense<0.000000e+00> : vector<2x96xf32>
    %604 = tpu.matmul %562, %5, %cst_200 {dimension_numbers = #tpu.dot_dimension_numbers<[1], [0], [0], [1], [0, 0, 1, 1], [], []>} : vector<2x32xf32>, vector<32x96xf32>, vector<2x96xf32> -> vector<2x96xf32>
    %605 = vector.broadcast %6 : vector<1x96xf32> to vector<2x96xf32>
    %606 = arith.addf %604, %605 : vector<2x96xf32>
    %607 = vector.extract_strided_slice %603 {offsets = [0, 0], sizes = [2, 32], strides = [1, 1]} : vector<2x96xf32> to vector<2x32xf32>
    %608 = vector.extract_strided_slice %606 {offsets = [0, 0], sizes = [2, 32], strides = [1, 1]} : vector<2x96xf32> to vector<2x32xf32>
    %609 = arith.addf %607, %608 : vector<2x32xf32>
    %610 = arith.negf %609 : vector<2x32xf32>
    %611 = math.exp %610 : vector<2x32xf32>
    %cst_201 = arith.constant 1.000000e+00 : f32
    %612 = vector.broadcast %cst_201 : f32 to vector<2x32xf32>
    %613 = arith.addf %612, %611 : vector<2x32xf32>
    %614 = arith.divf %612, %613 : vector<2x32xf32>
    %615 = vector.extract_strided_slice %603 {offsets = [0, 32], sizes = [2, 32], strides = [1, 1]} : vector<2x96xf32> to vector<2x32xf32>
    %616 = vector.extract_strided_slice %606 {offsets = [0, 32], sizes = [2, 32], strides = [1, 1]} : vector<2x96xf32> to vector<2x32xf32>
    %617 = arith.addf %615, %616 : vector<2x32xf32>
    %618 = arith.negf %617 : vector<2x32xf32>
    %619 = math.exp %618 : vector<2x32xf32>
    %cst_202 = arith.constant 1.000000e+00 : f32
    %620 = vector.broadcast %cst_202 : f32 to vector<2x32xf32>
    %621 = arith.addf %620, %619 : vector<2x32xf32>
    %622 = arith.divf %620, %621 : vector<2x32xf32>
    %623 = vector.extract_strided_slice %603 {offsets = [0, 64], sizes = [2, 32], strides = [1, 1]} : vector<2x96xf32> to vector<2x32xf32>
    %624 = vector.extract_strided_slice %606 {offsets = [0, 64], sizes = [2, 32], strides = [1, 1]} : vector<2x96xf32> to vector<2x32xf32>
    %625 = arith.mulf %614, %624 : vector<2x32xf32>
    %626 = arith.addf %623, %625 : vector<2x32xf32>
    %627 = math.tanh %626 : vector<2x32xf32>
    %cst_203 = arith.constant 1.000000e+00 : f32
    %628 = vector.broadcast %cst_203 : f32 to vector<2x32xf32>
    %629 = arith.subf %628, %622 : vector<2x32xf32>
    %630 = arith.mulf %629, %627 : vector<2x32xf32>
    %631 = arith.mulf %622, %562 : vector<2x32xf32>
    %632 = arith.addf %630, %631 : vector<2x32xf32>
    %c0_204 = arith.constant 0 : index
    %c0_205 = arith.constant 0 : index
    %633 = vector.load %arg10[%c0_204, %c0_205] : memref<2x32xf32, #tpu.memory_space<vmem>>, vector<2x32xf32>
    tpu.vector_store %arg10[%c0_204, %c0_205], %594 {strides = array<i32>} : memref<2x32xf32, #tpu.memory_space<vmem>>, vector<2x32xf32>,
    %c0_206 = arith.constant 0 : index
    %c0_207 = arith.constant 0 : index
    %634 = vector.load %arg11[%c0_206, %c0_207] : memref<2x32xf32, #tpu.memory_space<vmem>>, vector<2x32xf32>
    tpu.vector_store %arg11[%c0_206, %c0_207], %632 {strides = array<i32>} : memref<2x32xf32, #tpu.memory_space<vmem>>, vector<2x32xf32>,
    %635 = arith.addf %632, %598 : vector<2x32xf32>
    %636 = arith.index_cast %c7_i32 : i32 to index
    %c0_208 = arith.constant 0 : index
    %c0_209 = arith.constant 0 : index
    %637 = vector.load %arg9[%636, %c0_208, %c0_209] : memref<8x2x32xf32, #tpu.memory_space<vmem>>, vector<1x2x32xf32>
    %638 = vector.shape_cast %637 : vector<1x2x32xf32> to vector<2x32xf32>
    %639 = vector.shape_cast %635 : vector<2x32xf32> to vector<1x2x32xf32>
    tpu.vector_store %arg9[%636, %c0_208, %c0_209], %639 {strides = array<i32>} : memref<8x2x32xf32, #tpu.memory_space<vmem>>, vector<1x2x32xf32>,
    %c8_i32 = arith.constant 8 : i32
    return
  }
  func.func @transform_0(%arg0: i32) -> (i32, i32, i32) {
    %c0_i32 = arith.constant 0 : i32
    %c0_i32_0 = arith.constant 0 : i32
    %c0_i32_1 = arith.constant 0 : i32
    return %arg0, %c0_i32, %c0_i32_0 : i32, i32, i32
  }
  func.func @transform_1(%arg0: i32) -> (i32, i32, i32) {
    %c0_i32 = arith.constant 0 : i32
    %c0_i32_0 = arith.constant 0 : i32
    %c0_i32_1 = arith.constant 0 : i32
    return %arg0, %c0_i32, %c0_i32_0 : i32, i32, i32
  }
  func.func @transform_2(%arg0: i32) -> (i32, i32, i32) {
    %c0_i32 = arith.constant 0 : i32
    %c0_i32_0 = arith.constant 0 : i32
    %c0_i32_1 = arith.constant 0 : i32
    return %arg0, %c0_i32, %c0_i32_0 : i32, i32, i32
  }
  func.func @transform_3(%arg0: i32) -> (i32, i32) {
    %c0_i32 = arith.constant 0 : i32
    %c0_i32_0 = arith.constant 0 : i32
    %c0_i32_1 = arith.constant 0 : i32
    return %c0_i32, %c0_i32_0 : i32, i32
  }
  func.func @transform_4(%arg0: i32) -> (i32, i32) {
    %c0_i32 = arith.constant 0 : i32
    %c0_i32_0 = arith.constant 0 : i32
    %c0_i32_1 = arith.constant 0 : i32
    return %c0_i32, %c0_i32_0 : i32, i32
  }
  func.func @transform_5(%arg0: i32) -> (i32, i32) {
    %c0_i32 = arith.constant 0 : i32
    %c0_i32_0 = arith.constant 0 : i32
    %c0_i32_1 = arith.constant 0 : i32
    return %c0_i32, %c0_i32_0 : i32, i32
  }
  func.func @transform_6(%arg0: i32) -> (i32, i32) {
    %c0_i32 = arith.constant 0 : i32
    %c0_i32_0 = arith.constant 0 : i32
    %c0_i32_1 = arith.constant 0 : i32
    return %c0_i32, %c0_i32_0 : i32, i32
  }
  func.func @transform_7(%arg0: i32) -> (i32, i32) {
    %c0_i32 = arith.constant 0 : i32
    %c0_i32_0 = arith.constant 0 : i32
    %c0_i32_1 = arith.constant 0 : i32
    return %c0_i32, %c0_i32_0 : i32, i32
  }
  func.func @transform_8(%arg0: i32) -> (i32, i32, i32) {
    %c0_i32 = arith.constant 0 : i32
    %c0_i32_0 = arith.constant 0 : i32
    %c0_i32_1 = arith.constant 0 : i32
    return %arg0, %c0_i32, %c0_i32_0 : i32, i32, i32
  }
}

module attributes {stable_mosaic.version = 11 : i64} {
  func.func @_head_kernel(%arg0: i32, %arg1: memref<64x32xbf16, #tpu.memory_space<vmem>>, %arg2: memref<64x8xbf16, #tpu.memory_space<vmem>>, %arg3: memref<64x8xbf16, #tpu.memory_space<vmem>>, %arg4: memref<32x32xbf16, #tpu.memory_space<vmem>>, %arg5: memref<8x32xbf16, #tpu.memory_space<vmem>>, %arg6: memref<1x32xf32, #tpu.memory_space<vmem>>, %arg7: memref<32x32xbf16, #tpu.memory_space<vmem>>, %arg8: memref<8x32xbf16, #tpu.memory_space<vmem>>, %arg9: memref<1x32xf32, #tpu.memory_space<vmem>>, %arg10: memref<32x30xbf16, #tpu.memory_space<vmem>>, %arg11: memref<1x30xf32, #tpu.memory_space<vmem>>, %arg12: memref<64x30xf32, #tpu.memory_space<vmem>>) attributes {dimension_semantics = [#tpu.dimension_semantics<parallel>], iteration_bounds = array<i64: 1>, scalar_prefetch = 0 : i64, scratch_operands = 0 : i64, tpu.core_type = #tpu.core_type<tc>, window_params = [{transform_indices = @transform_0, window_bounds = array<i64: 64, 32>}, {transform_indices = @transform_1, window_bounds = array<i64: 64, 8>}, {transform_indices = @transform_2, window_bounds = array<i64: 64, 8>}, {pipeline_mode = #tpu.pipeline_mode<synchronous>, transform_indices = @transform_3, window_bounds = array<i64: 32, 32>}, {pipeline_mode = #tpu.pipeline_mode<synchronous>, transform_indices = @transform_4, window_bounds = array<i64: 8, 32>}, {pipeline_mode = #tpu.pipeline_mode<synchronous>, transform_indices = @transform_5, window_bounds = array<i64: 1, 32>}, {pipeline_mode = #tpu.pipeline_mode<synchronous>, transform_indices = @transform_6, window_bounds = array<i64: 32, 32>}, {pipeline_mode = #tpu.pipeline_mode<synchronous>, transform_indices = @transform_7, window_bounds = array<i64: 8, 32>}, {pipeline_mode = #tpu.pipeline_mode<synchronous>, transform_indices = @transform_8, window_bounds = array<i64: 1, 32>}, {pipeline_mode = #tpu.pipeline_mode<synchronous>, transform_indices = @transform_9, window_bounds = array<i64: 32, 30>}, {pipeline_mode = #tpu.pipeline_mode<synchronous>, transform_indices = @transform_10, window_bounds = array<i64: 1, 30>}, {transform_indices = @transform_11, window_bounds = array<i64: 64, 30>}]} {
    %c0 = arith.constant 0 : index
    %c0_0 = arith.constant 0 : index
    %0 = vector.load %arg1[%c0, %c0_0] : memref<64x32xbf16, #tpu.memory_space<vmem>>, vector<64x32xbf16>
    %c0_1 = arith.constant 0 : index
    %c0_2 = arith.constant 0 : index
    %1 = vector.load %arg4[%c0_1, %c0_2] : memref<32x32xbf16, #tpu.memory_space<vmem>>, vector<32x32xbf16>
    %cst = arith.constant dense<0.000000e+00> : vector<64x32xf32>
    %2 = tpu.matmul %0, %1, %cst {dimension_numbers = #tpu.dot_dimension_numbers<[1], [0], [0], [1], [0, 0, 1, 1], [], []>} : vector<64x32xbf16>, vector<32x32xbf16>, vector<64x32xf32> -> vector<64x32xf32>
    %c0_3 = arith.constant 0 : index
    %c0_4 = arith.constant 0 : index
    %3 = vector.load %arg2[%c0_3, %c0_4] : memref<64x8xbf16, #tpu.memory_space<vmem>>, vector<64x8xbf16>
    %c0_5 = arith.constant 0 : index
    %c0_6 = arith.constant 0 : index
    %4 = vector.load %arg5[%c0_5, %c0_6] : memref<8x32xbf16, #tpu.memory_space<vmem>>, vector<8x32xbf16>
    %cst_7 = arith.constant dense<0.000000e+00> : vector<64x32xf32>
    %5 = tpu.matmul %3, %4, %cst_7 {dimension_numbers = #tpu.dot_dimension_numbers<[1], [0], [0], [1], [0, 0, 1, 1], [], []>} : vector<64x8xbf16>, vector<8x32xbf16>, vector<64x32xf32> -> vector<64x32xf32>
    %6 = arith.addf %2, %5 : vector<64x32xf32>
    %c0_8 = arith.constant 0 : index
    %c0_9 = arith.constant 0 : index
    %7 = vector.load %arg6[%c0_8, %c0_9] : memref<1x32xf32, #tpu.memory_space<vmem>>, vector<1x32xf32>
    %8 = vector.broadcast %7 : vector<1x32xf32> to vector<64x32xf32>
    %9 = arith.addf %6, %8 : vector<64x32xf32>
    %cst_10 = arith.constant 0.000000e+00 : f32
    %10 = vector.broadcast %cst_10 : f32 to vector<64x32xf32>
    %11 = arith.maximumf %9, %10 : vector<64x32xf32>
    %12 = arith.truncf %11 : vector<64x32xf32> to vector<64x32xbf16>
    %c0_11 = arith.constant 0 : index
    %c0_12 = arith.constant 0 : index
    %13 = vector.load %arg7[%c0_11, %c0_12] : memref<32x32xbf16, #tpu.memory_space<vmem>>, vector<32x32xbf16>
    %cst_13 = arith.constant dense<0.000000e+00> : vector<64x32xf32>
    %14 = tpu.matmul %12, %13, %cst_13 {dimension_numbers = #tpu.dot_dimension_numbers<[1], [0], [0], [1], [0, 0, 1, 1], [], []>} : vector<64x32xbf16>, vector<32x32xbf16>, vector<64x32xf32> -> vector<64x32xf32>
    %c0_14 = arith.constant 0 : index
    %c0_15 = arith.constant 0 : index
    %15 = vector.load %arg3[%c0_14, %c0_15] : memref<64x8xbf16, #tpu.memory_space<vmem>>, vector<64x8xbf16>
    %c0_16 = arith.constant 0 : index
    %c0_17 = arith.constant 0 : index
    %16 = vector.load %arg8[%c0_16, %c0_17] : memref<8x32xbf16, #tpu.memory_space<vmem>>, vector<8x32xbf16>
    %cst_18 = arith.constant dense<0.000000e+00> : vector<64x32xf32>
    %17 = tpu.matmul %15, %16, %cst_18 {dimension_numbers = #tpu.dot_dimension_numbers<[1], [0], [0], [1], [0, 0, 1, 1], [], []>} : vector<64x8xbf16>, vector<8x32xbf16>, vector<64x32xf32> -> vector<64x32xf32>
    %18 = arith.addf %14, %17 : vector<64x32xf32>
    %c0_19 = arith.constant 0 : index
    %c0_20 = arith.constant 0 : index
    %19 = vector.load %arg9[%c0_19, %c0_20] : memref<1x32xf32, #tpu.memory_space<vmem>>, vector<1x32xf32>
    %20 = vector.broadcast %19 : vector<1x32xf32> to vector<64x32xf32>
    %21 = arith.addf %18, %20 : vector<64x32xf32>
    %cst_21 = arith.constant 0.000000e+00 : f32
    %22 = vector.broadcast %cst_21 : f32 to vector<64x32xf32>
    %23 = arith.maximumf %21, %22 : vector<64x32xf32>
    %24 = arith.truncf %23 : vector<64x32xf32> to vector<64x32xbf16>
    %c0_22 = arith.constant 0 : index
    %c0_23 = arith.constant 0 : index
    %25 = vector.load %arg10[%c0_22, %c0_23] : memref<32x30xbf16, #tpu.memory_space<vmem>>, vector<32x30xbf16>
    %cst_24 = arith.constant dense<0.000000e+00> : vector<64x30xf32>
    %26 = tpu.matmul %24, %25, %cst_24 {dimension_numbers = #tpu.dot_dimension_numbers<[1], [0], [0], [1], [0, 0, 1, 1], [], []>} : vector<64x32xbf16>, vector<32x30xbf16>, vector<64x30xf32> -> vector<64x30xf32>
    %c0_25 = arith.constant 0 : index
    %c0_26 = arith.constant 0 : index
    %27 = vector.load %arg11[%c0_25, %c0_26] : memref<1x30xf32, #tpu.memory_space<vmem>>, vector<1x30xf32>
    %28 = vector.broadcast %27 : vector<1x30xf32> to vector<64x30xf32>
    %29 = arith.addf %26, %28 : vector<64x30xf32>
    %c0_27 = arith.constant 0 : index
    %c0_28 = arith.constant 0 : index
    %30 = vector.load %arg12[%c0_27, %c0_28] : memref<64x30xf32, #tpu.memory_space<vmem>>, vector<64x30xf32>
    tpu.vector_store %arg12[%c0_27, %c0_28], %29 {strides = array<i32>} : memref<64x30xf32, #tpu.memory_space<vmem>>, vector<64x30xf32>,
    return
  }
  func.func @transform_0(%arg0: i32) -> (i32, i32) {
    %c0_i32 = arith.constant 0 : i32
    %c0_i32_0 = arith.constant 0 : i32
    return %arg0, %c0_i32 : i32, i32
  }
  func.func @transform_1(%arg0: i32) -> (i32, i32) {
    %c0_i32 = arith.constant 0 : i32
    %c0_i32_0 = arith.constant 0 : i32
    return %arg0, %c0_i32 : i32, i32
  }
  func.func @transform_2(%arg0: i32) -> (i32, i32) {
    %c0_i32 = arith.constant 0 : i32
    %c0_i32_0 = arith.constant 0 : i32
    return %arg0, %c0_i32 : i32, i32
  }
  func.func @transform_3(%arg0: i32) -> (i32, i32) {
    %c0_i32 = arith.constant 0 : i32
    %c0_i32_0 = arith.constant 0 : i32
    %c0_i32_1 = arith.constant 0 : i32
    return %c0_i32, %c0_i32_0 : i32, i32
  }
  func.func @transform_4(%arg0: i32) -> (i32, i32) {
    %c0_i32 = arith.constant 0 : i32
    %c0_i32_0 = arith.constant 0 : i32
    %c0_i32_1 = arith.constant 0 : i32
    return %c0_i32, %c0_i32_0 : i32, i32
  }
  func.func @transform_5(%arg0: i32) -> (i32, i32) {
    %c0_i32 = arith.constant 0 : i32
    %c0_i32_0 = arith.constant 0 : i32
    %c0_i32_1 = arith.constant 0 : i32
    return %c0_i32, %c0_i32_0 : i32, i32
  }
  func.func @transform_6(%arg0: i32) -> (i32, i32) {
    %c0_i32 = arith.constant 0 : i32
    %c0_i32_0 = arith.constant 0 : i32
    %c0_i32_1 = arith.constant 0 : i32
    return %c0_i32, %c0_i32_0 : i32, i32
  }
  func.func @transform_7(%arg0: i32) -> (i32, i32) {
    %c0_i32 = arith.constant 0 : i32
    %c0_i32_0 = arith.constant 0 : i32
    %c0_i32_1 = arith.constant 0 : i32
    return %c0_i32, %c0_i32_0 : i32, i32
  }
  func.func @transform_8(%arg0: i32) -> (i32, i32) {
    %c0_i32 = arith.constant 0 : i32
    %c0_i32_0 = arith.constant 0 : i32
    %c0_i32_1 = arith.constant 0 : i32
    return %c0_i32, %c0_i32_0 : i32, i32
  }
  func.func @transform_9(%arg0: i32) -> (i32, i32) {
    %c0_i32 = arith.constant 0 : i32
    %c0_i32_0 = arith.constant 0 : i32
    %c0_i32_1 = arith.constant 0 : i32
    return %c0_i32, %c0_i32_0 : i32, i32
  }
  func.func @transform_10(%arg0: i32) -> (i32, i32) {
    %c0_i32 = arith.constant 0 : i32
    %c0_i32_0 = arith.constant 0 : i32
    %c0_i32_1 = arith.constant 0 : i32
    return %c0_i32, %c0_i32_0 : i32, i32
  }
  func.func @transform_11(%arg0: i32) -> (i32, i32) {
    %c0_i32 = arith.constant 0 : i32
    %c0_i32_0 = arith.constant 0 : i32
    return %arg0, %c0_i32 : i32, i32
  }
}

</mosaic_0001>

<llo_original>
// kernel: wavernn_forward.4
$region0: #{wavernn_forward.4}
  #allocation0 [shape = 'u32[]', space=smem, size = 0x4, offset = 0x4, fixed_abs, tag = 'smem constant byte address 0x4 - core index']
  #allocation1 [shape = 'u32[144,128]{1,0:T(1,128)}', space=vmem, size = 0x12000, scoped, tag = 'internal scratch']
  %s0 = inlined_call_operand.vmem [shape: bf16[16,40], index: 0, kind: input, shape index: {}]
  %s1 = inlined_call_operand.vmem [shape: bf16[40,32], index: 1, kind: input, shape index: {}]
  %s2 = inlined_call_operand.vmem [shape: f32[1,32], index: 2, kind: input, shape index: {}]
  %s3 = inlined_call_operand.vmem [shape: bf16[2,32,32], index: 3, kind: input, shape index: {}]
  %s4 = inlined_call_operand.vmem [shape: f32[2,1,32], index: 4, kind: input, shape index: {}]
  %s5 = inlined_call_operand.vmem [shape: bf16[2,32,32], index: 5, kind: input, shape index: {}]
  %s6 = inlined_call_operand.vmem [shape: f32[2,1,32], index: 6, kind: input, shape index: {}]
  %s7 = inlined_call_operand.vmem [shape: bf16[32,32], index: 7, kind: input, shape index: {}]
  %s8 = inlined_call_operand.vmem [shape: f32[1,32], index: 8, kind: input, shape index: {}]
  %s9 = inlined_call_operand.vmem [shape: f32[16,32], index: 9, kind: output, shape index: {}]
  %s10 = sld [smem:[#allocation0]]
  $region46: #{wavernn_forward.4} parent=0
    _
  %s12 = ssub.s32 1, %s10
  %s13 = scalar_select 0, %s12, %s10
  // Predicated region
  $region2: #{wavernn_forward.4} parent=0 // pred_check
    _
  $region3: #{wavernn_forward.4} parent=0 // pred_check_branch
    %15 = sbr.rel (0) target = $region5
  $region4: #{wavernn_forward.4} parent=0 // pred_region
    _
  $region5: #{wavernn_forward.4} parent=0 // pred_fallthru
    _
  // Predicated region
  $region6: #{wavernn_forward.4} parent=0 // pred_check
    _
  $region7: #{wavernn_forward.4} parent=0 // pred_check_branch
    %17 = sbr.rel (0) target = $region9
  $region8: #{wavernn_forward.4} parent=0 // pred_region
    _
  $region9: #{wavernn_forward.4} parent=0 // pred_fallthru
    _
  // Predicated region
  $region10: #{wavernn_forward.4} parent=0 // pred_check
    _
  $region11: #{wavernn_forward.4} parent=0 // pred_check_branch
    %19 = sbr.rel (0) target = $region13
  $region12: #{wavernn_forward.4} parent=0 // pred_region
    _
  $region13: #{wavernn_forward.4} parent=0 // pred_fallthru
    _
  // Predicated region
  $region14: #{wavernn_forward.4} parent=0 // pred_check
    _
  $region15: #{wavernn_forward.4} parent=0 // pred_check_branch
    %21 = sbr.rel (0) target = $region17
  $region16: #{wavernn_forward.4} parent=0 // pred_region
    _
  $region17: #{wavernn_forward.4} parent=0 // pred_fallthru
    _
  // Predicated region
  $region18: #{wavernn_forward.4} parent=0 // pred_check
    _
  $region19: #{wavernn_forward.4} parent=0 // pred_check_branch
    %23 = sbr.rel (0) target = $region21
  $region20: #{wavernn_forward.4} parent=0 // pred_region
    _
  $region21: #{wavernn_forward.4} parent=0 // pred_fallthru
    _
  // Predicated region
  $region22: #{wavernn_forward.4} parent=0 // pred_check
    _
  $region23: #{wavernn_forward.4} parent=0 // pred_check_branch
    %25 = sbr.rel (0) target = $region25
  $region24: #{wavernn_forward.4} parent=0 // pred_region
    _
  $region25: #{wavernn_forward.4} parent=0 // pred_fallthru
    _
  // Predicated region
  $region26: #{wavernn_forward.4} parent=0 // pred_check
    _
  $region27: #{wavernn_forward.4} parent=0 // pred_check_branch
    %27 = sbr.rel (0) target = $region29
  $region28: #{wavernn_forward.4} parent=0 // pred_region
    _
  $region29: #{wavernn_forward.4} parent=0 // pred_fallthru
    _
  // Predicated region
  $region30: #{wavernn_forward.4} parent=0 // pred_check
    _
  $region31: #{wavernn_forward.4} parent=0 // pred_check_branch
    %29 = sbr.rel (0) target = $region33
  $region32: #{wavernn_forward.4} parent=0 // pred_region
    _
  $region33: #{wavernn_forward.4} parent=0 // pred_fallthru
    _
  // Predicated region
  $region34: #{wavernn_forward.4} parent=0 // pred_check
    _
  $region35: #{wavernn_forward.4} parent=0 // pred_check_branch
    %31 = sbr.rel (0) target = $region37
  $region36: #{wavernn_forward.4} parent=0 // pred_region
    _
  $region37: #{wavernn_forward.4} parent=0 // pred_fallthru
    _
  %v33 = vld [vmem:[%s0] sm:$0xf]
  %v34 = vld [vmem:[%s0 + $0x4] sm:$0xf]
  %v35 = vld [vmem:[%s1] sm:$0xf]
  %v36 = vld [vmem:[%s1 + $0x4] sm:$0xf]
  %v37 = vld [vmem:[%s1 + $0x8] sm:$0xf]
  %v38 = vld [vmem:[%s1 + $0xc] sm:$0xf]
  %v39 = vld [vmem:[%s1 + $0x10] sm:$0xf]
  %v40 = vld [vmem:[%s2] sm:$0x1]
  %v42 = vlaneseq
  %v43 = vshrl.u32 %v42, 7
  %v44 = vsub.s32 0, %v43
  %v45 = vrot.slane %v40, %v44
  %v49 = vunpack.c.l.b16 %v33
  %v50 = vunpack.c.l.b16 %v34
  %v51 = vpack.c.b16 %v50, %v49
  %v57 = vunpack.c.l.b16 %v35
  %v58 = vunpack.c.l.b16 %v36
  %v59 = vunpack.c.l.b16 %v37
  %v60 = vunpack.c.l.b16 %v38
  %v61 = vunpack.c.l.b16 %v39
  %v62 = vpack.c.b16 %v58, %v57
  %v63 = vpack.c.b16 %v60, %v59
  %v64 = vpack.c.b16 %v61, %v61
  %vm67 = vcmask 326656
  %v69 = vsel %vm67, %v51, 0
  %vm71 = vcmask 1043456
  %v73 = vsel %vm71, %v64, 0
  %75 = vmatprep.subr.bf16.mxu0 0
  %76 = vmatpush1.bf16.msra.mxu0 %v62
  %77 = vmatprep.subr.bf16.mxu0 0
  %78 = vmatpush1.bf16.msra.mxu0 %v63
  %79 = vmatprep.subr.bf16.mxu0 0
  %80 = vmatpush1.bf16.msra.mxu0 %v73
  %81 = vmatprep.subr.bf16.mxu0 0
  %82 = vmatpush1.bf16.msra.mxu0 0
  %83 = vmatprep.subr.bf16.mxu0 0
  %84 = vmatpush1.bf16.msra.mxu0 0
  %85 = vmatprep.subr.bf16.mxu0 0
  %86 = vmatpush1.bf16.msra.mxu0 0
  %87 = vmatprep.subr.bf16.mxu0 0
  %88 = vmatpush1.bf16.msra.mxu0 0
  %89 = vmatprep.subr.bf16.mxu0 0
  %90 = vmatpush1.bf16.msra.mxu0 0
  %91 = vmatprep.subr.bf16.mxu0 0
  %92 = vmatpush1.bf16.msra.mxu0 0
  %93 = vmatprep.subr.bf16.mxu0 0
  %94 = vmatpush1.bf16.msra.mxu0 0
  %95 = vmatprep.subr.bf16.mxu0 0
  %96 = vmatpush1.bf16.msra.mxu0 0
  %97 = vmatprep.subr.bf16.mxu0 0
  %98 = vmatpush1.bf16.msra.mxu0 0
  %99 = vmatprep.subr.bf16.mxu0 0
  %100 = vmatpush1.bf16.msra.mxu0 0
  %101 = vmatprep.subr.bf16.mxu0 0
  %102 = vmatpush1.bf16.msra.mxu0 0
  %103 = vmatprep.subr.bf16.mxu0 0
  %104 = vmatpush1.bf16.msra.mxu0 0
  %105 = vmatprep.subr.bf16.mxu0 0
  %106 = vmatpush1.bf16.msra.mxu0 0
  %107 = vmatprep.mubr.bf16.mxu0 0
  %108 = vmatmul.mubr.bf16.gmra.mrb[0].mxu0 %v69
  %v109 = vpop.f32.mrb[0].mxu0
  %v110 = vadd.f32 %v45, %v109
  %v111 = vpop.f32.mrb[0].mxu0
  %v112 = vpop.f32.mrb[0].mxu0
  %v113 = vadd.f32 %v45, %v112
  %v114 = vpop.f32.mrb[0].mxu0
  %115 = vdwg.mxu0
  %v116 = vmax.f32 %v110, 0.0
  %v117 = vmax.f32 %v113, 0.0
  %v118 = vpack.c.bf16 %v117, %v116
  %v119 = vld [vmem:[%s3] sm:$0xf]
  %v120 = vld [vmem:[%s3 + $0x4] sm:$0xf]
  %v121 = vld [vmem:[%s3 + $0x8] sm:$0xf]
  %v122 = vld [vmem:[%s3 + $0xc] sm:$0xf]
  %v123 = vld [vmem:[%s4] sm:$0x1]
  %v125 = vlaneseq
  %v126 = vshrl.u32 %v125, 7
  %v127 = vsub.s32 0, %v126
  %v128 = vrot.slane %v123, %v127
  %v134 = vunpack.c.l.b16 %v119
  %v135 = vunpack.c.l.b16 %v120
  %v136 = vunpack.c.l.b16 %v121
  %v137 = vunpack.c.l.b16 %v122
  %v138 = vpack.c.b16 %v135, %v134
  %v139 = vpack.c.b16 %v137, %v136
  %vm142 = vcmask 261120
  %v144 = vsel %vm142, %v118, 0
  %146 = vmatprep.subr.bf16.mxu0 0
  %147 = vmatpush1.bf16.msra.mxu0 %v138
  %148 = vmatprep.subr.bf16.mxu0 0
  %149 = vmatpush1.bf16.msra.mxu0 %v139
  %150 = vmatprep.subr.bf16.mxu0 0
  %151 = vmatpush1.bf16.msra.mxu0 0
  %152 = vmatprep.subr.bf16.mxu0 0
  %153 = vmatpush1.bf16.msra.mxu0 0
  %154 = vmatprep.subr.bf16.mxu0 0
  %155 = vmatpush1.bf16.msra.mxu0 0
  %156 = vmatprep.subr.bf16.mxu0 0
  %157 = vmatpush1.bf16.msra.mxu0 0
  %158 = vmatprep.subr.bf16.mxu0 0
  %159 = vmatpush1.bf16.msra.mxu0 0
  %160 = vmatprep.subr.bf16.mxu0 0
  %161 = vmatpush1.bf16.msra.mxu0 0
  %162 = vmatprep.subr.bf16.mxu0 0
  %163 = vmatpush1.bf16.msra.mxu0 0
  %164 = vmatprep.subr.bf16.mxu0 0
  %165 = vmatpush1.bf16.msra.mxu0 0
  %166 = vmatprep.subr.bf16.mxu0 0
  %167 = vmatpush1.bf16.msra.mxu0 0
  %168 = vmatprep.subr.bf16.mxu0 0
  %169 = vmatpush1.bf16.msra.mxu0 0
  %170 = vmatprep.subr.bf16.mxu0 0
  %171 = vmatpush1.bf16.msra.mxu0 0
  %172 = vmatprep.subr.bf16.mxu0 0
  %173 = vmatpush1.bf16.msra.mxu0 0
  %174 = vmatprep.subr.bf16.mxu0 0
  %175 = vmatpush1.bf16.msra.mxu0 0
  %176 = vmatprep.subr.bf16.mxu0 0
  %177 = vmatpush1.bf16.msra.mxu0 0
  %178 = vmatprep.mubr.bf16.mxu0 0
  %179 = vmatmul.mubr.bf16.gmra.mrb[0].mxu0 %v144
  %v180 = vpop.f32.mrb[0].mxu0
  %v181 = vadd.f32 %v128, %v180
  %v182 = vpop.f32.mrb[0].mxu0
  %v183 = vpop.f32.mrb[0].mxu0
  %v184 = vadd.f32 %v128, %v183
  %v185 = vpop.f32.mrb[0].mxu0
  %186 = vdwg.mxu0
  %v187 = vmax.f32 %v181, 0.0
  %v188 = vmax.f32 %v184, 0.0
  %v189 = vpack.c.bf16 %v188, %v187
  %v190 = vld [vmem:[%s5] sm:$0xf]
  %v191 = vld [vmem:[%s5 + $0x4] sm:$0xf]
  %v192 = vld [vmem:[%s5 + $0x8] sm:$0xf]
  %v193 = vld [vmem:[%s5 + $0xc] sm:$0xf]
  %v194 = vld [vmem:[%s6] sm:$0x1]
  %v196 = vlaneseq
  %v197 = vshrl.u32 %v196, 7
  %v198 = vsub.s32 0, %v197
  %v199 = vrot.slane %v194, %v198
  %v205 = vunpack.c.l.b16 %v190
  %v206 = vunpack.c.l.b16 %v191
  %v207 = vunpack.c.l.b16 %v192
  %v208 = vunpack.c.l.b16 %v193
  %v209 = vpack.c.b16 %v206, %v205
  %v210 = vpack.c.b16 %v208, %v207
  %v214 = vsel %vm142, %v189, 0
  %216 = vmatprep.subr.bf16.mxu0 0
  %217 = vmatpush1.bf16.msra.mxu0 %v209
  %218 = vmatprep.subr.bf16.mxu0 0
  %219 = vmatpush1.bf16.msra.mxu0 %v210
  %220 = vmatprep.subr.bf16.mxu0 0
  %221 = vmatpush1.bf16.msra.mxu0 0
  %222 = vmatprep.subr.bf16.mxu0 0
  %223 = vmatpush1.bf16.msra.mxu0 0
  %224 = vmatprep.subr.bf16.mxu0 0
  %225 = vmatpush1.bf16.msra.mxu0 0
  %226 = vmatprep.subr.bf16.mxu0 0
  %227 = vmatpush1.bf16.msra.mxu0 0
  %228 = vmatprep.subr.bf16.mxu0 0
  %229 = vmatpush1.bf16.msra.mxu0 0
  %230 = vmatprep.subr.bf16.mxu0 0
  %231 = vmatpush1.bf16.msra.mxu0 0
  %232 = vmatprep.subr.bf16.mxu0 0
  %233 = vmatpush1.bf16.msra.mxu0 0
  %234 = vmatprep.subr.bf16.mxu0 0
  %235 = vmatpush1.bf16.msra.mxu0 0
  %236 = vmatprep.subr.bf16.mxu0 0
  %237 = vmatpush1.bf16.msra.mxu0 0
  %238 = vmatprep.subr.bf16.mxu0 0
  %239 = vmatpush1.bf16.msra.mxu0 0
  %240 = vmatprep.subr.bf16.mxu0 0
  %241 = vmatpush1.bf16.msra.mxu0 0
  %242 = vmatprep.subr.bf16.mxu0 0
  %243 = vmatpush1.bf16.msra.mxu0 0
  %244 = vmatprep.subr.bf16.mxu0 0
  %245 = vmatpush1.bf16.msra.mxu0 0
  %246 = vmatprep.subr.bf16.mxu0 0
  %247 = vmatpush1.bf16.msra.mxu0 0
  %248 = vmatprep.mubr.bf16.mxu0 0
  %249 = vmatmul.mubr.bf16.gmra.mrb[0].mxu0 %v214
  %v250 = vpop.f32.mrb[0].mxu0
  %v251 = vadd.f32 %v199, %v250
  %v252 = vpop.f32.mrb[0].mxu0
  %v253 = vpop.f32.mrb[0].mxu0
  %v254 = vadd.f32 %v199, %v253
  %v255 = vpop.f32.mrb[0].mxu0
  %256 = vdwg.mxu0
  %v257 = vadd.f32 %v251, %v116
  %v258 = vadd.f32 %v254, %v117
  %v259 = vpack.c.bf16 %v258, %v257
  %s260 = scalar_lea.vmem %s3, 16
  %v261 = vld [vmem:[%s260] sm:$0xf]
  %v262 = vld [vmem:[%s260 + $0x4] sm:$0xf]
  %v263 = vld [vmem:[%s260 + $0x8] sm:$0xf]
  %v264 = vld [vmem:[%s260 + $0xc] sm:$0xf]
  %s265 = scalar_lea.vmem %s4, 1
  %v266 = vld [vmem:[%s265] sm:$0x1]
  %v268 = vlaneseq
  %v269 = vshrl.u32 %v268, 7
  %v270 = vsub.s32 0, %v269
  %v271 = vrot.slane %v266, %v270
  %v277 = vunpack.c.l.b16 %v261
  %v278 = vunpack.c.l.b16 %v262
  %v279 = vunpack.c.l.b16 %v263
  %v280 = vunpack.c.l.b16 %v264
  %v281 = vpack.c.b16 %v278, %v277
  %v282 = vpack.c.b16 %v280, %v279
  %v286 = vsel %vm142, %v259, 0
  %288 = vmatprep.subr.bf16.mxu0 0
  %289 = vmatpush1.bf16.msra.mxu0 %v281
  %290 = vmatprep.subr.bf16.mxu0 0
  %291 = vmatpush1.bf16.msra.mxu0 %v282
  %292 = vmatprep.subr.bf16.mxu0 0
  %293 = vmatpush1.bf16.msra.mxu0 0
  %294 = vmatprep.subr.bf16.mxu0 0
  %295 = vmatpush1.bf16.msra.mxu0 0
  %296 = vmatprep.subr.bf16.mxu0 0
  %297 = vmatpush1.bf16.msra.mxu0 0
  %298 = vmatprep.subr.bf16.mxu0 0
  %299 = vmatpush1.bf16.msra.mxu0 0
  %300 = vmatprep.subr.bf16.mxu0 0
  %301 = vmatpush1.bf16.msra.mxu0 0
  %302 = vmatprep.subr.bf16.mxu0 0
  %303 = vmatpush1.bf16.msra.mxu0 0
  %304 = vmatprep.subr.bf16.mxu0 0
  %305 = vmatpush1.bf16.msra.mxu0 0
  %306 = vmatprep.subr.bf16.mxu0 0
  %307 = vmatpush1.bf16.msra.mxu0 0
  %308 = vmatprep.subr.bf16.mxu0 0
  %309 = vmatpush1.bf16.msra.mxu0 0
  %310 = vmatprep.subr.bf16.mxu0 0
  %311 = vmatpush1.bf16.msra.mxu0 0
  %312 = vmatprep.subr.bf16.mxu0 0
  %313 = vmatpush1.bf16.msra.mxu0 0
  %314 = vmatprep.subr.bf16.mxu0 0
  %315 = vmatpush1.bf16.msra.mxu0 0
  %316 = vmatprep.subr.bf16.mxu0 0
  %317 = vmatpush1.bf16.msra.mxu0 0
  %318 = vmatprep.subr.bf16.mxu0 0
  %319 = vmatpush1.bf16.msra.mxu0 0
  %320 = vmatprep.mubr.bf16.mxu0 0
  %321 = vmatmul.mubr.bf16.gmra.mrb[0].mxu0 %v286
  %v322 = vpop.f32.mrb[0].mxu0
  %v323 = vadd.f32 %v271, %v322
  %v324 = vpop.f32.mrb[0].mxu0
  %v325 = vpop.f32.mrb[0].mxu0
  %v326 = vadd.f32 %v271, %v325
  %v327 = vpop.f32.mrb[0].mxu0
  %328 = vdwg.mxu0
  %v329 = vmax.f32 %v323, 0.0
  %v330 = vmax.f32 %v326, 0.0
  %v331 = vpack.c.bf16 %v330, %v329
  %s332 = scalar_lea.vmem %s5, 16
  %v333 = vld [vmem:[%s332] sm:$0xf]
  %v334 = vld [vmem:[%s332 + $0x4] sm:$0xf]
  %v335 = vld [vmem:[%s332 + $0x8] sm:$0xf]
  %v336 = vld [vmem:[%s332 + $0xc] sm:$0xf]
  %s337 = scalar_lea.vmem %s6, 1
  %v338 = vld [vmem:[%s337] sm:$0x1]
  %v340 = vlaneseq
  %v341 = vshrl.u32 %v340, 7
  %v342 = vsub.s32 0, %v341
  %v343 = vrot.slane %v338, %v342
  %v349 = vunpack.c.l.b16 %v333
  %v350 = vunpack.c.l.b16 %v334
  %v351 = vunpack.c.l.b16 %v335
  %v352 = vunpack.c.l.b16 %v336
  %v353 = vpack.c.b16 %v350, %v349
  %v354 = vpack.c.b16 %v352, %v351
  %v358 = vsel %vm142, %v331, 0
  %360 = vmatprep.subr.bf16.mxu0 0
  %361 = vmatpush1.bf16.msra.mxu0 %v353
  %362 = vmatprep.subr.bf16.mxu0 0
  %363 = vmatpush1.bf16.msra.mxu0 %v354
  %364 = vmatprep.subr.bf16.mxu0 0
  %365 = vmatpush1.bf16.msra.mxu0 0
  %366 = vmatprep.subr.bf16.mxu0 0
  %367 = vmatpush1.bf16.msra.mxu0 0
  %368 = vmatprep.subr.bf16.mxu0 0
  %369 = vmatpush1.bf16.msra.mxu0 0
  %370 = vmatprep.subr.bf16.mxu0 0
  %371 = vmatpush1.bf16.msra.mxu0 0
  %372 = vmatprep.subr.bf16.mxu0 0
  %373 = vmatpush1.bf16.msra.mxu0 0
  %374 = vmatprep.subr.bf16.mxu0 0
  %375 = vmatpush1.bf16.msra.mxu0 0
  %376 = vmatprep.subr.bf16.mxu0 0
  %377 = vmatpush1.bf16.msra.mxu0 0
  %378 = vmatprep.subr.bf16.mxu0 0
  %379 = vmatpush1.bf16.msra.mxu0 0
  %380 = vmatprep.subr.bf16.mxu0 0
  %381 = vmatpush1.bf16.msra.mxu0 0
  %382 = vmatprep.subr.bf16.mxu0 0
  %383 = vmatpush1.bf16.msra.mxu0 0
  %384 = vmatprep.subr.bf16.mxu0 0
  %385 = vmatpush1.bf16.msra.mxu0 0
  %386 = vmatprep.subr.bf16.mxu0 0
  %387 = vmatpush1.bf16.msra.mxu0 0
  %388 = vmatprep.subr.bf16.mxu0 0
  %389 = vmatpush1.bf16.msra.mxu0 0
  %390 = vmatprep.subr.bf16.mxu0 0
  %391 = vmatpush1.bf16.msra.mxu0 0
  %392 = vmatprep.mubr.bf16.mxu0 0
  %393 = vmatmul.mubr.bf16.gmra.mrb[0].mxu0 %v358
  %v394 = vpop.f32.mrb[0].mxu0
  %v395 = vadd.f32 %v343, %v394
  %v396 = vpop.f32.mrb[0].mxu0
  %v397 = vpop.f32.mrb[0].mxu0
  %v398 = vadd.f32 %v343, %v397
  %v399 = vpop.f32.mrb[0].mxu0
  %400 = vdwg.mxu0
  %v401 = vadd.f32 %v395, %v257
  %v402 = vadd.f32 %v398, %v258
  %v403 = vpack.c.bf16 %v402, %v401
  %v404 = vld [vmem:[%s7] sm:$0xf]
  %v405 = vld [vmem:[%s7 + $0x4] sm:$0xf]
  %v406 = vld [vmem:[%s7 + $0x8] sm:$0xf]
  %v407 = vld [vmem:[%s7 + $0xc] sm:$0xf]
  %v408 = vld [vmem:[%s8] sm:$0x1]
  %v410 = vlaneseq
  %v411 = vshrl.u32 %v410, 7
  %v412 = vsub.s32 0, %v411
  %v413 = vrot.slane %v408, %v412
  %v419 = vunpack.c.l.b16 %v404
  %v420 = vunpack.c.l.b16 %v405
  %v421 = vunpack.c.l.b16 %v406
  %v422 = vunpack.c.l.b16 %v407
  %v423 = vpack.c.b16 %v420, %v419
  %v424 = vpack.c.b16 %v422, %v421
  %v428 = vsel %vm142, %v403, 0
  %430 = vmatprep.subr.bf16.mxu0 0
  %431 = vmatpush1.bf16.msra.mxu0 %v423
  %432 = vmatprep.subr.bf16.mxu0 0
  %433 = vmatpush1.bf16.msra.mxu0 %v424
  %434 = vmatprep.subr.bf16.mxu0 0
  %435 = vmatpush1.bf16.msra.mxu0 0
  %436 = vmatprep.subr.bf16.mxu0 0
  %437 = vmatpush1.bf16.msra.mxu0 0
  %438 = vmatprep.subr.bf16.mxu0 0
  %439 = vmatpush1.bf16.msra.mxu0 0
  %440 = vmatprep.subr.bf16.mxu0 0
  %441 = vmatpush1.bf16.msra.mxu0 0
  %442 = vmatprep.subr.bf16.mxu0 0
  %443 = vmatpush1.bf16.msra.mxu0 0
  %444 = vmatprep.subr.bf16.mxu0 0
  %445 = vmatpush1.bf16.msra.mxu0 0
  %446 = vmatprep.subr.bf16.mxu0 0
  %447 = vmatpush1.bf16.msra.mxu0 0
  %448 = vmatprep.subr.bf16.mxu0 0
  %449 = vmatpush1.bf16.msra.mxu0 0
  %450 = vmatprep.subr.bf16.mxu0 0
  %451 = vmatpush1.bf16.msra.mxu0 0
  %452 = vmatprep.subr.bf16.mxu0 0
  %453 = vmatpush1.bf16.msra.mxu0 0
  %454 = vmatprep.subr.bf16.mxu0 0
  %455 = vmatpush1.bf16.msra.mxu0 0
  %456 = vmatprep.subr.bf16.mxu0 0
  %457 = vmatpush1.bf16.msra.mxu0 0
  %458 = vmatprep.subr.bf16.mxu0 0
  %459 = vmatpush1.bf16.msra.mxu0 0
  %460 = vmatprep.subr.bf16.mxu0 0
  %461 = vmatpush1.bf16.msra.mxu0 0
  %462 = vmatprep.mubr.bf16.mxu0 0
  %463 = vmatmul.mubr.bf16.gmra.mrb[0].mxu0 %v428
  %v464 = vpop.f32.mrb[0].mxu0
  %v465 = vadd.f32 %v413, %v464
  %v466 = vpop.f32.mrb[0].mxu0
  %v467 = vpop.f32.mrb[0].mxu0
  %v468 = vadd.f32 %v413, %v467
  %v469 = vpop.f32.mrb[0].mxu0
  %470 = vdwg.mxu0
  %471 = vst.msk [vmem:[%s9] sm:$0xff] %vm142, %v465
  %472 = vst.msk [vmem:[%s9 + $0x8] sm:$0xff] %vm142, %v468
  // Predicated region
  $region38: #{wavernn_forward.4} parent=0 // pred_check
    _
  $region39: #{wavernn_forward.4} parent=0 // pred_check_branch
    %474 = sbr.rel (0) target = $region41
  $region40: #{wavernn_forward.4} parent=0 // pred_region
    _
  $region41: #{wavernn_forward.4} parent=0 // pred_fallthru
    _
  // Predicated region
  $region42: #{wavernn_forward.4} parent=0 // pred_check
    _
  $region43: #{wavernn_forward.4} parent=0 // pred_check_branch
    %476 = sbr.rel (0) target = $region45
  $region44: #{wavernn_forward.4} parent=0 // pred_region
    _
  $region45: #{wavernn_forward.4} parent=0 // pred_fallthru
    _

// kernel: wavernn_forward.5
$region0: #{wavernn_forward.5}
  #allocation0 [shape = 'u32[]', space=smem, size = 0x4, offset = 0x4, fixed_abs, tag = 'smem constant byte address 0x4 - core index']
  #allocation1 [shape = 'u32[144,128]{1,0:T(1,128)}', space=vmem, size = 0x12000, scoped, tag = 'internal scratch']
  %s0 = inlined_call_operand.vmem [shape: bf16[64,17], index: 0, kind: input, shape index: {}]
  %s1 = inlined_call_operand.vmem [shape: bf16[64,8], index: 1, kind: input, shape index: {}]
  %s2 = inlined_call_operand.vmem [shape: bf16[17,32], index: 2, kind: input, shape index: {}]
  %s3 = inlined_call_operand.vmem [shape: f32[1,32], index: 3, kind: input, shape index: {}]
  %s4 = inlined_call_operand.vmem [shape: bf16[32,96], index: 4, kind: input, shape index: {}]
  %s5 = inlined_call_operand.vmem [shape: f32[1,96], index: 5, kind: input, shape index: {}]
  %s6 = inlined_call_operand.vmem [shape: bf16[8,96], index: 6, kind: input, shape index: {}]
  %s7 = inlined_call_operand.vmem [shape: f32[1,96], index: 7, kind: input, shape index: {}]
  %s8 = inlined_call_operand.vmem [shape: f32[64,32], index: 8, kind: output, shape index: {0}]
  %s9 = inlined_call_operand.vmem [shape: f32[64,96], index: 9, kind: output, shape index: {1}]
  %s10 = inlined_call_operand.vmem [shape: f32[64,96], index: 10, kind: output, shape index: {2}]
  %11 = xla_tuple %s8, %s9, %s10
  %s12 = sld [smem:[#allocation0]]
  $region58: #{wavernn_forward.5} parent=0
    _
  %s14 = ssub.s32 1, %s12
  %s15 = scalar_select 0, %s14, %s12
  // Predicated region
  $region2: #{wavernn_forward.5} parent=0 // pred_check
    _
  $region3: #{wavernn_forward.5} parent=0 // pred_check_branch
    %17 = sbr.rel (0) target = $region5
  $region4: #{wavernn_forward.5} parent=0 // pred_region
    _
  $region5: #{wavernn_forward.5} parent=0 // pred_fallthru
    _
  // Predicated region
  $region6: #{wavernn_forward.5} parent=0 // pred_check
    _
  $region7: #{wavernn_forward.5} parent=0 // pred_check_branch
    %19 = sbr.rel (0) target = $region9
  $region8: #{wavernn_forward.5} parent=0 // pred_region
    _
  $region9: #{wavernn_forward.5} parent=0 // pred_fallthru
    _
  // Predicated region
  $region10: #{wavernn_forward.5} parent=0 // pred_check
    _
  $region11: #{wavernn_forward.5} parent=0 // pred_check_branch
    %21 = sbr.rel (0) target = $region13
  $region12: #{wavernn_forward.5} parent=0 // pred_region
    _
  $region13: #{wavernn_forward.5} parent=0 // pred_fallthru
    _
  // Predicated region
  $region14: #{wavernn_forward.5} parent=0 // pred_check
    _
  $region15: #{wavernn_forward.5} parent=0 // pred_check_branch
    %23 = sbr.rel (0) target = $region17
  $region16: #{wavernn_forward.5} parent=0 // pred_region
    _
  $region17: #{wavernn_forward.5} parent=0 // pred_fallthru
    _
  // Predicated region
  $region18: #{wavernn_forward.5} parent=0 // pred_check
    _
  $region19: #{wavernn_forward.5} parent=0 // pred_check_branch
    %25 = sbr.rel (0) target = $region21
  $region20: #{wavernn_forward.5} parent=0 // pred_region
    _
  $region21: #{wavernn_forward.5} parent=0 // pred_fallthru
    _
  // Predicated region
  $region22: #{wavernn_forward.5} parent=0 // pred_check
    _
  $region23: #{wavernn_forward.5} parent=0 // pred_check_branch
    %27 = sbr.rel (0) target = $region25
  $region24: #{wavernn_forward.5} parent=0 // pred_region
    _
  $region25: #{wavernn_forward.5} parent=0 // pred_fallthru
    _
  // Predicated region
  $region26: #{wavernn_forward.5} parent=0 // pred_check
    _
  $region27: #{wavernn_forward.5} parent=0 // pred_check_branch
    %29 = sbr.rel (0) target = $region29
  $region28: #{wavernn_forward.5} parent=0 // pred_region
    _
  $region29: #{wavernn_forward.5} parent=0 // pred_fallthru
    _
  // Predicated region
  $region30: #{wavernn_forward.5} parent=0 // pred_check
    _
  $region31: #{wavernn_forward.5} parent=0 // pred_check_branch
    %31 = sbr.rel (0) target = $region33
  $region32: #{wavernn_forward.5} parent=0 // pred_region
    _
  $region33: #{wavernn_forward.5} parent=0 // pred_fallthru
    _
  %v33 = vld [vmem:[%s0] sm:$0xf]
  %v34 = vld [vmem:[%s0 + $0x4] sm:$0xf]
  %v35 = vld [vmem:[%s0 + $0x8] sm:$0xf]
  %v36 = vld [vmem:[%s0 + $0xc] sm:$0xf]
  %v37 = vld [vmem:[%s0 + $0x10] sm:$0xf]
  %v38 = vld [vmem:[%s0 + $0x14] sm:$0xf]
  %v39 = vld [vmem:[%s0 + $0x18] sm:$0xf]
  %v40 = vld [vmem:[%s0 + $0x1c] sm:$0xf]
  %v41 = vld [vmem:[%s2] sm:$0xf]
  %v42 = vld [vmem:[%s2 + $0x4] sm:$0xf]
  %v43 = vld [vmem:[%s2 + $0x8] sm:$0x1]
  %v44 = vld [vmem:[%s3] sm:$0x1]
  %v46 = vlaneseq
  %v47 = vshrl.u32 %v46, 7
  %v48 = vsub.s32 0, %v47
  %v49 = vrot.slane %v44, %v48
  %v59 = vunpack.c.l.b16 %v33
  %v60 = vunpack.c.l.b16 %v34
  %v61 = vunpack.c.l.b16 %v35
  %v62 = vunpack.c.l.b16 %v36
  %v63 = vunpack.c.l.b16 %v37
  %v64 = vunpack.c.l.b16 %v38
  %v65 = vunpack.c.l.b16 %v39
  %v66 = vunpack.c.l.b16 %v40
  %v67 = vpack.c.b16 %v60, %v59
  %v68 = vpack.c.b16 %v62, %v61
  %v69 = vpack.c.b16 %v64, %v63
  %v70 = vpack.c.b16 %v66, %v65
  %v74 = vunpack.c.l.b16 %v41
  %v75 = vunpack.c.l.b16 %v42
  %v76 = vunpack.c.l.b16 %v43
  %v77 = vpack.c.b16 %v75, %v74
  %v78 = vpack.c.b16 %v76, %v76
  %vm80 = vcmask 138240
  %v82 = vsel %vm80, %v67, 0
  %v85 = vsel %vm80, %v68, 0
  %v88 = vsel %vm80, %v69, 0
  %v91 = vsel %vm80, %v70, 0
  %vm93 = vcmask 1040384
  %v94 = vsel 0, 4294967295, 65535
  %v95 = vsel %vm93, %v94, 0
  %v97 = vand.u32 %v78, %v95
  %99 = vmatprep.subr.bf16.mxu0 0
  %100 = vmatpush1.bf16.msra.mxu0 %v77
  %101 = vmatprep.subr.bf16.mxu0 0
  %102 = vmatpush1.bf16.msra.mxu0 %v97
  %103 = vmatprep.subr.bf16.mxu0 0
  %104 = vmatpush1.bf16.msra.mxu0 0
  %105 = vmatprep.subr.bf16.mxu0 0
  %106 = vmatpush1.bf16.msra.mxu0 0
  %107 = vmatprep.subr.bf16.mxu0 0
  %108 = vmatpush1.bf16.msra.mxu0 0
  %109 = vmatprep.subr.bf16.mxu0 0
  %110 = vmatpush1.bf16.msra.mxu0 0
  %111 = vmatprep.subr.bf16.mxu0 0
  %112 = vmatpush1.bf16.msra.mxu0 0
  %113 = vmatprep.subr.bf16.mxu0 0
  %114 = vmatpush1.bf16.msra.mxu0 0
  %115 = vmatprep.subr.bf16.mxu0 0
  %116 = vmatpush1.bf16.msra.mxu0 0
  %117 = vmatprep.subr.bf16.mxu0 0
  %118 = vmatpush1.bf16.msra.mxu0 0
  %119 = vmatprep.subr.bf16.mxu0 0
  %120 = vmatpush1.bf16.msra.mxu0 0
  %121 = vmatprep.subr.bf16.mxu0 0
  %122 = vmatpush1.bf16.msra.mxu0 0
  %123 = vmatprep.subr.bf16.mxu0 0
  %124 = vmatpush1.bf16.msra.mxu0 0
  %125 = vmatprep.subr.bf16.mxu0 0
  %126 = vmatpush1.bf16.msra.mxu0 0
  %127 = vmatprep.subr.bf16.mxu0 0
  %128 = vmatpush1.bf16.msra.mxu0 0
  %129 = vmatprep.subr.bf16.mxu0 0
  %130 = vmatpush1.bf16.msra.mxu0 0
  %131 = vmatprep.mubr.bf16.mxu0 0
  %132 = vmatmul.mubr.bf16.gmra.mrb[0].mxu0 %v82
  %v133 = vpop.f32.mrb[0].mxu0
  %v134 = vadd.f32 %v49, %v133
  %v135 = vpop.f32.mrb[0].mxu0
  %v136 = vpop.f32.mrb[0].mxu0
  %v137 = vadd.f32 %v49, %v136
  %v138 = vpop.f32.mrb[0].mxu0
  %139 = vmatprep.mubr.bf16.mxu0 0
  %140 = vmatmul.mubr.bf16.gmra.mrb[0].mxu0 %v85
  %v141 = vpop.f32.mrb[0].mxu0
  %v142 = vadd.f32 %v49, %v141
  %v143 = vpop.f32.mrb[0].mxu0
  %v144 = vpop.f32.mrb[0].mxu0
  %v145 = vadd.f32 %v49, %v144
  %v146 = vpop.f32.mrb[0].mxu0
  %147 = vmatprep.mubr.bf16.mxu0 0
  %148 = vmatmul.mubr.bf16.gmra.mrb[0].mxu0 %v88
  %v149 = vpop.f32.mrb[0].mxu0
  %v150 = vadd.f32 %v49, %v149
  %v151 = vpop.f32.mrb[0].mxu0
  %v152 = vpop.f32.mrb[0].mxu0
  %v153 = vadd.f32 %v49, %v152
  %v154 = vpop.f32.mrb[0].mxu0
  %155 = vmatprep.mubr.bf16.mxu0 0
  %156 = vmatmul.mubr.bf16.gmra.mrb[0].mxu0 %v91
  %v157 = vpop.f32.mrb[0].mxu0
  %v158 = vadd.f32 %v49, %v157
  %v159 = vpop.f32.mrb[0].mxu0
  %v160 = vpop.f32.mrb[0].mxu0
  %v161 = vadd.f32 %v49, %v160
  %v162 = vpop.f32.mrb[0].mxu0
  %163 = vdwg.mxu0
  %v164 = vpack.c.bf16 %v137, %v134
  %v165 = vpack.c.bf16 %v145, %v142
  %v166 = vpack.c.bf16 %v153, %v150
  %v167 = vpack.c.bf16 %v161, %v158
  %v168 = vld [vmem:[%s4] sm:$0xf]
  %v169 = vld [vmem:[%s4 + $0x4] sm:$0xf]
  %v170 = vld [vmem:[%s4 + $0x8] sm:$0xf]
  %v171 = vld [vmem:[%s4 + $0xc] sm:$0xf]
  %v172 = vld [vmem:[%s5] sm:$0x1]
  %v174 = vlaneseq
  %v175 = vshrl.u32 %v174, 7
  %v176 = vsub.s32 0, %v175
  %v177 = vrot.slane %v172, %v176
  %v183 = vunpack.c.l.b16 %v168
  %v184 = vunpack.c.l.b16 %v169
  %v185 = vunpack.c.l.b16 %v170
  %v186 = vunpack.c.l.b16 %v171
  %v187 = vpack.c.b16 %v184, %v183
  %v188 = vpack.c.b16 %v186, %v185
  %vm191 = vcmask 261120
  %v193 = vsel %vm191, %v164, 0
  %v196 = vsel %vm191, %v165, 0
  %v199 = vsel %vm191, %v166, 0
  %v202 = vsel %vm191, %v167, 0
  %204 = vmatprep.subr.bf16.mxu0 0
  %205 = vmatpush1.bf16.msra.mxu0 %v187
  %206 = vmatprep.subr.bf16.mxu0 0
  %207 = vmatpush1.bf16.msra.mxu0 %v188
  %208 = vmatprep.subr.bf16.mxu0 0
  %209 = vmatpush1.bf16.msra.mxu0 0
  %210 = vmatprep.subr.bf16.mxu0 0
  %211 = vmatpush1.bf16.msra.mxu0 0
  %212 = vmatprep.subr.bf16.mxu0 0
  %213 = vmatpush1.bf16.msra.mxu0 0
  %214 = vmatprep.subr.bf16.mxu0 0
  %215 = vmatpush1.bf16.msra.mxu0 0
  %216 = vmatprep.subr.bf16.mxu0 0
  %217 = vmatpush1.bf16.msra.mxu0 0
  %218 = vmatprep.subr.bf16.mxu0 0
  %219 = vmatpush1.bf16.msra.mxu0 0
  %220 = vmatprep.subr.bf16.mxu0 0
  %221 = vmatpush1.bf16.msra.mxu0 0
  %222 = vmatprep.subr.bf16.mxu0 0
  %223 = vmatpush1.bf16.msra.mxu0 0
  %224 = vmatprep.subr.bf16.mxu0 0
  %225 = vmatpush1.bf16.msra.mxu0 0
  %226 = vmatprep.subr.bf16.mxu0 0
  %227 = vmatpush1.bf16.msra.mxu0 0
  %228 = vmatprep.subr.bf16.mxu0 0
  %229 = vmatpush1.bf16.msra.mxu0 0
  %230 = vmatprep.subr.bf16.mxu0 0
  %231 = vmatpush1.bf16.msra.mxu0 0
  %232 = vmatprep.subr.bf16.mxu0 0
  %233 = vmatpush1.bf16.msra.mxu0 0
  %234 = vmatprep.subr.bf16.mxu0 0
  %235 = vmatpush1.bf16.msra.mxu0 0
  %236 = vmatprep.mubr.bf16.mxu0 0
  %237 = vmatmul.mubr.bf16.gmra.mrb[0].mxu0 %v193
  %v238 = vpop.f32.mrb[0].mxu0
  %v239 = vadd.f32 %v177, %v238
  %v240 = vpop.f32.mrb[0].mxu0
  %v241 = vpop.f32.mrb[0].mxu0
  %v242 = vadd.f32 %v177, %v241
  %v243 = vpop.f32.mrb[0].mxu0
  %244 = vmatprep.mubr.bf16.mxu0 0
  %245 = vmatmul.mubr.bf16.gmra.mrb[0].mxu0 %v196
  %v246 = vpop.f32.mrb[0].mxu0
  %v247 = vadd.f32 %v177, %v246
  %v248 = vpop.f32.mrb[0].mxu0
  %v249 = vpop.f32.mrb[0].mxu0
  %v250 = vadd.f32 %v177, %v249
  %v251 = vpop.f32.mrb[0].mxu0
  %252 = vmatprep.mubr.bf16.mxu0 0
  %253 = vmatmul.mubr.bf16.gmra.mrb[0].mxu0 %v199
  %v254 = vpop.f32.mrb[0].mxu0
  %v255 = vadd.f32 %v177, %v254
  %v256 = vpop.f32.mrb[0].mxu0
  %v257 = vpop.f32.mrb[0].mxu0
  %v258 = vadd.f32 %v177, %v257
  %v259 = vpop.f32.mrb[0].mxu0
  %260 = vmatprep.mubr.bf16.mxu0 0
  %261 = vmatmul.mubr.bf16.gmra.mrb[0].mxu0 %v202
  %v262 = vpop.f32.mrb[0].mxu0
  %v263 = vadd.f32 %v177, %v262
  %v264 = vpop.f32.mrb[0].mxu0
  %v265 = vpop.f32.mrb[0].mxu0
  %v266 = vadd.f32 %v177, %v265
  %v267 = vpop.f32.mrb[0].mxu0
  %268 = vdwg.mxu0
  %v269 = vld [vmem:[%s1] sm:$0xf]
  %v270 = vld [vmem:[%s1 + $0x4] sm:$0xf]
  %v271 = vld [vmem:[%s1 + $0x8] sm:$0xf]
  %v272 = vld [vmem:[%s1 + $0xc] sm:$0xf]
  %v273 = vld [vmem:[%s1 + $0x10] sm:$0xf]
  %v274 = vld [vmem:[%s1 + $0x14] sm:$0xf]
  %v275 = vld [vmem:[%s1 + $0x18] sm:$0xf]
  %v276 = vld [vmem:[%s1 + $0x1c] sm:$0xf]
  %v277 = vld [vmem:[%s6] sm:$0xf]
  %v278 = vld [vmem:[%s7] sm:$0x1]
  %v280 = vlaneseq
  %v281 = vshrl.u32 %v280, 7
  %v282 = vsub.s32 0, %v281
  %v283 = vrot.slane %v278, %v282
  %v293 = vunpack.c.l.b16 %v269
  %v294 = vunpack.c.l.b16 %v270
  %v295 = vunpack.c.l.b16 %v271
  %v296 = vunpack.c.l.b16 %v272
  %v297 = vunpack.c.l.b16 %v273
  %v298 = vunpack.c.l.b16 %v274
  %v299 = vunpack.c.l.b16 %v275
  %v300 = vunpack.c.l.b16 %v276
  %v301 = vpack.c.b16 %v294, %v293
  %v302 = vpack.c.b16 %v296, %v295
  %v303 = vpack.c.b16 %v298, %v297
  %v304 = vpack.c.b16 %v300, %v299
  %vm305 = vcmask 64512
  %v307 = vsel %vm305, %v301, 0
  %v310 = vsel %vm305, %v302, 0
  %v313 = vsel %vm305, %v303, 0
  %v316 = vsel %vm305, %v304, 0
  %vm318 = vcmask 1043456
  %v320 = vsel %vm318, %v277, 0
  %322 = vmatprep.subr.bf16.mxu0 0
  %323 = vmatpush1.bf16.msra.mxu0 %v320
  %324 = vmatprep.subr.bf16.mxu0 0
  %325 = vmatpush1.bf16.msra.mxu0 0
  %326 = vmatprep.subr.bf16.mxu0 0
  %327 = vmatpush1.bf16.msra.mxu0 0
  %328 = vmatprep.subr.bf16.mxu0 0
  %329 = vmatpush1.bf16.msra.mxu0 0
  %330 = vmatprep.subr.bf16.mxu0 0
  %331 = vmatpush1.bf16.msra.mxu0 0
  %332 = vmatprep.subr.bf16.mxu0 0
  %333 = vmatpush1.bf16.msra.mxu0 0
  %334 = vmatprep.subr.bf16.mxu0 0
  %335 = vmatpush1.bf16.msra.mxu0 0
  %336 = vmatprep.subr.bf16.mxu0 0
  %337 = vmatpush1.bf16.msra.mxu0 0
  %338 = vmatprep.subr.bf16.mxu0 0
  %339 = vmatpush1.bf16.msra.mxu0 0
  %340 = vmatprep.subr.bf16.mxu0 0
  %341 = vmatpush1.bf16.msra.mxu0 0
  %342 = vmatprep.subr.bf16.mxu0 0
  %343 = vmatpush1.bf16.msra.mxu0 0
  %344 = vmatprep.subr.bf16.mxu0 0
  %345 = vmatpush1.bf16.msra.mxu0 0
  %346 = vmatprep.subr.bf16.mxu0 0
  %347 = vmatpush1.bf16.msra.mxu0 0
  %348 = vmatprep.subr.bf16.mxu0 0
  %349 = vmatpush1.bf16.msra.mxu0 0
  %350 = vmatprep.subr.bf16.mxu0 0
  %351 = vmatpush1.bf16.msra.mxu0 0
  %352 = vmatprep.subr.bf16.mxu0 0
  %353 = vmatpush1.bf16.msra.mxu0 0
  %354 = vmatprep.mubr.bf16.mxu0 0
  %355 = vmatmul.mubr.bf16.gmra.mrb[0].mxu0 %v307
  %v356 = vpop.f32.mrb[0].mxu0
  %v357 = vadd.f32 %v283, %v356
  %v358 = vpop.f32.mrb[0].mxu0
  %v359 = vpop.f32.mrb[0].mxu0
  %v360 = vadd.f32 %v283, %v359
  %v361 = vpop.f32.mrb[0].mxu0
  %362 = vmatprep.mubr.bf16.mxu0 0
  %363 = vmatmul.mubr.bf16.gmra.mrb[0].mxu0 %v310
  %v364 = vpop.f32.mrb[0].mxu0
  %v365 = vadd.f32 %v283, %v364
  %v366 = vpop.f32.mrb[0].mxu0
  %v367 = vpop.f32.mrb[0].mxu0
  %v368 = vadd.f32 %v283, %v367
  %v369 = vpop.f32.mrb[0].mxu0
  %370 = vmatprep.mubr.bf16.mxu0 0
  %371 = vmatmul.mubr.bf16.gmra.mrb[0].mxu0 %v313
  %v372 = vpop.f32.mrb[0].mxu0
  %v373 = vadd.f32 %v283, %v372
  %v374 = vpop.f32.mrb[0].mxu0
  %v375 = vpop.f32.mrb[0].mxu0
  %v376 = vadd.f32 %v283, %v375
  %v377 = vpop.f32.mrb[0].mxu0
  %378 = vmatprep.mubr.bf16.mxu0 0
  %379 = vmatmul.mubr.bf16.gmra.mrb[0].mxu0 %v316
  %v380 = vpop.f32.mrb[0].mxu0
  %v381 = vadd.f32 %v283, %v380
  %v382 = vpop.f32.mrb[0].mxu0
  %v383 = vpop.f32.mrb[0].mxu0
  %v384 = vadd.f32 %v283, %v383
  %v385 = vpop.f32.mrb[0].mxu0
  %386 = vdwg.mxu0
  %387 = vst.msk [vmem:[%s8] sm:$0xff] %vm191, %v134
  %388 = vst.msk [vmem:[%s8 + $0x8] sm:$0xff] %vm191, %v137
  %389 = vst.msk [vmem:[%s8 + $0x10] sm:$0xff] %vm191, %v142
  %390 = vst.msk [vmem:[%s8 + $0x18] sm:$0xff] %vm191, %v145
  %391 = vst.msk [vmem:[%s8 + $0x20] sm:$0xff] %vm191, %v150
  %392 = vst.msk [vmem:[%s8 + $0x28] sm:$0xff] %vm191, %v153
  %393 = vst.msk [vmem:[%s8 + $0x30] sm:$0xff] %vm191, %v158
  %394 = vst.msk [vmem:[%s8 + $0x38] sm:$0xff] %vm191, %v161
  %vm395 = vcmask 785408
  %396 = vst.msk [vmem:[%s9] sm:$0xff] %vm395, %v239
  %397 = vst.msk [vmem:[%s9 + $0x8] sm:$0xff] %vm395, %v242
  %398 = vst.msk [vmem:[%s9 + $0x10] sm:$0xff] %vm395, %v247
  %399 = vst.msk [vmem:[%s9 + $0x18] sm:$0xff] %vm395, %v250
  %400 = vst.msk [vmem:[%s9 + $0x20] sm:$0xff] %vm395, %v255
  %401 = vst.msk [vmem:[%s9 + $0x28] sm:$0xff] %vm395, %v258
  %402 = vst.msk [vmem:[%s9 + $0x30] sm:$0xff] %vm395, %v263
  %403 = vst.msk [vmem:[%s9 + $0x38] sm:$0xff] %vm395, %v266
  %404 = vst.msk [vmem:[%s10] sm:$0xff] %vm395, %v357
  %405 = vst.msk [vmem:[%s10 + $0x8] sm:$0xff] %vm395, %v360
  %406 = vst.msk [vmem:[%s10 + $0x10] sm:$0xff] %vm395, %v365
  %407 = vst.msk [vmem:[%s10 + $0x18] sm:$0xff] %vm395, %v368
  %408 = vst.msk [vmem:[%s10 + $0x20] sm:$0xff] %vm395, %v373
  %409 = vst.msk [vmem:[%s10 + $0x28] sm:$0xff] %vm395, %v376
  %410 = vst.msk [vmem:[%s10 + $0x30] sm:$0xff] %vm395, %v381
  %411 = vst.msk [vmem:[%s10 + $0x38] sm:$0xff] %vm395, %v384
  // Predicated region
  $region34: #{wavernn_forward.5} parent=0 // pred_check
    _
  $region35: #{wavernn_forward.5} parent=0 // pred_check_branch
    %413 = sbr.rel (0) target = $region37
  $region36: #{wavernn_forward.5} parent=0 // pred_region
    _
  $region37: #{wavernn_forward.5} parent=0 // pred_fallthru
    _
  // Predicated region
  $region38: #{wavernn_forward.5} parent=0 // pred_check
    _
  $region39: #{wavernn_forward.5} parent=0 // pred_check_branch
    %415 = sbr.rel (0) target = $region41
  $region40: #{wavernn_forward.5} parent=0 // pred_region
    _
  $region41: #{wavernn_forward.5} parent=0 // pred_fallthru
    _
  // Predicated region
  $region42: #{wavernn_forward.5} parent=0 // pred_check
    _
  $region43: #{wavernn_forward.5} parent=0 // pred_check_branch
    %417 = sbr.rel (0) target = $region45
  $region44: #{wavernn_forward.5} parent=0 // pred_region
    _
  $region45: #{wavernn_forward.5} parent=0 // pred_fallthru
    _
  // Predicated region
  $region46: #{wavernn_forward.5} parent=0 // pred_check
    _
  $region47: #{wavernn_forward.5} parent=0 // pred_check_branch
    %419 = sbr.rel (0) target = $region49
  $region48: #{wavernn_forward.5} parent=0 // pred_region
    _
  $region49: #{wavernn_forward.5} parent=0 // pred_fallthru
    _
  // Predicated region
  $region50: #{wavernn_forward.5} parent=0 // pred_check
    _
  $region51: #{wavernn_forward.5} parent=0 // pred_check_branch
    %421 = sbr.rel (0) target = $region53
  $region52: #{wavernn_forward.5} parent=0 // pred_region
    _
  $region53: #{wavernn_forward.5} parent=0 // pred_fallthru
    _
  // Predicated region
  $region54: #{wavernn_forward.5} parent=0 // pred_check
    _
  $region55: #{wavernn_forward.5} parent=0 // pred_check_branch
    %423 = sbr.rel (0) target = $region57
  $region56: #{wavernn_forward.5} parent=0 // pred_region
    _
  $region57: #{wavernn_forward.5} parent=0 // pred_fallthru
    _

// kernel: wavernn_forward.7
$region0: #{wavernn_forward.7}
  #allocation0 [shape = 'u32[]', space=smem, size = 0x4, offset = 0x4, fixed_abs, tag = 'smem constant byte address 0x4 - core index']
  #allocation1 [shape = 'u32[144,128]{1,0:T(1,128)}', space=vmem, size = 0x12000, scoped, tag = 'internal scratch']
  %s0 = inlined_call_operand.vmem [shape: bf16[64,32], index: 0, kind: input, shape index: {}]
  %s1 = inlined_call_operand.vmem [shape: bf16[64,8], index: 1, kind: input, shape index: {}]
  %s2 = inlined_call_operand.vmem [shape: bf16[64,8], index: 2, kind: input, shape index: {}]
  %s3 = inlined_call_operand.vmem [shape: bf16[32,32], index: 3, kind: input, shape index: {}]
  %s4 = inlined_call_operand.vmem [shape: bf16[8,32], index: 4, kind: input, shape index: {}]
  %s5 = inlined_call_operand.vmem [shape: f32[1,32], index: 5, kind: input, shape index: {}]
  %s6 = inlined_call_operand.vmem [shape: bf16[32,32], index: 6, kind: input, shape index: {}]
  %s7 = inlined_call_operand.vmem [shape: bf16[8,32], index: 7, kind: input, shape index: {}]
  %s8 = inlined_call_operand.vmem [shape: f32[1,32], index: 8, kind: input, shape index: {}]
  %s9 = inlined_call_operand.vmem [shape: bf16[32,30], index: 9, kind: input, shape index: {}]
  %s10 = inlined_call_operand.vmem [shape: f32[1,30], index: 10, kind: input, shape index: {}]
  %s11 = inlined_call_operand.vmem [shape: f32[64,30], index: 11, kind: output, shape index: {}]
  %s12 = sld [smem:[#allocation0]]
  $region54: #{wavernn_forward.7} parent=0
    _
  %s14 = ssub.s32 1, %s12
  %s15 = scalar_select 0, %s14, %s12
  // Predicated region
  $region2: #{wavernn_forward.7} parent=0 // pred_check
    _
  $region3: #{wavernn_forward.7} parent=0 // pred_check_branch
    %17 = sbr.rel (0) target = $region5
  $region4: #{wavernn_forward.7} parent=0 // pred_region
    _
  $region5: #{wavernn_forward.7} parent=0 // pred_fallthru
    _
  // Predicated region
  $region6: #{wavernn_forward.7} parent=0 // pred_check
    _
  $region7: #{wavernn_forward.7} parent=0 // pred_check_branch
    %19 = sbr.rel (0) target = $region9
  $region8: #{wavernn_forward.7} parent=0 // pred_region
    _
  $region9: #{wavernn_forward.7} parent=0 // pred_fallthru
    _
  // Predicated region
  $region10: #{wavernn_forward.7} parent=0 // pred_check
    _
  $region11: #{wavernn_forward.7} parent=0 // pred_check_branch
    %21 = sbr.rel (0) target = $region13
  $region12: #{wavernn_forward.7} parent=0 // pred_region
    _
  $region13: #{wavernn_forward.7} parent=0 // pred_fallthru
    _
  // Predicated region
  $region14: #{wavernn_forward.7} parent=0 // pred_check
    _
  $region15: #{wavernn_forward.7} parent=0 // pred_check_branch
    %23 = sbr.rel (0) target = $region17
  $region16: #{wavernn_forward.7} parent=0 // pred_region
    _
  $region17: #{wavernn_forward.7} parent=0 // pred_fallthru
    _
  // Predicated region
  $region18: #{wavernn_forward.7} parent=0 // pred_check
    _
  $region19: #{wavernn_forward.7} parent=0 // pred_check_branch
    %25 = sbr.rel (0) target = $region21
  $region20: #{wavernn_forward.7} parent=0 // pred_region
    _
  $region21: #{wavernn_forward.7} parent=0 // pred_fallthru
    _
  // Predicated region
  $region22: #{wavernn_forward.7} parent=0 // pred_check
    _
  $region23: #{wavernn_forward.7} parent=0 // pred_check_branch
    %27 = sbr.rel (0) target = $region25
  $region24: #{wavernn_forward.7} parent=0 // pred_region
    _
  $region25: #{wavernn_forward.7} parent=0 // pred_fallthru
    _
  // Predicated region
  $region26: #{wavernn_forward.7} parent=0 // pred_check
    _
  $region27: #{wavernn_forward.7} parent=0 // pred_check_branch
    %29 = sbr.rel (0) target = $region29
  $region28: #{wavernn_forward.7} parent=0 // pred_region
    _
  $region29: #{wavernn_forward.7} parent=0 // pred_fallthru
    _
  // Predicated region
  $region30: #{wavernn_forward.7} parent=0 // pred_check
    _
  $region31: #{wavernn_forward.7} parent=0 // pred_check_branch
    %31 = sbr.rel (0) target = $region33
  $region32: #{wavernn_forward.7} parent=0 // pred_region
    _
  $region33: #{wavernn_forward.7} parent=0 // pred_fallthru
    _
  // Predicated region
  $region34: #{wavernn_forward.7} parent=0 // pred_check
    _
  $region35: #{wavernn_forward.7} parent=0 // pred_check_branch
    %33 = sbr.rel (0) target = $region37
  $region36: #{wavernn_forward.7} parent=0 // pred_region
    _
  $region37: #{wavernn_forward.7} parent=0 // pred_fallthru
    _
  // Predicated region
  $region38: #{wavernn_forward.7} parent=0 // pred_check
    _
  $region39: #{wavernn_forward.7} parent=0 // pred_check_branch
    %35 = sbr.rel (0) target = $region41
  $region40: #{wavernn_forward.7} parent=0 // pred_region
    _
  $region41: #{wavernn_forward.7} parent=0 // pred_fallthru
    _
  // Predicated region
  $region42: #{wavernn_forward.7} parent=0 // pred_check
    _
  $region43: #{wavernn_forward.7} parent=0 // pred_check_branch
    %37 = sbr.rel (0) target = $region45
  $region44: #{wavernn_forward.7} parent=0 // pred_region
    _
  $region45: #{wavernn_forward.7} parent=0 // pred_fallthru
    _
  %v39 = vld [vmem:[%s0] sm:$0xf]
  %v40 = vld [vmem:[%s0 + $0x4] sm:$0xf]
  %v41 = vld [vmem:[%s0 + $0x8] sm:$0xf]
  %v42 = vld [vmem:[%s0 + $0xc] sm:$0xf]
  %v43 = vld [vmem:[%s0 + $0x10] sm:$0xf]
  %v44 = vld [vmem:[%s0 + $0x14] sm:$0xf]
  %v45 = vld [vmem:[%s0 + $0x18] sm:$0xf]
  %v46 = vld [vmem:[%s0 + $0x1c] sm:$0xf]
  %v47 = vld [vmem:[%s3] sm:$0xf]
  %v48 = vld [vmem:[%s3 + $0x4] sm:$0xf]
  %v49 = vld [vmem:[%s3 + $0x8] sm:$0xf]
  %v50 = vld [vmem:[%s3 + $0xc] sm:$0xf]
  %v51 = vld [vmem:[%s1] sm:$0xf]
  %v52 = vld [vmem:[%s1 + $0x4] sm:$0xf]
  %v53 = vld [vmem:[%s1 + $0x8] sm:$0xf]
  %v54 = vld [vmem:[%s1 + $0xc] sm:$0xf]
  %v55 = vld [vmem:[%s1 + $0x10] sm:$0xf]
  %v56 = vld [vmem:[%s1 + $0x14] sm:$0xf]
  %v57 = vld [vmem:[%s1 + $0x18] sm:$0xf]
  %v58 = vld [vmem:[%s1 + $0x1c] sm:$0xf]
  %v59 = vld [vmem:[%s4] sm:$0xf]
  %v68 = vunpack.c.l.b16 %v51
  %v69 = vunpack.c.l.b16 %v52
  %v70 = vunpack.c.l.b16 %v53
  %v71 = vunpack.c.l.b16 %v54
  %v72 = vunpack.c.l.b16 %v55
  %v73 = vunpack.c.l.b16 %v56
  %v74 = vunpack.c.l.b16 %v57
  %v75 = vunpack.c.l.b16 %v58
  %v76 = vpack.c.b16 %v69, %v68
  %v77 = vpack.c.b16 %v71, %v70
  %v78 = vpack.c.b16 %v73, %v72
  %v79 = vpack.c.b16 %v75, %v74
  %vm80 = vcmask 64512
  %v82 = vsel %vm80, %v76, 0
  %v85 = vsel %vm80, %v77, 0
  %v88 = vsel %vm80, %v78, 0
  %v91 = vsel %vm80, %v79, 0
  %vm93 = vcmask 1043456
  %v95 = vsel %vm93, %v59, 0
  %97 = vmatprep.subr.bf16.mxu0 0
  %98 = vmatpush1.bf16.msra.mxu0 %v95
  %99 = vmatprep.subr.bf16.mxu0 0
  %100 = vmatpush1.bf16.msra.mxu0 0
  %101 = vmatprep.subr.bf16.mxu0 0
  %102 = vmatpush1.bf16.msra.mxu0 0
  %103 = vmatprep.subr.bf16.mxu0 0
  %104 = vmatpush1.bf16.msra.mxu0 0
  %105 = vmatprep.subr.bf16.mxu0 0
  %106 = vmatpush1.bf16.msra.mxu0 0
  %107 = vmatprep.subr.bf16.mxu0 0
  %108 = vmatpush1.bf16.msra.mxu0 0
  %109 = vmatprep.subr.bf16.mxu0 0
  %110 = vmatpush1.bf16.msra.mxu0 0
  %111 = vmatprep.subr.bf16.mxu0 0
  %112 = vmatpush1.bf16.msra.mxu0 0
  %113 = vmatprep.subr.bf16.mxu0 0
  %114 = vmatpush1.bf16.msra.mxu0 0
  %115 = vmatprep.subr.bf16.mxu0 0
  %116 = vmatpush1.bf16.msra.mxu0 0
  %117 = vmatprep.subr.bf16.mxu0 0
  %118 = vmatpush1.bf16.msra.mxu0 0
  %119 = vmatprep.subr.bf16.mxu0 0
  %120 = vmatpush1.bf16.msra.mxu0 0
  %121 = vmatprep.subr.bf16.mxu0 0
  %122 = vmatpush1.bf16.msra.mxu0 0
  %123 = vmatprep.subr.bf16.mxu0 0
  %124 = vmatpush1.bf16.msra.mxu0 0
  %125 = vmatprep.subr.bf16.mxu0 0
  %126 = vmatpush1.bf16.msra.mxu0 0
  %127 = vmatprep.subr.bf16.mxu0 0
  %128 = vmatpush1.bf16.msra.mxu0 0
  %129 = vmatprep.mubr.bf16.mxu0 0
  %130 = vmatmul.mubr.bf16.gmra.mrb[0].mxu0 %v82
  %v131 = vpop.f32.mrb[0].mxu0
  %v132 = vadd.f32 0.0, %v131
  %v133 = vpop.f32.mrb[0].mxu0
  %v134 = vpop.f32.mrb[0].mxu0
  %v135 = vadd.f32 0.0, %v134
  %v136 = vpop.f32.mrb[0].mxu0
  %137 = vmatprep.mubr.bf16.mxu0 0
  %138 = vmatmul.mubr.bf16.gmra.mrb[0].mxu0 %v85
  %v139 = vpop.f32.mrb[0].mxu0
  %v140 = vadd.f32 0.0, %v139
  %v141 = vpop.f32.mrb[0].mxu0
  %v142 = vpop.f32.mrb[0].mxu0
  %v143 = vadd.f32 0.0, %v142
  %v144 = vpop.f32.mrb[0].mxu0
  %145 = vmatprep.mubr.bf16.mxu0 0
  %146 = vmatmul.mubr.bf16.gmra.mrb[0].mxu0 %v88
  %v147 = vpop.f32.mrb[0].mxu0
  %v148 = vadd.f32 0.0, %v147
  %v149 = vpop.f32.mrb[0].mxu0
  %v150 = vpop.f32.mrb[0].mxu0
  %v151 = vadd.f32 0.0, %v150
  %v152 = vpop.f32.mrb[0].mxu0
  %153 = vmatprep.mubr.bf16.mxu0 0
  %154 = vmatmul.mubr.bf16.gmra.mrb[0].mxu0 %v91
  %v155 = vpop.f32.mrb[0].mxu0
  %v156 = vadd.f32 0.0, %v155
  %v157 = vpop.f32.mrb[0].mxu0
  %v158 = vpop.f32.mrb[0].mxu0
  %v159 = vadd.f32 0.0, %v158
  %v160 = vpop.f32.mrb[0].mxu0
  %161 = vdwg.mxu0
  %v170 = vunpack.c.l.b16 %v39
  %v171 = vunpack.c.l.b16 %v40
  %v172 = vunpack.c.l.b16 %v41
  %v173 = vunpack.c.l.b16 %v42
  %v174 = vunpack.c.l.b16 %v43
  %v175 = vunpack.c.l.b16 %v44
  %v176 = vunpack.c.l.b16 %v45
  %v177 = vunpack.c.l.b16 %v46
  %v178 = vpack.c.b16 %v171, %v170
  %v179 = vpack.c.b16 %v173, %v172
  %v180 = vpack.c.b16 %v175, %v174
  %v181 = vpack.c.b16 %v177, %v176
  %v186 = vunpack.c.l.b16 %v47
  %v187 = vunpack.c.l.b16 %v48
  %v188 = vunpack.c.l.b16 %v49
  %v189 = vunpack.c.l.b16 %v50
  %v190 = vpack.c.b16 %v187, %v186
  %v191 = vpack.c.b16 %v189, %v188
  %vm194 = vcmask 261120
  %v196 = vsel %vm194, %v178, 0
  %v199 = vsel %vm194, %v179, 0
  %v202 = vsel %vm194, %v180, 0
  %v205 = vsel %vm194, %v181, 0
  %207 = vmatprep.subr.bf16.mxu0 0
  %208 = vmatpush1.bf16.msra.mxu0 %v190
  %209 = vmatprep.subr.bf16.mxu0 0
  %210 = vmatpush1.bf16.msra.mxu0 %v191
  %211 = vmatprep.subr.bf16.mxu0 0
  %212 = vmatpush1.bf16.msra.mxu0 0
  %213 = vmatprep.subr.bf16.mxu0 0
  %214 = vmatpush1.bf16.msra.mxu0 0
  %215 = vmatprep.subr.bf16.mxu0 0
  %216 = vmatpush1.bf16.msra.mxu0 0
  %217 = vmatprep.subr.bf16.mxu0 0
  %218 = vmatpush1.bf16.msra.mxu0 0
  %219 = vmatprep.subr.bf16.mxu0 0
  %220 = vmatpush1.bf16.msra.mxu0 0
  %221 = vmatprep.subr.bf16.mxu0 0
  %222 = vmatpush1.bf16.msra.mxu0 0
  %223 = vmatprep.subr.bf16.mxu0 0
  %224 = vmatpush1.bf16.msra.mxu0 0
  %225 = vmatprep.subr.bf16.mxu0 0
  %226 = vmatpush1.bf16.msra.mxu0 0
  %227 = vmatprep.subr.bf16.mxu0 0
  %228 = vmatpush1.bf16.msra.mxu0 0
  %229 = vmatprep.subr.bf16.mxu0 0
  %230 = vmatpush1.bf16.msra.mxu0 0
  %231 = vmatprep.subr.bf16.mxu0 0
  %232 = vmatpush1.bf16.msra.mxu0 0
  %233 = vmatprep.subr.bf16.mxu0 0
  %234 = vmatpush1.bf16.msra.mxu0 0
  %235 = vmatprep.subr.bf16.mxu0 0
  %236 = vmatpush1.bf16.msra.mxu0 0
  %237 = vmatprep.subr.bf16.mxu0 0
  %238 = vmatpush1.bf16.msra.mxu0 0
  %239 = vmatprep.mubr.bf16.mxu0 0
  %240 = vmatmul.mubr.bf16.gmra.mrb[0].mxu0 %v196
  %v241 = vpop.f32.mrb[0].mxu0
  %v242 = vadd.f32 %v132, %v241
  %v243 = vpop.f32.mrb[0].mxu0
  %v244 = vpop.f32.mrb[0].mxu0
  %v245 = vadd.f32 %v135, %v244
  %v246 = vpop.f32.mrb[0].mxu0
  %247 = vmatprep.mubr.bf16.mxu0 0
  %248 = vmatmul.mubr.bf16.gmra.mrb[0].mxu0 %v199
  %v249 = vpop.f32.mrb[0].mxu0
  %v250 = vadd.f32 %v140, %v249
  %v251 = vpop.f32.mrb[0].mxu0
  %v252 = vpop.f32.mrb[0].mxu0
  %v253 = vadd.f32 %v143, %v252
  %v254 = vpop.f32.mrb[0].mxu0
  %255 = vmatprep.mubr.bf16.mxu0 0
  %256 = vmatmul.mubr.bf16.gmra.mrb[0].mxu0 %v202
  %v257 = vpop.f32.mrb[0].mxu0
  %v258 = vadd.f32 %v148, %v257
  %v259 = vpop.f32.mrb[0].mxu0
  %v260 = vpop.f32.mrb[0].mxu0
  %v261 = vadd.f32 %v151, %v260
  %v262 = vpop.f32.mrb[0].mxu0
  %263 = vmatprep.mubr.bf16.mxu0 0
  %264 = vmatmul.mubr.bf16.gmra.mrb[0].mxu0 %v205
  %v265 = vpop.f32.mrb[0].mxu0
  %v266 = vadd.f32 %v156, %v265
  %v267 = vpop.f32.mrb[0].mxu0
  %v268 = vpop.f32.mrb[0].mxu0
  %v269 = vadd.f32 %v159, %v268
  %v270 = vpop.f32.mrb[0].mxu0
  %271 = vdwg.mxu0
  %v272 = vld [vmem:[%s5] sm:$0x1]
  %v274 = vlaneseq
  %v275 = vshrl.u32 %v274, 7
  %v276 = vsub.s32 0, %v275
  %v277 = vrot.slane %v272, %v276
  %v279 = vadd.f32 %v242, %v277
  %v280 = vadd.f32 %v245, %v277
  %v281 = vadd.f32 %v250, %v277
  %v282 = vadd.f32 %v253, %v277
  %v283 = vadd.f32 %v258, %v277
  %v284 = vadd.f32 %v261, %v277
  %v285 = vadd.f32 %v266, %v277
  %v286 = vadd.f32 %v269, %v277
  %v287 = vmax.f32 %v279, 0.0
  %v288 = vmax.f32 %v280, 0.0
  %v289 = vmax.f32 %v281, 0.0
  %v290 = vmax.f32 %v282, 0.0
  %v291 = vmax.f32 %v283, 0.0
  %v292 = vmax.f32 %v284, 0.0
  %v293 = vmax.f32 %v285, 0.0
  %v294 = vmax.f32 %v286, 0.0
  %v295 = vpack.c.bf16 %v288, %v287
  %v296 = vpack.c.bf16 %v290, %v289
  %v297 = vpack.c.bf16 %v292, %v291
  %v298 = vpack.c.bf16 %v294, %v293
  %v299 = vld [vmem:[%s6] sm:$0xf]
  %v300 = vld [vmem:[%s6 + $0x4] sm:$0xf]
  %v301 = vld [vmem:[%s6 + $0x8] sm:$0xf]
  %v302 = vld [vmem:[%s6 + $0xc] sm:$0xf]
  %v303 = vld [vmem:[%s2] sm:$0xf]
  %v304 = vld [vmem:[%s2 + $0x4] sm:$0xf]
  %v305 = vld [vmem:[%s2 + $0x8] sm:$0xf]
  %v306 = vld [vmem:[%s2 + $0xc] sm:$0xf]
  %v307 = vld [vmem:[%s2 + $0x10] sm:$0xf]
  %v308 = vld [vmem:[%s2 + $0x14] sm:$0xf]
  %v309 = vld [vmem:[%s2 + $0x18] sm:$0xf]
  %v310 = vld [vmem:[%s2 + $0x1c] sm:$0xf]
  %v311 = vld [vmem:[%s7] sm:$0xf]
  %v320 = vunpack.c.l.b16 %v303
  %v321 = vunpack.c.l.b16 %v304
  %v322 = vunpack.c.l.b16 %v305
  %v323 = vunpack.c.l.b16 %v306
  %v324 = vunpack.c.l.b16 %v307
  %v325 = vunpack.c.l.b16 %v308
  %v326 = vunpack.c.l.b16 %v309
  %v327 = vunpack.c.l.b16 %v310
  %v328 = vpack.c.b16 %v321, %v320
  %v329 = vpack.c.b16 %v323, %v322
  %v330 = vpack.c.b16 %v325, %v324
  %v331 = vpack.c.b16 %v327, %v326
  %v333 = vsel %vm80, %v328, 0
  %v336 = vsel %vm80, %v329, 0
  %v339 = vsel %vm80, %v330, 0
  %v342 = vsel %vm80, %v331, 0
  %v345 = vsel %vm93, %v311, 0
  %347 = vmatprep.subr.bf16.mxu0 0
  %348 = vmatpush1.bf16.msra.mxu0 %v345
  %349 = vmatprep.subr.bf16.mxu0 0
  %350 = vmatpush1.bf16.msra.mxu0 0
  %351 = vmatprep.subr.bf16.mxu0 0
  %352 = vmatpush1.bf16.msra.mxu0 0
  %353 = vmatprep.subr.bf16.mxu0 0
  %354 = vmatpush1.bf16.msra.mxu0 0
  %355 = vmatprep.subr.bf16.mxu0 0
  %356 = vmatpush1.bf16.msra.mxu0 0
  %357 = vmatprep.subr.bf16.mxu0 0
  %358 = vmatpush1.bf16.msra.mxu0 0
  %359 = vmatprep.subr.bf16.mxu0 0
  %360 = vmatpush1.bf16.msra.mxu0 0
  %361 = vmatprep.subr.bf16.mxu0 0
  %362 = vmatpush1.bf16.msra.mxu0 0
  %363 = vmatprep.subr.bf16.mxu0 0
  %364 = vmatpush1.bf16.msra.mxu0 0
  %365 = vmatprep.subr.bf16.mxu0 0
  %366 = vmatpush1.bf16.msra.mxu0 0
  %367 = vmatprep.subr.bf16.mxu0 0
  %368 = vmatpush1.bf16.msra.mxu0 0
  %369 = vmatprep.subr.bf16.mxu0 0
  %370 = vmatpush1.bf16.msra.mxu0 0
  %371 = vmatprep.subr.bf16.mxu0 0
  %372 = vmatpush1.bf16.msra.mxu0 0
  %373 = vmatprep.subr.bf16.mxu0 0
  %374 = vmatpush1.bf16.msra.mxu0 0
  %375 = vmatprep.subr.bf16.mxu0 0
  %376 = vmatpush1.bf16.msra.mxu0 0
  %377 = vmatprep.subr.bf16.mxu0 0
  %378 = vmatpush1.bf16.msra.mxu0 0
  %379 = vmatprep.mubr.bf16.mxu0 0
  %380 = vmatmul.mubr.bf16.gmra.mrb[0].mxu0 %v333
  %v381 = vpop.f32.mrb[0].mxu0
  %v382 = vadd.f32 0.0, %v381
  %v383 = vpop.f32.mrb[0].mxu0
  %v384 = vpop.f32.mrb[0].mxu0
  %v385 = vadd.f32 0.0, %v384
  %v386 = vpop.f32.mrb[0].mxu0
  %387 = vmatprep.mubr.bf16.mxu0 0
  %388 = vmatmul.mubr.bf16.gmra.mrb[0].mxu0 %v336
  %v389 = vpop.f32.mrb[0].mxu0
  %v390 = vadd.f32 0.0, %v389
  %v391 = vpop.f32.mrb[0].mxu0
  %v392 = vpop.f32.mrb[0].mxu0
  %v393 = vadd.f32 0.0, %v392
  %v394 = vpop.f32.mrb[0].mxu0
  %395 = vmatprep.mubr.bf16.mxu0 0
  %396 = vmatmul.mubr.bf16.gmra.mrb[0].mxu0 %v339
  %v397 = vpop.f32.mrb[0].mxu0
  %v398 = vadd.f32 0.0, %v397
  %v399 = vpop.f32.mrb[0].mxu0
  %v400 = vpop.f32.mrb[0].mxu0
  %v401 = vadd.f32 0.0, %v400
  %v402 = vpop.f32.mrb[0].mxu0
  %403 = vmatprep.mubr.bf16.mxu0 0
  %404 = vmatmul.mubr.bf16.gmra.mrb[0].mxu0 %v342
  %v405 = vpop.f32.mrb[0].mxu0
  %v406 = vadd.f32 0.0, %v405
  %v407 = vpop.f32.mrb[0].mxu0
  %v408 = vpop.f32.mrb[0].mxu0
  %v409 = vadd.f32 0.0, %v408
  %v410 = vpop.f32.mrb[0].mxu0
  %411 = vdwg.mxu0
  %v416 = vunpack.c.l.b16 %v299
  %v417 = vunpack.c.l.b16 %v300
  %v418 = vunpack.c.l.b16 %v301
  %v419 = vunpack.c.l.b16 %v302
  %v420 = vpack.c.b16 %v417, %v416
  %v421 = vpack.c.b16 %v419, %v418
  %v425 = vsel %vm194, %v295, 0
  %v428 = vsel %vm194, %v296, 0
  %v431 = vsel %vm194, %v297, 0
  %v434 = vsel %vm194, %v298, 0
  %436 = vmatprep.subr.bf16.mxu0 0
  %437 = vmatpush1.bf16.msra.mxu0 %v420
  %438 = vmatprep.subr.bf16.mxu0 0
  %439 = vmatpush1.bf16.msra.mxu0 %v421
  %440 = vmatprep.subr.bf16.mxu0 0
  %441 = vmatpush1.bf16.msra.mxu0 0
  %442 = vmatprep.subr.bf16.mxu0 0
  %443 = vmatpush1.bf16.msra.mxu0 0
  %444 = vmatprep.subr.bf16.mxu0 0
  %445 = vmatpush1.bf16.msra.mxu0 0
  %446 = vmatprep.subr.bf16.mxu0 0
  %447 = vmatpush1.bf16.msra.mxu0 0
  %448 = vmatprep.subr.bf16.mxu0 0
  %449 = vmatpush1.bf16.msra.mxu0 0
  %450 = vmatprep.subr.bf16.mxu0 0
  %451 = vmatpush1.bf16.msra.mxu0 0
  %452 = vmatprep.subr.bf16.mxu0 0
  %453 = vmatpush1.bf16.msra.mxu0 0
  %454 = vmatprep.subr.bf16.mxu0 0
  %455 = vmatpush1.bf16.msra.mxu0 0
  %456 = vmatprep.subr.bf16.mxu0 0
  %457 = vmatpush1.bf16.msra.mxu0 0
  %458 = vmatprep.subr.bf16.mxu0 0
  %459 = vmatpush1.bf16.msra.mxu0 0
  %460 = vmatprep.subr.bf16.mxu0 0
  %461 = vmatpush1.bf16.msra.mxu0 0
  %462 = vmatprep.subr.bf16.mxu0 0
  %463 = vmatpush1.bf16.msra.mxu0 0
  %464 = vmatprep.subr.bf16.mxu0 0
  %465 = vmatpush1.bf16.msra.mxu0 0
  %466 = vmatprep.subr.bf16.mxu0 0
  %467 = vmatpush1.bf16.msra.mxu0 0
  %468 = vmatprep.mubr.bf16.mxu0 0
  %469 = vmatmul.mubr.bf16.gmra.mrb[0].mxu0 %v425
  %v470 = vpop.f32.mrb[0].mxu0
  %v471 = vadd.f32 %v382, %v470
  %v472 = vpop.f32.mrb[0].mxu0
  %v473 = vpop.f32.mrb[0].mxu0
  %v474 = vadd.f32 %v385, %v473
  %v475 = vpop.f32.mrb[0].mxu0
  %476 = vmatprep.mubr.bf16.mxu0 0
  %477 = vmatmul.mubr.bf16.gmra.mrb[0].mxu0 %v428
  %v478 = vpop.f32.mrb[0].mxu0
  %v479 = vadd.f32 %v390, %v478
  %v480 = vpop.f32.mrb[0].mxu0
  %v481 = vpop.f32.mrb[0].mxu0
  %v482 = vadd.f32 %v393, %v481
  %v483 = vpop.f32.mrb[0].mxu0
  %484 = vmatprep.mubr.bf16.mxu0 0
  %485 = vmatmul.mubr.bf16.gmra.mrb[0].mxu0 %v431
  %v486 = vpop.f32.mrb[0].mxu0
  %v487 = vadd.f32 %v398, %v486
  %v488 = vpop.f32.mrb[0].mxu0
  %v489 = vpop.f32.mrb[0].mxu0
  %v490 = vadd.f32 %v401, %v489
  %v491 = vpop.f32.mrb[0].mxu0
  %492 = vmatprep.mubr.bf16.mxu0 0
  %493 = vmatmul.mubr.bf16.gmra.mrb[0].mxu0 %v434
  %v494 = vpop.f32.mrb[0].mxu0
  %v495 = vadd.f32 %v406, %v494
  %v496 = vpop.f32.mrb[0].mxu0
  %v497 = vpop.f32.mrb[0].mxu0
  %v498 = vadd.f32 %v409, %v497
  %v499 = vpop.f32.mrb[0].mxu0
  %500 = vdwg.mxu0
  %v501 = vld [vmem:[%s8] sm:$0x1]
  %v503 = vlaneseq
  %v504 = vshrl.u32 %v503, 7
  %v505 = vsub.s32 0, %v504
  %v506 = vrot.slane %v501, %v505
  %v508 = vadd.f32 %v471, %v506
  %v509 = vadd.f32 %v474, %v506
  %v510 = vadd.f32 %v479, %v506
  %v511 = vadd.f32 %v482, %v506
  %v512 = vadd.f32 %v487, %v506
  %v513 = vadd.f32 %v490, %v506
  %v514 = vadd.f32 %v495, %v506
  %v515 = vadd.f32 %v498, %v506
  %v516 = vmax.f32 %v508, 0.0
  %v517 = vmax.f32 %v509, 0.0
  %v518 = vmax.f32 %v510, 0.0
  %v519 = vmax.f32 %v511, 0.0
  %v520 = vmax.f32 %v512, 0.0
  %v521 = vmax.f32 %v513, 0.0
  %v522 = vmax.f32 %v514, 0.0
  %v523 = vmax.f32 %v515, 0.0
  %v524 = vpack.c.bf16 %v517, %v516
  %v525 = vpack.c.bf16 %v519, %v518
  %v526 = vpack.c.bf16 %v521, %v520
  %v527 = vpack.c.bf16 %v523, %v522
  %v528 = vld [vmem:[%s9] sm:$0xf]
  %v529 = vld [vmem:[%s9 + $0x4] sm:$0xf]
  %v530 = vld [vmem:[%s9 + $0x8] sm:$0xf]
  %v531 = vld [vmem:[%s9 + $0xc] sm:$0xf]
  %v532 = vld [vmem:[%s10] sm:$0x1]
  %v534 = vlaneseq
  %v535 = vshrl.u32 %v534, 7
  %v536 = vsub.s32 0, %v535
  %v537 = vrot.slane %v532, %v536
  %v543 = vunpack.c.l.b16 %v528
  %v544 = vunpack.c.l.b16 %v529
  %v545 = vunpack.c.l.b16 %v530
  %v546 = vunpack.c.l.b16 %v531
  %v547 = vpack.c.b16 %v544, %v543
  %v548 = vpack.c.b16 %v546, %v545
  %v552 = vsel %vm194, %v524, 0
  %v555 = vsel %vm194, %v525, 0
  %v558 = vsel %vm194, %v526, 0
  %v561 = vsel %vm194, %v527, 0
  %563 = vmatprep.subr.bf16.mxu0 0
  %564 = vmatpush1.bf16.msra.mxu0 %v547
  %565 = vmatprep.subr.bf16.mxu0 0
  %566 = vmatpush1.bf16.msra.mxu0 %v548
  %567 = vmatprep.subr.bf16.mxu0 0
  %568 = vmatpush1.bf16.msra.mxu0 0
  %569 = vmatprep.subr.bf16.mxu0 0
  %570 = vmatpush1.bf16.msra.mxu0 0
  %571 = vmatprep.subr.bf16.mxu0 0
  %572 = vmatpush1.bf16.msra.mxu0 0
  %573 = vmatprep.subr.bf16.mxu0 0
  %574 = vmatpush1.bf16.msra.mxu0 0
  %575 = vmatprep.subr.bf16.mxu0 0
  %576 = vmatpush1.bf16.msra.mxu0 0
  %577 = vmatprep.subr.bf16.mxu0 0
  %578 = vmatpush1.bf16.msra.mxu0 0
  %579 = vmatprep.subr.bf16.mxu0 0
  %580 = vmatpush1.bf16.msra.mxu0 0
  %581 = vmatprep.subr.bf16.mxu0 0
  %582 = vmatpush1.bf16.msra.mxu0 0
  %583 = vmatprep.subr.bf16.mxu0 0
  %584 = vmatpush1.bf16.msra.mxu0 0
  %585 = vmatprep.subr.bf16.mxu0 0
  %586 = vmatpush1.bf16.msra.mxu0 0
  %587 = vmatprep.subr.bf16.mxu0 0
  %588 = vmatpush1.bf16.msra.mxu0 0
  %589 = vmatprep.subr.bf16.mxu0 0
  %590 = vmatpush1.bf16.msra.mxu0 0
  %591 = vmatprep.subr.bf16.mxu0 0
  %592 = vmatpush1.bf16.msra.mxu0 0
  %593 = vmatprep.subr.bf16.mxu0 0
  %594 = vmatpush1.bf16.msra.mxu0 0
  %595 = vmatprep.mubr.bf16.mxu0 0
  %596 = vmatmul.mubr.bf16.gmra.mrb[0].mxu0 %v552
  %v597 = vpop.f32.mrb[0].mxu0
  %v598 = vadd.f32 %v537, %v597
  %v599 = vpop.f32.mrb[0].mxu0
  %v600 = vpop.f32.mrb[0].mxu0
  %v601 = vadd.f32 %v537, %v600
  %v602 = vpop.f32.mrb[0].mxu0
  %603 = vmatprep.mubr.bf16.mxu0 0
  %604 = vmatmul.mubr.bf16.gmra.mrb[0].mxu0 %v555
  %v605 = vpop.f32.mrb[0].mxu0
  %v606 = vadd.f32 %v537, %v605
  %v607 = vpop.f32.mrb[0].mxu0
  %v608 = vpop.f32.mrb[0].mxu0
  %v609 = vadd.f32 %v537, %v608
  %v610 = vpop.f32.mrb[0].mxu0
  %611 = vmatprep.mubr.bf16.mxu0 0
  %612 = vmatmul.mubr.bf16.gmra.mrb[0].mxu0 %v558
  %v613 = vpop.f32.mrb[0].mxu0
  %v614 = vadd.f32 %v537, %v613
  %v615 = vpop.f32.mrb[0].mxu0
  %v616 = vpop.f32.mrb[0].mxu0
  %v617 = vadd.f32 %v537, %v616
  %v618 = vpop.f32.mrb[0].mxu0
  %619 = vmatprep.mubr.bf16.mxu0 0
  %620 = vmatmul.mubr.bf16.gmra.mrb[0].mxu0 %v561
  %v621 = vpop.f32.mrb[0].mxu0
  %v622 = vadd.f32 %v537, %v621
  %v623 = vpop.f32.mrb[0].mxu0
  %v624 = vpop.f32.mrb[0].mxu0
  %v625 = vadd.f32 %v537, %v624
  %v626 = vpop.f32.mrb[0].mxu0
  %627 = vdwg.mxu0
  %vm628 = vcmask 244736
  %629 = vst.msk [vmem:[%s11] sm:$0xff] %vm628, %v598
  %630 = vst.msk [vmem:[%s11 + $0x8] sm:$0xff] %vm628, %v601
  %631 = vst.msk [vmem:[%s11 + $0x10] sm:$0xff] %vm628, %v606
  %632 = vst.msk [vmem:[%s11 + $0x18] sm:$0xff] %vm628, %v609
  %633 = vst.msk [vmem:[%s11 + $0x20] sm:$0xff] %vm628, %v614
  %634 = vst.msk [vmem:[%s11 + $0x28] sm:$0xff] %vm628, %v617
  %635 = vst.msk [vmem:[%s11 + $0x30] sm:$0xff] %vm628, %v622
  %636 = vst.msk [vmem:[%s11 + $0x38] sm:$0xff] %vm628, %v625
  // Predicated region
  $region46: #{wavernn_forward.7} parent=0 // pred_check
    _
  $region47: #{wavernn_forward.7} parent=0 // pred_check_branch
    %638 = sbr.rel (0) target = $region49
  $region48: #{wavernn_forward.7} parent=0 // pred_region
    _
  $region49: #{wavernn_forward.7} parent=0 // pred_fallthru
    _
  // Predicated region
  $region50: #{wavernn_forward.7} parent=0 // pred_check
    _
  $region51: #{wavernn_forward.7} parent=0 // pred_check_branch
    %640 = sbr.rel (0) target = $region53
  $region52: #{wavernn_forward.7} parent=0 // pred_region
    _
  $region53: #{wavernn_forward.7} parent=0 // pred_fallthru
    _

// kernel: wavernn_forward.6
$region0: #{wavernn_forward.6}
  #allocation0 [shape = 'u32[]', space=smem, size = 0x4, offset = 0x4, fixed_abs, tag = 'smem constant byte address 0x4 - core index']
  #allocation1 [shape = 'u32[144,128]{1,0:T(1,128)}', space=vmem, size = 0x12000, scoped, tag = 'internal scratch']
  #allocation2 [shape = 'f32[2,32]{1,0:T(2,128)}', space=vmem, size = 0x400, scoped, tag = 'scratch operand']
  #allocation3 [shape = 'f32[2,32]{1,0:T(2,128)}', space=vmem, size = 0x400, scoped, tag = 'scratch operand']
  %s0 = inlined_call_operand.vmem [shape: f32[32,2,96], index: 0, kind: input, shape index: {}]
  %s1 = inlined_call_operand.vmem [shape: f32[32,2,96], index: 1, kind: input, shape index: {}]
  %s2 = inlined_call_operand.vmem [shape: f32[32,2,32], index: 2, kind: input, shape index: {}]
  %s3 = inlined_call_operand.vmem [shape: f32[32,96], index: 3, kind: input, shape index: {}]
  %s4 = inlined_call_operand.vmem [shape: f32[1,96], index: 4, kind: input, shape index: {}]
  %s5 = inlined_call_operand.vmem [shape: f32[32,96], index: 5, kind: input, shape index: {}]
  %s6 = inlined_call_operand.vmem [shape: f32[1,96], index: 6, kind: input, shape index: {}]
  %s7 = inlined_call_operand.vmem [shape: f32[32,96], index: 7, kind: input, shape index: {}]
  %s8 = inlined_call_operand.vmem [shape: f32[32,2,32], index: 8, kind: output, shape index: {}]
  %s9 = sld [smem:[#allocation0]]
  $region69: #{wavernn_forward.6} parent=0
    _
  %s11 = ssub.s32 1, %s9
  %s12 = scalar_select 0, %s11, %s9
  loop: start=0, step=1, limit=6
  $region2: #{wavernn_forward.6} parent=0 // loop_pre_header
    _
  $region3: #{wavernn_forward.6} parent=0 // loop_header
    %s14 = sphi 0, %s18
    %p15 = scmp.ge.s32.totalorder %s14, 6
    %s24 = sphi 0, %s26
    %s27 = sphi 0, %s24
    %s28 = sphi 0, %s27
    %s44 = sphi 0, %s28
    %s50 = sphi 0, %s52
    %s53 = sphi 0, %s50
    %s54 = sphi 0, %s53
    %s70 = sphi 0, %s54
    %s76 = sphi 0, %s78
    %s79 = sphi 0, %s76
    %s80 = sphi 0, %s79
    %s96 = sphi 0, %s80
    %s100 = sphi 0, %s100
    %s102 = sphi 0, %s100
    %s103 = sphi 0, %s102
    %s117 = sphi 0, %s103
    %s121 = sphi 0, %s121
    %s123 = sphi 0, %s121
    %s124 = sphi 0, %s123
    %s138 = sphi 0, %s124
    %s142 = sphi 0, %s142
    %s144 = sphi 0, %s142
    %s145 = sphi 0, %s144
    %s159 = sphi 0, %s145
    %s163 = sphi 0, %s163
    %s165 = sphi 0, %s163
    %s166 = sphi 0, %s165
    %s180 = sphi 0, %s166
    %s184 = sphi 0, %s184
    %s186 = sphi 0, %s184
    %s187 = sphi 0, %s186
    %s201 = sphi 0, %s187
    %s207 = sphi 0, %s209
    %s210 = sphi 0, %s207
    %s211 = sphi 0, %s210
    %s227 = sphi 0, %s211
  $region4: #{wavernn_forward.6} parent=0 // loop_header_branch
    %17 = sbr.rel (%p15) target = $region8
  $region5: #{wavernn_forward.6} parent=0 // loop_body
    %s19 = ssub.s32 %s14, 1
    %s20 = ssub.s32 %s14, 2
    %s21 = sadd.s32 %s14, 1
    %s22 = ssub.s32 %s14, %s21
    %p23 = scmp.eq.s32.totalorder %s22, 0
    %s25 = sadd.s32 %s24, 1
    %s26 = scalar_select %p23, %s24, %s25
    %p29 = pneg %p23
    %p30 = scmp.eq.s32.totalorder %s14, 3
    %p31 = por %p29, %p30
    %p32 = scmp.ne.s32.totalorder %s24, %s27
    %p33 = scmp.eq.s32.totalorder %s14, 0
    %p34 = por %p32, %p33
    %p35 = scmp.ne.s32.totalorder %s24, %s27
    %p36 = scmp.eq.s32.totalorder %s19, 3
    %p37 = por %p35, %p36
    %p38 = scmp.ne.s32.totalorder %s27, %s28
    %p39 = scmp.eq.s32.totalorder %s19, 0
    %p40 = por %p38, %p39
    %p41 = scmp.ne.s32.totalorder %s27, %s28
    %p42 = scmp.eq.s32.totalorder %s20, 3
    %p43 = por %p41, %p42
    %p45 = scmp.ne.s32.totalorder %s28, %s44
    %p46 = scmp.eq.s32.totalorder %s20, 0
    %p47 = por %p45, %p46
    %s48 = ssub.s32 %s14, %s21
    %p49 = scmp.eq.s32.totalorder %s48, 0
    %s51 = sadd.s32 %s50, 1
    %s52 = scalar_select %p49, %s50, %s51
    %p55 = pneg %p49
    %p56 = scmp.eq.s32.totalorder %s14, 3
    %p57 = por %p55, %p56
    %p58 = scmp.ne.s32.totalorder %s50, %s53
    %p59 = scmp.eq.s32.totalorder %s14, 0
    %p60 = por %p58, %p59
    %p61 = scmp.ne.s32.totalorder %s50, %s53
    %p62 = scmp.eq.s32.totalorder %s19, 3
    %p63 = por %p61, %p62
    %p64 = scmp.ne.s32.totalorder %s53, %s54
    %p65 = scmp.eq.s32.totalorder %s19, 0
    %p66 = por %p64, %p65
    %p67 = scmp.ne.s32.totalorder %s53, %s54
    %p68 = scmp.eq.s32.totalorder %s20, 3
    %p69 = por %p67, %p68
    %p71 = scmp.ne.s32.totalorder %s54, %s70
    %p72 = scmp.eq.s32.totalorder %s20, 0
    %p73 = por %p71, %p72
    %s74 = ssub.s32 %s14, %s21
    %p75 = scmp.eq.s32.totalorder %s74, 0
    %s77 = sadd.s32 %s76, 1
    %s78 = scalar_select %p75, %s76, %s77
    %p81 = pneg %p75
    %p82 = scmp.eq.s32.totalorder %s14, 3
    %p83 = por %p81, %p82
    %p84 = scmp.ne.s32.totalorder %s76, %s79
    %p85 = scmp.eq.s32.totalorder %s14, 0
    %p86 = por %p84, %p85
    %p87 = scmp.ne.s32.totalorder %s76, %s79
    %p88 = scmp.eq.s32.totalorder %s19, 3
    %p89 = por %p87, %p88
    %p90 = scmp.ne.s32.totalorder %s79, %s80
    %p91 = scmp.eq.s32.totalorder %s19, 0
    %p92 = por %p90, %p91
    %p93 = scmp.ne.s32.totalorder %s79, %s80
    %p94 = scmp.eq.s32.totalorder %s20, 3
    %p95 = por %p93, %p94
    %p97 = scmp.ne.s32.totalorder %s80, %s96
    %p98 = scmp.eq.s32.totalorder %s20, 0
    %p99 = por %p97, %p98
    %s101 = sadd.s32 %s100, 1
    %p104 = scmp.eq.s32.totalorder %s14, 3
    %p105 = scmp.ne.s32.totalorder %s100, %s102
    %p106 = scmp.eq.s32.totalorder %s14, 0
    %p107 = por %p105, %p106
    %p108 = scmp.ne.s32.totalorder %s100, %s102
    %p109 = scmp.eq.s32.totalorder %s19, 3
    %p110 = por %p108, %p109
    %p111 = scmp.ne.s32.totalorder %s102, %s103
    %p112 = scmp.eq.s32.totalorder %s19, 0
    %p113 = por %p111, %p112
    %p114 = scmp.ne.s32.totalorder %s102, %s103
    %p115 = scmp.eq.s32.totalorder %s20, 3
    %p116 = por %p114, %p115
    %p118 = scmp.ne.s32.totalorder %s103, %s117
    %p119 = scmp.eq.s32.totalorder %s20, 0
    %p120 = por %p118, %p119
    %s122 = sadd.s32 %s121, 1
    %p125 = scmp.eq.s32.totalorder %s14, 3
    %p126 = scmp.ne.s32.totalorder %s121, %s123
    %p127 = scmp.eq.s32.totalorder %s14, 0
    %p128 = por %p126, %p127
    %p129 = scmp.ne.s32.totalorder %s121, %s123
    %p130 = scmp.eq.s32.totalorder %s19, 3
    %p131 = por %p129, %p130
    %p132 = scmp.ne.s32.totalorder %s123, %s124
    %p133 = scmp.eq.s32.totalorder %s19, 0
    %p134 = por %p132, %p133
    %p135 = scmp.ne.s32.totalorder %s123, %s124
    %p136 = scmp.eq.s32.totalorder %s20, 3
    %p137 = por %p135, %p136
    %p139 = scmp.ne.s32.totalorder %s124, %s138
    %p140 = scmp.eq.s32.totalorder %s20, 0
    %p141 = por %p139, %p140
    %s143 = sadd.s32 %s142, 1
    %p146 = scmp.eq.s32.totalorder %s14, 3
    %p147 = scmp.ne.s32.totalorder %s142, %s144
    %p148 = scmp.eq.s32.totalorder %s14, 0
    %p149 = por %p147, %p148
    %p150 = scmp.ne.s32.totalorder %s142, %s144
    %p151 = scmp.eq.s32.totalorder %s19, 3
    %p152 = por %p150, %p151
    %p153 = scmp.ne.s32.totalorder %s144, %s145
    %p154 = scmp.eq.s32.totalorder %s19, 0
    %p155 = por %p153, %p154
    %p156 = scmp.ne.s32.totalorder %s144, %s145
    %p157 = scmp.eq.s32.totalorder %s20, 3
    %p158 = por %p156, %p157
    %p160 = scmp.ne.s32.totalorder %s145, %s159
    %p161 = scmp.eq.s32.totalorder %s20, 0
    %p162 = por %p160, %p161
    %s164 = sadd.s32 %s163, 1
    %p167 = scmp.eq.s32.totalorder %s14, 3
    %p168 = scmp.ne.s32.totalorder %s163, %s165
    %p169 = scmp.eq.s32.totalorder %s14, 0
    %p170 = por %p168, %p169
    %p171 = scmp.ne.s32.totalorder %s163, %s165
    %p172 = scmp.eq.s32.totalorder %s19, 3
    %p173 = por %p171, %p172
    %p174 = scmp.ne.s32.totalorder %s165, %s166
    %p175 = scmp.eq.s32.totalorder %s19, 0
    %p176 = por %p174, %p175
    %p177 = scmp.ne.s32.totalorder %s165, %s166
    %p178 = scmp.eq.s32.totalorder %s20, 3
    %p179 = por %p177, %p178
    %p181 = scmp.ne.s32.totalorder %s166, %s180
    %p182 = scmp.eq.s32.totalorder %s20, 0
    %p183 = por %p181, %p182
    %s185 = sadd.s32 %s184, 1
    %p188 = scmp.eq.s32.totalorder %s14, 3
    %p189 = scmp.ne.s32.totalorder %s184, %s186
    %p190 = scmp.eq.s32.totalorder %s14, 0
    %p191 = por %p189, %p190
    %p192 = scmp.ne.s32.totalorder %s184, %s186
    %p193 = scmp.eq.s32.totalorder %s19, 3
    %p194 = por %p192, %p193
    %p195 = scmp.ne.s32.totalorder %s186, %s187
    %p196 = scmp.eq.s32.totalorder %s19, 0
    %p197 = por %p195, %p196
    %p198 = scmp.ne.s32.totalorder %s186, %s187
    %p199 = scmp.eq.s32.totalorder %s20, 3
    %p200 = por %p198, %p199
    %p202 = scmp.ne.s32.totalorder %s187, %s201
    %p203 = scmp.eq.s32.totalorder %s20, 0
    %p204 = por %p202, %p203
    %s205 = ssub.s32 %s14, %s21
    %p206 = scmp.eq.s32.totalorder %s205, 0
    %s208 = sadd.s32 %s207, 1
    %s209 = scalar_select %p206, %s207, %s208
    %p212 = pneg %p206
    %p213 = scmp.eq.s32.totalorder %s14, 3
    %p214 = por %p212, %p213
    %p215 = scmp.ne.s32.totalorder %s207, %s210
    %p216 = scmp.eq.s32.totalorder %s14, 0
    %p217 = por %p215, %p216
    %p218 = scmp.ne.s32.totalorder %s207, %s210
    %p219 = scmp.eq.s32.totalorder %s19, 3
    %p220 = por %p218, %p219
    %p221 = scmp.ne.s32.totalorder %s210, %s211
    %p222 = scmp.eq.s32.totalorder %s19, 0
    %p223 = por %p221, %p222
    %p224 = scmp.ne.s32.totalorder %s210, %s211
    %p225 = scmp.eq.s32.totalorder %s20, 3
    %p226 = por %p224, %p225
    %p228 = scmp.ne.s32.totalorder %s211, %s227
    %p229 = scmp.eq.s32.totalorder %s20, 0
    %p230 = por %p228, %p229
    %p231 = scmp.le.s32.totalorder 1, %s14
    %p232 = scmp.lt.s32.totalorder %s14, 5
    %p233 = pnand %p231, %p232
    %p234 = pneg %p233
    // Predicated region
    $region9: #{wavernn_forward.6} parent=5 // pred_check
      _
    $region10: #{wavernn_forward.6} parent=5 // pred_check_branch
      %236 = sbr.rel (%p233) target = $region12
    $region11: #{wavernn_forward.6} parent=5 // pred_region
      %s237 = ssub.s32 %s14, 1
      // Predicated region
      $region13: #{wavernn_forward.6} parent=11 // pred_check
        %p238 = pneg %p113
      $region14: #{wavernn_forward.6} parent=11 // pred_check_branch
        %240 = sbr.rel (%p238) target = $region16
      $region15: #{wavernn_forward.6} parent=11 // pred_region
        _
      $region16: #{wavernn_forward.6} parent=11 // pred_fallthru
        _
      // Predicated region
      $region17: #{wavernn_forward.6} parent=11 // pred_check
        %p241 = pneg %p134
      $region18: #{wavernn_forward.6} parent=11 // pred_check_branch
        %243 = sbr.rel (%p241) target = $region20
      $region19: #{wavernn_forward.6} parent=11 // pred_region
        _
      $region20: #{wavernn_forward.6} parent=11 // pred_fallthru
        _
      // Predicated region
      $region21: #{wavernn_forward.6} parent=11 // pred_check
        %p244 = pneg %p155
      $region22: #{wavernn_forward.6} parent=11 // pred_check_branch
        %246 = sbr.rel (%p244) target = $region24
      $region23: #{wavernn_forward.6} parent=11 // pred_region
        _
      $region24: #{wavernn_forward.6} parent=11 // pred_fallthru
        _
      // Predicated region
      $region25: #{wavernn_forward.6} parent=11 // pred_check
        %p247 = pneg %p176
      $region26: #{wavernn_forward.6} parent=11 // pred_check_branch
        %249 = sbr.rel (%p247) target = $region28
      $region27: #{wavernn_forward.6} parent=11 // pred_region
        _
      $region28: #{wavernn_forward.6} parent=11 // pred_fallthru
        _
      // Predicated region
      $region29: #{wavernn_forward.6} parent=11 // pred_check
        %p250 = pneg %p197
      $region30: #{wavernn_forward.6} parent=11 // pred_check_branch
        %252 = sbr.rel (%p250) target = $region32
      $region31: #{wavernn_forward.6} parent=11 // pred_region
        _
      $region32: #{wavernn_forward.6} parent=11 // pred_fallthru
        _
    $region12: #{wavernn_forward.6} parent=5 // pred_fallthru
      _
    %p253 = scmp.lt.s32.totalorder %s14, 4
    // Predicated region
    $region33: #{wavernn_forward.6} parent=5 // pred_check
      %p254 = pneg %p253
    $region34: #{wavernn_forward.6} parent=5 // pred_check_branch
      %256 = sbr.rel (%p254) target = $region36
    $region35: #{wavernn_forward.6} parent=5 // pred_region
      // Predicated region
      $region37: #{wavernn_forward.6} parent=35 // pred_check
        %p257 = pneg %p34
      $region38: #{wavernn_forward.6} parent=35 // pred_check_branch
        %259 = sbr.rel (%p257) target = $region40
      $region39: #{wavernn_forward.6} parent=35 // pred_region
        %s260 = smul.u32 8, %s14
        %p261 = scmp.lt.s32.totalorder %s260, 31
        %s262 = scalar_select %p261, %s260, 31
        %s263 = smul.addr %s262, 2
        %s264 = scalar_lea.vmem %s0, %s263
        %s265 = smul.u32 8, %s14
      $region40: #{wavernn_forward.6} parent=35 // pred_fallthru
        _
      // Predicated region
      $region41: #{wavernn_forward.6} parent=35 // pred_check
        %p266 = pneg %p60
      $region42: #{wavernn_forward.6} parent=35 // pred_check_branch
        %268 = sbr.rel (%p266) target = $region44
      $region43: #{wavernn_forward.6} parent=35 // pred_region
        %s269 = smul.u32 8, %s14
        %p270 = scmp.lt.s32.totalorder %s269, 31
        %s271 = scalar_select %p270, %s269, 31
        %s272 = smul.addr %s271, 2
        %s273 = scalar_lea.vmem %s1, %s272
        %s274 = smul.u32 8, %s14
      $region44: #{wavernn_forward.6} parent=35 // pred_fallthru
        _
      // Predicated region
      $region45: #{wavernn_forward.6} parent=35 // pred_check
        %p275 = pneg %p86
      $region46: #{wavernn_forward.6} parent=35 // pred_check_branch
        %277 = sbr.rel (%p275) target = $region48
      $region47: #{wavernn_forward.6} parent=35 // pred_region
        %s278 = smul.u32 8, %s14
        %p279 = scmp.lt.s32.totalorder %s278, 31
        %s280 = scalar_select %p279, %s278, 31
        %s281 = smul.addr %s280, 2
        %s282 = scalar_lea.vmem %s2, %s281
        %s283 = smul.u32 8, %s14
      $region48: #{wavernn_forward.6} parent=35 // pred_fallthru
        _
    $region36: #{wavernn_forward.6} parent=5 // pred_fallthru
      _
    %p284 = scmp.le.s32.totalorder 1, %s14
    %p285 = scmp.lt.s32.totalorder %s14, 5
    %p286 = pnand %p284, %p285
    %p287 = pneg %p286
    // Predicated region
    $region49: #{wavernn_forward.6} parent=5 // pred_check
      _
    $region50: #{wavernn_forward.6} parent=5 // pred_check_branch
      %289 = sbr.rel (%p286) target = $region52
    $region51: #{wavernn_forward.6} parent=5 // pred_region
      %s290 = ssub.s32 %s14, 1
      %s291 = smul.u32 8, %s19
      %p292 = scmp.lt.s32.totalorder %s291, 31
      %s293 = scalar_select %p292, %s291, 31
      %s294 = smul.addr %s293, 2
      %s295 = scalar_lea.vmem %s0, %s294
      %p296 = pneg %p40
      %p297 = pneg %p37
      %s298 = smul.u32 8, %s19
      %p299 = scmp.lt.s32.totalorder %s298, 31
      %s300 = scalar_select %p299, %s298, 31
      %s301 = smul.addr %s300, 2
      %s302 = scalar_lea.vmem %s1, %s301
      %p303 = pneg %p66
      %p304 = pneg %p63
      %s305 = smul.u32 8, %s19
      %p306 = scmp.lt.s32.totalorder %s305, 31
      %s307 = scalar_select %p306, %s305, 31
      %s308 = smul.addr %s307, 2
      %s309 = scalar_lea.vmem %s2, %s308
      %p310 = pneg %p92
      %p311 = pneg %p89
      %p312 = pneg %p113
      %p313 = pneg %p110
      %p314 = pneg %p134
      %p315 = pneg %p131
      %p316 = pneg %p155
      %p317 = pneg %p152
      %p318 = pneg %p176
      %p319 = pneg %p173
      %p320 = pneg %p197
      %p321 = pneg %p194
      %p322 = pneg %p223
      %p323 = pneg %p220
      %s324 = smul.u32 8, %s19
      %p325 = scmp.lt.s32.totalorder %s324, 31
      %s326 = scalar_select %p325, %s324, 31
      %s327 = smul.addr %s326, 2
      %s328 = scalar_lea.vmem %s8, %s327
      %s329 = smul.u32 8, %s19
      %p330 = scmp.lt.s32.totalorder %s329, 31
      %s331 = scalar_select %p330, %s329, 31
      %s332 = smul.addr %s331, 2
      %s333 = scalar_lea.vmem %s0, %s332
      %s334 = smul.u32 8, %s19
      %s335 = smul.u32 8, %s19
      %p336 = scmp.lt.s32.totalorder %s335, 31
      %s337 = scalar_select %p336, %s335, 31
      %s338 = smul.addr %s337, 2
      %s339 = scalar_lea.vmem %s1, %s338
      %s340 = smul.u32 8, %s19
      %s341 = smul.u32 8, %s19
      %p342 = scmp.lt.s32.totalorder %s341, 31
      %s343 = scalar_select %p342, %s341, 31
      %s344 = smul.addr %s343, 2
      %s345 = scalar_lea.vmem %s2, %s344
      %s346 = smul.u32 8, %s19
      %s347 = smul.u32 8, %s19
      %p348 = scmp.lt.s32.totalorder %s347, 31
      %s349 = scalar_select %p348, %s347, 31
      %s350 = smul.addr %s349, 2
      %s351 = scalar_lea.vmem %s8, %s350
      %s352 = smul.u32 8, %s19
      %p353 = scmp.eq.s32.totalorder %s19, 0
      // Predicated region
      $region53: #{wavernn_forward.6} parent=51 // pred_check
        %p354 = pneg %p353
      $region54: #{wavernn_forward.6} parent=51 // pred_check_branch
        %356 = sbr.rel (%p354) target = $region56
      $region55: #{wavernn_forward.6} parent=51 // pred_region
        %vm357 = vcmask 254976
        %358 = vst.msk [vmem:[#allocation2] sm:$0x3] %vm357, 0.0
        %359 = vst.msk [vmem:[#allocation3] sm:$0x3] %vm357, 0.0
      $region56: #{wavernn_forward.6} parent=51 // pred_fallthru
        _
      %v360 = vld [vmem:[%s3] sm:$0xff]
      %v361 = vld [vmem:[%s3 + $0x8] sm:$0xff]
      %v362 = vld [vmem:[%s3 + $0x10] sm:$0xff]
      %v363 = vld [vmem:[%s3 + $0x18] sm:$0xff]
      %v364 = vld [vmem:[%s4] sm:$0x1]
      %v365 = vld [vmem:[%s5] sm:$0xff]
      %v366 = vld [vmem:[%s5 + $0x8] sm:$0xff]
      %v367 = vld [vmem:[%s5 + $0x10] sm:$0xff]
      %v368 = vld [vmem:[%s5 + $0x18] sm:$0xff]
      %v369 = vld [vmem:[%s6] sm:$0x1]
      %v370 = vld [vmem:[%s7] sm:$0xff]
      %v371 = vld [vmem:[%s7 + $0x8] sm:$0xff]
      %v372 = vld [vmem:[%s7 + $0x10] sm:$0xff]
      %v373 = vld [vmem:[%s7 + $0x18] sm:$0xff]
      %v374 = vld [vmem:[#allocation2] sm:$0x3]
      %v375 = vld [vmem:[#allocation3] sm:$0x3]
      %v377 = vlaneseq
      %v378 = vshrl.u32 %v377, 7
      %v379 = vsub.s32 0, %v378
      %v380 = vrot.slane %v364, %v379
      %vm382 = vcmask 261120
      %v384 = vsel %vm382, %v374, 0
      %386 = vmatprep.subr.mxu0 0.0
      %387 = vmatpush1.msra.mxu0 %v360
      %388 = vmatprep.subr.mxu0 0.0
      %389 = vmatpush1.msra.mxu0 %v361
      %390 = vmatprep.subr.mxu0 0.0
      %391 = vmatpush1.msra.mxu0 %v362
      %392 = vmatprep.subr.mxu0 0.0
      %393 = vmatpush1.msra.mxu0 %v363
      %394 = vmatprep.subr.mxu0 0.0
      %395 = vmatpush1.msra.mxu0 0.0
      %396 = vmatprep.subr.mxu0 0.0
      %397 = vmatpush1.msra.mxu0 0.0
      %398 = vmatprep.subr.mxu0 0.0
      %399 = vmatpush1.msra.mxu0 0.0
      %400 = vmatprep.subr.mxu0 0.0
      %401 = vmatpush1.msra.mxu0 0.0
      %402 = vmatprep.subr.mxu0 0.0
      %403 = vmatpush1.msra.mxu0 0.0
      %404 = vmatprep.subr.mxu0 0.0
      %405 = vmatpush1.msra.mxu0 0.0
      %406 = vmatprep.subr.mxu0 0.0
      %407 = vmatpush1.msra.mxu0 0.0
      %408 = vmatprep.subr.mxu0 0.0
      %409 = vmatpush1.msra.mxu0 0.0
      %410 = vmatprep.subr.mxu0 0.0
      %411 = vmatpush1.msra.mxu0 0.0
      %412 = vmatprep.subr.mxu0 0.0
      %413 = vmatpush1.msra.mxu0 0.0
      %414 = vmatprep.subr.mxu0 0.0
      %415 = vmatpush1.msra.mxu0 0.0
      %416 = vmatprep.subr.mxu0 0.0
      %417 = vmatpush1.msra.mxu0 0.0
      %418 = vmatprep.subr.mxu0 0.0
      %419 = vmatpush1.msra.mxu0 0.0
      %420 = vmatprep.subr.mxu0 0.0
      %421 = vmatpush1.msra.mxu0 0.0
      %422 = vmatprep.subr.mxu0 0.0
      %423 = vmatpush1.msra.mxu0 0.0
      %424 = vmatprep.subr.mxu0 0.0
      %425 = vmatpush1.msra.mxu0 0.0
      %426 = vmatprep.subr.mxu0 0.0
      %427 = vmatpush1.msra.mxu0 0.0
      %428 = vmatprep.subr.mxu0 0.0
      %429 = vmatpush1.msra.mxu0 0.0
      %430 = vmatprep.subr.mxu0 0.0
      %431 = vmatpush1.msra.mxu0 0.0
      %432 = vmatprep.subr.mxu0 0.0
      %433 = vmatpush1.msra.mxu0 0.0
      %434 = vmatprep.subr.mxu0 0.0
      %435 = vmatpush1.msra.mxu0 0.0
      %436 = vmatprep.subr.mxu0 0.0
      %437 = vmatpush1.msra.mxu0 0.0
      %438 = vmatprep.subr.mxu0 0.0
      %439 = vmatpush1.msra.mxu0 0.0
      %440 = vmatprep.subr.mxu0 0.0
      %441 = vmatpush1.msra.mxu0 0.0
      %442 = vmatprep.subr.mxu0 0.0
      %443 = vmatpush1.msra.mxu0 0.0
      %444 = vmatprep.subr.mxu0 0.0
      %445 = vmatpush1.msra.mxu0 0.0
      %446 = vmatprep.subr.mxu0 0.0
      %447 = vmatpush1.msra.mxu0 0.0
      %448 = vmatprep.subr.mxu0 0.0
      %449 = vmatpush1.msra.mxu0 0.0
      %450 = vmatprep.mubr.f32.mxu0 0.0
      %451 = vmatmul.mubr.f32.gmra.mrb[0].mxu0 %v384
      %v452 = vpop.f32.mrb[0].mxu0
      %v453 = vadd.f32 %v380, %v452
      %v454 = vpop.f32.mrb[0].mxu0
      %455 = vdwg.mxu0
      %v456 = vld [vmem:[%s333] sm:$0x3]
      %v457 = vadd.f32 %v456, %v453
      %v458 = vxor.u32 %v457, 2147483648
      %v459 = vmul.f32 %v458, 1.442695
      %v460 = vpow.pop %v459
      %v461 = vadd.f32 %v460, 1.0
      %v462 = vrcp.pop %v461
      %v463 = vmul.f32 1.0, %v462
      %465 = vrot.lane.b32.xlu0 %v453, 64
      %v466 = vpop.permute.xlu0 %465
      %v468 = vmul.f32 %v463, %v466
      %470 = vrot.lane.b32.xlu0 %v468, 64
      %v471 = vpop.permute.xlu0 %470
      %v473 = vadd.f32 %v456, %v471
      %v474 = vtanh.pop %v473
      %v475 = vsub.f32 1.0, %v463
      %477 = vrot.lane.b32.xlu0 %v474, 96
      %v478 = vpop.permute.xlu0 %477
      %v480 = vmul.f32 %v475, %v478
      %481 = vrot.lane.b32.xlu0 %v374, 32
      %v482 = vpop.permute.xlu0 %481
      %v484 = vmul.f32 %v463, %v482
      %v485 = vadd.f32 %v480, %v484
      %v486 = vld [vmem:[%s345] sm:$0x3]
      %488 = vrot.lane.b32.xlu0 %v486, 32
      %v489 = vpop.permute.xlu0 %488
      %v491 = vadd.f32 %v485, %v489
      %v492 = vld [vmem:[%s339] sm:$0x3]
      %494 = vrot.lane.b32.xlu0 %v491, 96
      %v495 = vpop.permute.xlu0 %494
      %v496 = vsel %vm382, %v495, 0
      %498 = vmatprep.subr.mxu0 0.0
      %499 = vmatpush1.msra.mxu0 %v370
      %500 = vmatprep.subr.mxu0 0.0
      %501 = vmatpush1.msra.mxu0 %v371
      %502 = vmatprep.subr.mxu0 0.0
      %503 = vmatpush1.msra.mxu0 %v372
      %504 = vmatprep.subr.mxu0 0.0
      %505 = vmatpush1.msra.mxu0 %v373
      %506 = vmatprep.subr.mxu0 0.0
      %507 = vmatpush1.msra.mxu0 0.0
      %508 = vmatprep.subr.mxu0 0.0
      %509 = vmatpush1.msra.mxu0 0.0
      %510 = vmatprep.subr.mxu0 0.0
      %511 = vmatpush1.msra.mxu0 0.0
      %512 = vmatprep.subr.mxu0 0.0
      %513 = vmatpush1.msra.mxu0 0.0
      %514 = vmatprep.subr.mxu0 0.0
      %515 = vmatpush1.msra.mxu0 0.0
      %516 = vmatprep.subr.mxu0 0.0
      %517 = vmatpush1.msra.mxu0 0.0
      %518 = vmatprep.subr.mxu0 0.0
      %519 = vmatpush1.msra.mxu0 0.0
      %520 = vmatprep.subr.mxu0 0.0
      %521 = vmatpush1.msra.mxu0 0.0
      %522 = vmatprep.subr.mxu0 0.0
      %523 = vmatpush1.msra.mxu0 0.0
      %524 = vmatprep.subr.mxu0 0.0
      %525 = vmatpush1.msra.mxu0 0.0
      %526 = vmatprep.subr.mxu0 0.0
      %527 = vmatpush1.msra.mxu0 0.0
      %528 = vmatprep.subr.mxu0 0.0
      %529 = vmatpush1.msra.mxu0 0.0
      %530 = vmatprep.subr.mxu0 0.0
      %531 = vmatpush1.msra.mxu0 0.0
      %532 = vmatprep.subr.mxu0 0.0
      %533 = vmatpush1.msra.mxu0 0.0
      %534 = vmatprep.subr.mxu0 0.0
      %535 = vmatpush1.msra.mxu0 0.0
      %536 = vmatprep.subr.mxu0 0.0
      %537 = vmatpush1.msra.mxu0 0.0
      %538 = vmatprep.subr.mxu0 0.0
      %539 = vmatpush1.msra.mxu0 0.0
      %540 = vmatprep.subr.mxu0 0.0
      %541 = vmatpush1.msra.mxu0 0.0
      %542 = vmatprep.subr.mxu0 0.0
      %543 = vmatpush1.msra.mxu0 0.0
      %544 = vmatprep.subr.mxu0 0.0
      %545 = vmatpush1.msra.mxu0 0.0
      %546 = vmatprep.subr.mxu0 0.0
      %547 = vmatpush1.msra.mxu0 0.0
      %548 = vmatprep.subr.mxu0 0.0
      %549 = vmatpush1.msra.mxu0 0.0
      %550 = vmatprep.subr.mxu0 0.0
      %551 = vmatpush1.msra.mxu0 0.0
      %552 = vmatprep.subr.mxu0 0.0
      %553 = vmatpush1.msra.mxu0 0.0
      %554 = vmatprep.subr.mxu0 0.0
      %555 = vmatpush1.msra.mxu0 0.0
      %556 = vmatprep.subr.mxu0 0.0
      %557 = vmatpush1.msra.mxu0 0.0
      %558 = vmatprep.subr.mxu0 0.0
      %559 = vmatpush1.msra.mxu0 0.0
      %560 = vmatprep.subr.mxu0 0.0
      %561 = vmatpush1.msra.mxu0 0.0
      %562 = vmatprep.mubr.f32.mxu0 0.0
      %563 = vmatmul.mubr.f32.gmra.mrb[0].mxu0 %v496
      %v564 = vpop.f32.mrb[0].mxu0
      %v565 = vadd.f32 %v492, %v564
      %v566 = vpop.f32.mrb[0].mxu0
      %567 = vdwg.mxu0
      %v569 = vlaneseq
      %v570 = vshrl.u32 %v569, 7
      %v571 = vsub.s32 0, %v570
      %v572 = vrot.slane %v369, %v571
      %v575 = vsel %vm382, %v375, 0
      %577 = vmatprep.subr.mxu0 0.0
      %578 = vmatpush1.msra.mxu0 %v365
      %579 = vmatprep.subr.mxu0 0.0
      %580 = vmatpush1.msra.mxu0 %v366
      %581 = vmatprep.subr.mxu0 0.0
      %582 = vmatpush1.msra.mxu0 %v367
      %583 = vmatprep.subr.mxu0 0.0
      %584 = vmatpush1.msra.mxu0 %v368
      %585 = vmatprep.subr.mxu0 0.0
      %586 = vmatpush1.msra.mxu0 0.0
      %587 = vmatprep.subr.mxu0 0.0
      %588 = vmatpush1.msra.mxu0 0.0
      %589 = vmatprep.subr.mxu0 0.0
      %590 = vmatpush1.msra.mxu0 0.0
      %591 = vmatprep.subr.mxu0 0.0
      %592 = vmatpush1.msra.mxu0 0.0
      %593 = vmatprep.subr.mxu0 0.0
      %594 = vmatpush1.msra.mxu0 0.0
      %595 = vmatprep.subr.mxu0 0.0
      %596 = vmatpush1.msra.mxu0 0.0
      %597 = vmatprep.subr.mxu0 0.0
      %598 = vmatpush1.msra.mxu0 0.0
      %599 = vmatprep.subr.mxu0 0.0
      %600 = vmatpush1.msra.mxu0 0.0
      %601 = vmatprep.subr.mxu0 0.0
      %602 = vmatpush1.msra.mxu0 0.0
      %603 = vmatprep.subr.mxu0 0.0
      %604 = vmatpush1.msra.mxu0 0.0
      %605 = vmatprep.subr.mxu0 0.0
      %606 = vmatpush1.msra.mxu0 0.0
      %607 = vmatprep.subr.mxu0 0.0
      %608 = vmatpush1.msra.mxu0 0.0
      %609 = vmatprep.subr.mxu0 0.0
      %610 = vmatpush1.msra.mxu0 0.0
      %611 = vmatprep.subr.mxu0 0.0
      %612 = vmatpush1.msra.mxu0 0.0
      %613 = vmatprep.subr.mxu0 0.0
      %614 = vmatpush1.msra.mxu0 0.0
      %615 = vmatprep.subr.mxu0 0.0
      %616 = vmatpush1.msra.mxu0 0.0
      %617 = vmatprep.subr.mxu0 0.0
      %618 = vmatpush1.msra.mxu0 0.0
      %619 = vmatprep.subr.mxu0 0.0
      %620 = vmatpush1.msra.mxu0 0.0
      %621 = vmatprep.subr.mxu0 0.0
      %622 = vmatpush1.msra.mxu0 0.0
      %623 = vmatprep.subr.mxu0 0.0
      %624 = vmatpush1.msra.mxu0 0.0
      %625 = vmatprep.subr.mxu0 0.0
      %626 = vmatpush1.msra.mxu0 0.0
      %627 = vmatprep.subr.mxu0 0.0
      %628 = vmatpush1.msra.mxu0 0.0
      %629 = vmatprep.subr.mxu0 0.0
      %630 = vmatpush1.msra.mxu0 0.0
      %631 = vmatprep.subr.mxu0 0.0
      %632 = vmatpush1.msra.mxu0 0.0
      %633 = vmatprep.subr.mxu0 0.0
      %634 = vmatpush1.msra.mxu0 0.0
      %635 = vmatprep.subr.mxu0 0.0
      %636 = vmatpush1.msra.mxu0 0.0
      %637 = vmatprep.subr.mxu0 0.0
      %638 = vmatpush1.msra.mxu0 0.0
      %639 = vmatprep.subr.mxu0 0.0
      %640 = vmatpush1.msra.mxu0 0.0
      %641 = vmatprep.mubr.f32.mxu0 0.0
      %642 = vmatmul.mubr.f32.gmra.mrb[0].mxu0 %v575
      %v643 = vpop.f32.mrb[0].mxu0
      %v644 = vadd.f32 %v572, %v643
      %v645 = vpop.f32.mrb[0].mxu0
      %646 = vdwg.mxu0
      %v647 = vadd.f32 %v565, %v644
      %v648 = vxor.u32 %v647, 2147483648
      %v649 = vmul.f32 %v648, 1.442695
      %v650 = vpow.pop %v649
      %v651 = vadd.f32 %v650, 1.0
      %v652 = vrcp.pop %v651
      %v653 = vmul.f32 1.0, %v652
      %655 = vrot.lane.b32.xlu0 %v644, 64
      %v656 = vpop.permute.xlu0 %655
      %v658 = vmul.f32 %v653, %v656
      %660 = vrot.lane.b32.xlu0 %v658, 64
      %v661 = vpop.permute.xlu0 %660
      %v663 = vadd.f32 %v565, %v661
      %v664 = vtanh.pop %v663
      %v665 = vsub.f32 1.0, %v653
      %667 = vrot.lane.b32.xlu0 %v664, 96
      %v668 = vpop.permute.xlu0 %667
      %v670 = vmul.f32 %v665, %v668
      %671 = vrot.lane.b32.xlu0 %v375, 32
      %v672 = vpop.permute.xlu0 %671
      %v674 = vmul.f32 %v653, %v672
      %v675 = vadd.f32 %v670, %v674
      %677 = vrot.lane.b32.xlu0 %v485, 96
      %v678 = vpop.permute.xlu0 %677
      %vm680 = vcmask 254976
      %681 = vst.msk [vmem:[#allocation2] sm:$0x3] %vm680, %v678
      %683 = vrot.lane.b32.xlu0 %v675, 96
      %v684 = vpop.permute.xlu0 %683
      %686 = vst.msk [vmem:[#allocation3] sm:$0x3] %vm680, %v684
      %v687 = vadd.f32 %v675, %v491
      %689 = vrot.lane.b32.xlu0 %v687, 96
      %v690 = vpop.permute.xlu0 %689
      %692 = vst.msk [vmem:[%s351] sm:$0x3] %vm680, %v690
      %v693 = vld [vmem:[#allocation2] sm:$0x3]
      %v694 = vld [vmem:[#allocation3] sm:$0x3]
      %v696 = vsel %vm382, %v693, 0
      %698 = vmatprep.subr.mxu0 0.0
      %699 = vmatpush1.msra.mxu0 %v360
      %700 = vmatprep.subr.mxu0 0.0
      %701 = vmatpush1.msra.mxu0 %v361
      %702 = vmatprep.subr.mxu0 0.0
      %703 = vmatpush1.msra.mxu0 %v362
      %704 = vmatprep.subr.mxu0 0.0
      %705 = vmatpush1.msra.mxu0 %v363
      %706 = vmatprep.subr.mxu0 0.0
      %707 = vmatpush1.msra.mxu0 0.0
      %708 = vmatprep.subr.mxu0 0.0
      %709 = vmatpush1.msra.mxu0 0.0
      %710 = vmatprep.subr.mxu0 0.0
      %711 = vmatpush1.msra.mxu0 0.0
      %712 = vmatprep.subr.mxu0 0.0
      %713 = vmatpush1.msra.mxu0 0.0
      %714 = vmatprep.subr.mxu0 0.0
      %715 = vmatpush1.msra.mxu0 0.0
      %716 = vmatprep.subr.mxu0 0.0
      %717 = vmatpush1.msra.mxu0 0.0
      %718 = vmatprep.subr.mxu0 0.0
      %719 = vmatpush1.msra.mxu0 0.0
      %720 = vmatprep.subr.mxu0 0.0
      %721 = vmatpush1.msra.mxu0 0.0
      %722 = vmatprep.subr.mxu0 0.0
      %723 = vmatpush1.msra.mxu0 0.0
      %724 = vmatprep.subr.mxu0 0.0
      %725 = vmatpush1.msra.mxu0 0.0
      %726 = vmatprep.subr.mxu0 0.0
      %727 = vmatpush1.msra.mxu0 0.0
      %728 = vmatprep.subr.mxu0 0.0
      %729 = vmatpush1.msra.mxu0 0.0
      %730 = vmatprep.subr.mxu0 0.0
      %731 = vmatpush1.msra.mxu0 0.0
      %732 = vmatprep.subr.mxu0 0.0
      %733 = vmatpush1.msra.mxu0 0.0
      %734 = vmatprep.subr.mxu0 0.0
      %735 = vmatpush1.msra.mxu0 0.0
      %736 = vmatprep.subr.mxu0 0.0
      %737 = vmatpush1.msra.mxu0 0.0
      %738 = vmatprep.subr.mxu0 0.0
      %739 = vmatpush1.msra.mxu0 0.0
      %740 = vmatprep.subr.mxu0 0.0
      %741 = vmatpush1.msra.mxu0 0.0
      %742 = vmatprep.subr.mxu0 0.0
      %743 = vmatpush1.msra.mxu0 0.0
      %744 = vmatprep.subr.mxu0 0.0
      %745 = vmatpush1.msra.mxu0 0.0
      %746 = vmatprep.subr.mxu0 0.0
      %747 = vmatpush1.msra.mxu0 0.0
      %748 = vmatprep.subr.mxu0 0.0
      %749 = vmatpush1.msra.mxu0 0.0
      %750 = vmatprep.subr.mxu0 0.0
      %751 = vmatpush1.msra.mxu0 0.0
      %752 = vmatprep.subr.mxu0 0.0
      %753 = vmatpush1.msra.mxu0 0.0
      %754 = vmatprep.subr.mxu0 0.0
      %755 = vmatpush1.msra.mxu0 0.0
      %756 = vmatprep.subr.mxu0 0.0
      %757 = vmatpush1.msra.mxu0 0.0
      %758 = vmatprep.subr.mxu0 0.0
      %759 = vmatpush1.msra.mxu0 0.0
      %760 = vmatprep.subr.mxu0 0.0
      %761 = vmatpush1.msra.mxu0 0.0
      %762 = vmatprep.mubr.f32.mxu0 0.0
      %763 = vmatmul.mubr.f32.gmra.mrb[0].mxu0 %v696
      %v764 = vpop.f32.mrb[0].mxu0
      %v765 = vadd.f32 %v380, %v764
      %v766 = vpop.f32.mrb[0].mxu0
      %767 = vdwg.mxu0
      %s768 = scalar_lea.vmem %s333, 2
      %v769 = vld [vmem:[%s768] sm:$0x3]
      %v770 = vadd.f32 %v769, %v765
      %v771 = vxor.u32 %v770, 2147483648
      %v772 = vmul.f32 %v771, 1.442695
      %v773 = vpow.pop %v772
      %v774 = vadd.f32 %v773, 1.0
      %v775 = vrcp.pop %v774
      %v776 = vmul.f32 1.0, %v775
      %778 = vrot.lane.b32.xlu0 %v765, 64
      %v779 = vpop.permute.xlu0 %778
      %v781 = vmul.f32 %v776, %v779
      %783 = vrot.lane.b32.xlu0 %v781, 64
      %v784 = vpop.permute.xlu0 %783
      %v786 = vadd.f32 %v769, %v784
      %v787 = vtanh.pop %v786
      %v788 = vsub.f32 1.0, %v776
      %790 = vrot.lane.b32.xlu0 %v787, 96
      %v791 = vpop.permute.xlu0 %790
      %v793 = vmul.f32 %v788, %v791
      %794 = vrot.lane.b32.xlu0 %v693, 32
      %v795 = vpop.permute.xlu0 %794
      %v797 = vmul.f32 %v776, %v795
      %v798 = vadd.f32 %v793, %v797
      %s799 = scalar_lea.vmem %s345, 2
      %v800 = vld [vmem:[%s799] sm:$0x3]
      %802 = vrot.lane.b32.xlu0 %v800, 32
      %v803 = vpop.permute.xlu0 %802
      %v805 = vadd.f32 %v798, %v803
      %s806 = scalar_lea.vmem %s339, 2
      %v807 = vld [vmem:[%s806] sm:$0x3]
      %809 = vrot.lane.b32.xlu0 %v805, 96
      %v810 = vpop.permute.xlu0 %809
      %v811 = vsel %vm382, %v810, 0
      %813 = vmatprep.subr.mxu0 0.0
      %814 = vmatpush1.msra.mxu0 %v370
      %815 = vmatprep.subr.mxu0 0.0
      %816 = vmatpush1.msra.mxu0 %v371
      %817 = vmatprep.subr.mxu0 0.0
      %818 = vmatpush1.msra.mxu0 %v372
      %819 = vmatprep.subr.mxu0 0.0
      %820 = vmatpush1.msra.mxu0 %v373
      %821 = vmatprep.subr.mxu0 0.0
      %822 = vmatpush1.msra.mxu0 0.0
      %823 = vmatprep.subr.mxu0 0.0
      %824 = vmatpush1.msra.mxu0 0.0
      %825 = vmatprep.subr.mxu0 0.0
      %826 = vmatpush1.msra.mxu0 0.0
      %827 = vmatprep.subr.mxu0 0.0
      %828 = vmatpush1.msra.mxu0 0.0
      %829 = vmatprep.subr.mxu0 0.0
      %830 = vmatpush1.msra.mxu0 0.0
      %831 = vmatprep.subr.mxu0 0.0
      %832 = vmatpush1.msra.mxu0 0.0
      %833 = vmatprep.subr.mxu0 0.0
      %834 = vmatpush1.msra.mxu0 0.0
      %835 = vmatprep.subr.mxu0 0.0
      %836 = vmatpush1.msra.mxu0 0.0
      %837 = vmatprep.subr.mxu0 0.0
      %838 = vmatpush1.msra.mxu0 0.0
      %839 = vmatprep.subr.mxu0 0.0
      %840 = vmatpush1.msra.mxu0 0.0
      %841 = vmatprep.subr.mxu0 0.0
      %842 = vmatpush1.msra.mxu0 0.0
      %843 = vmatprep.subr.mxu0 0.0
      %844 = vmatpush1.msra.mxu0 0.0
      %845 = vmatprep.subr.mxu0 0.0
      %846 = vmatpush1.msra.mxu0 0.0
      %847 = vmatprep.subr.mxu0 0.0
      %848 = vmatpush1.msra.mxu0 0.0
      %849 = vmatprep.subr.mxu0 0.0
      %850 = vmatpush1.msra.mxu0 0.0
      %851 = vmatprep.subr.mxu0 0.0
      %852 = vmatpush1.msra.mxu0 0.0
      %853 = vmatprep.subr.mxu0 0.0
      %854 = vmatpush1.msra.mxu0 0.0
      %855 = vmatprep.subr.mxu0 0.0
      %856 = vmatpush1.msra.mxu0 0.0
      %857 = vmatprep.subr.mxu0 0.0
      %858 = vmatpush1.msra.mxu0 0.0
      %859 = vmatprep.subr.mxu0 0.0
      %860 = vmatpush1.msra.mxu0 0.0
      %861 = vmatprep.subr.mxu0 0.0
      %862 = vmatpush1.msra.mxu0 0.0
      %863 = vmatprep.subr.mxu0 0.0
      %864 = vmatpush1.msra.mxu0 0.0
      %865 = vmatprep.subr.mxu0 0.0
      %866 = vmatpush1.msra.mxu0 0.0
      %867 = vmatprep.subr.mxu0 0.0
      %868 = vmatpush1.msra.mxu0 0.0
      %869 = vmatprep.subr.mxu0 0.0
      %870 = vmatpush1.msra.mxu0 0.0
      %871 = vmatprep.subr.mxu0 0.0
      %872 = vmatpush1.msra.mxu0 0.0
      %873 = vmatprep.subr.mxu0 0.0
      %874 = vmatpush1.msra.mxu0 0.0
      %875 = vmatprep.subr.mxu0 0.0
      %876 = vmatpush1.msra.mxu0 0.0
      %877 = vmatprep.mubr.f32.mxu0 0.0
      %878 = vmatmul.mubr.f32.gmra.mrb[0].mxu0 %v811
      %v879 = vpop.f32.mrb[0].mxu0
      %v880 = vadd.f32 %v807, %v879
      %v881 = vpop.f32.mrb[0].mxu0
      %882 = vdwg.mxu0
      %v884 = vsel %vm382, %v694, 0
      %886 = vmatprep.subr.mxu0 0.0
      %887 = vmatpush1.msra.mxu0 %v365
      %888 = vmatprep.subr.mxu0 0.0
      %889 = vmatpush1.msra.mxu0 %v366
      %890 = vmatprep.subr.mxu0 0.0
      %891 = vmatpush1.msra.mxu0 %v367
      %892 = vmatprep.subr.mxu0 0.0
      %893 = vmatpush1.msra.mxu0 %v368
      %894 = vmatprep.subr.mxu0 0.0
      %895 = vmatpush1.msra.mxu0 0.0
      %896 = vmatprep.subr.mxu0 0.0
      %897 = vmatpush1.msra.mxu0 0.0
      %898 = vmatprep.subr.mxu0 0.0
      %899 = vmatpush1.msra.mxu0 0.0
      %900 = vmatprep.subr.mxu0 0.0
      %901 = vmatpush1.msra.mxu0 0.0
      %902 = vmatprep.subr.mxu0 0.0
      %903 = vmatpush1.msra.mxu0 0.0
      %904 = vmatprep.subr.mxu0 0.0
      %905 = vmatpush1.msra.mxu0 0.0
      %906 = vmatprep.subr.mxu0 0.0
      %907 = vmatpush1.msra.mxu0 0.0
      %908 = vmatprep.subr.mxu0 0.0
      %909 = vmatpush1.msra.mxu0 0.0
      %910 = vmatprep.subr.mxu0 0.0
      %911 = vmatpush1.msra.mxu0 0.0
      %912 = vmatprep.subr.mxu0 0.0
      %913 = vmatpush1.msra.mxu0 0.0
      %914 = vmatprep.subr.mxu0 0.0
      %915 = vmatpush1.msra.mxu0 0.0
      %916 = vmatprep.subr.mxu0 0.0
      %917 = vmatpush1.msra.mxu0 0.0
      %918 = vmatprep.subr.mxu0 0.0
      %919 = vmatpush1.msra.mxu0 0.0
      %920 = vmatprep.subr.mxu0 0.0
      %921 = vmatpush1.msra.mxu0 0.0
      %922 = vmatprep.subr.mxu0 0.0
      %923 = vmatpush1.msra.mxu0 0.0
      %924 = vmatprep.subr.mxu0 0.0
      %925 = vmatpush1.msra.mxu0 0.0
      %926 = vmatprep.subr.mxu0 0.0
      %927 = vmatpush1.msra.mxu0 0.0
      %928 = vmatprep.subr.mxu0 0.0
      %929 = vmatpush1.msra.mxu0 0.0
      %930 = vmatprep.subr.mxu0 0.0
      %931 = vmatpush1.msra.mxu0 0.0
      %932 = vmatprep.subr.mxu0 0.0
      %933 = vmatpush1.msra.mxu0 0.0
      %934 = vmatprep.subr.mxu0 0.0
      %935 = vmatpush1.msra.mxu0 0.0
      %936 = vmatprep.subr.mxu0 0.0
      %937 = vmatpush1.msra.mxu0 0.0
      %938 = vmatprep.subr.mxu0 0.0
      %939 = vmatpush1.msra.mxu0 0.0
      %940 = vmatprep.subr.mxu0 0.0
      %941 = vmatpush1.msra.mxu0 0.0
      %942 = vmatprep.subr.mxu0 0.0
      %943 = vmatpush1.msra.mxu0 0.0
      %944 = vmatprep.subr.mxu0 0.0
      %945 = vmatpush1.msra.mxu0 0.0
      %946 = vmatprep.subr.mxu0 0.0
      %947 = vmatpush1.msra.mxu0 0.0
      %948 = vmatprep.subr.mxu0 0.0
      %949 = vmatpush1.msra.mxu0 0.0
      %950 = vmatprep.mubr.f32.mxu0 0.0
      %951 = vmatmul.mubr.f32.gmra.mrb[0].mxu0 %v884
      %v952 = vpop.f32.mrb[0].mxu0
      %v953 = vadd.f32 %v572, %v952
      %v954 = vpop.f32.mrb[0].mxu0
      %955 = vdwg.mxu0
      %v956 = vadd.f32 %v880, %v953
      %v957 = vxor.u32 %v956, 2147483648
      %v958 = vmul.f32 %v957, 1.442695
      %v959 = vpow.pop %v958
      %v960 = vadd.f32 %v959, 1.0
      %v961 = vrcp.pop %v960
      %v962 = vmul.f32 1.0, %v961
      %964 = vrot.lane.b32.xlu0 %v953, 64
      %v965 = vpop.permute.xlu0 %964
      %v967 = vmul.f32 %v962, %v965
      %969 = vrot.lane.b32.xlu0 %v967, 64
      %v970 = vpop.permute.xlu0 %969
      %v972 = vadd.f32 %v880, %v970
      %v973 = vtanh.pop %v972
      %v974 = vsub.f32 1.0, %v962
      %976 = vrot.lane.b32.xlu0 %v973, 96
      %v977 = vpop.permute.xlu0 %976
      %v979 = vmul.f32 %v974, %v977
      %980 = vrot.lane.b32.xlu0 %v694, 32
      %v981 = vpop.permute.xlu0 %980
      %v983 = vmul.f32 %v962, %v981
      %v984 = vadd.f32 %v979, %v983
      %986 = vrot.lane.b32.xlu0 %v798, 96
      %v987 = vpop.permute.xlu0 %986
      %989 = vst.msk [vmem:[#allocation2] sm:$0x3] %vm680, %v987
      %991 = vrot.lane.b32.xlu0 %v984, 96
      %v992 = vpop.permute.xlu0 %991
      %994 = vst.msk [vmem:[#allocation3] sm:$0x3] %vm680, %v992
      %v995 = vadd.f32 %v984, %v805
      %997 = vrot.lane.b32.xlu0 %v995, 96
      %v998 = vpop.permute.xlu0 %997
      %s1000 = scalar_lea.vmem %s351, 2
      %1001 = vst.msk [vmem:[%s1000] sm:$0x3] %vm680, %v998
      %v1002 = vld [vmem:[#allocation2] sm:$0x3]
      %v1003 = vld [vmem:[#allocation3] sm:$0x3]
      %v1005 = vsel %vm382, %v1002, 0
      %1007 = vmatprep.subr.mxu0 0.0
      %1008 = vmatpush1.msra.mxu0 %v360
      %1009 = vmatprep.subr.mxu0 0.0
      %1010 = vmatpush1.msra.mxu0 %v361
      %1011 = vmatprep.subr.mxu0 0.0
      %1012 = vmatpush1.msra.mxu0 %v362
      %1013 = vmatprep.subr.mxu0 0.0
      %1014 = vmatpush1.msra.mxu0 %v363
      %1015 = vmatprep.subr.mxu0 0.0
      %1016 = vmatpush1.msra.mxu0 0.0
      %1017 = vmatprep.subr.mxu0 0.0
      %1018 = vmatpush1.msra.mxu0 0.0
      %1019 = vmatprep.subr.mxu0 0.0
      %1020 = vmatpush1.msra.mxu0 0.0
      %1021 = vmatprep.subr.mxu0 0.0
      %1022 = vmatpush1.msra.mxu0 0.0
      %1023 = vmatprep.subr.mxu0 0.0
      %1024 = vmatpush1.msra.mxu0 0.0
      %1025 = vmatprep.subr.mxu0 0.0
      %1026 = vmatpush1.msra.mxu0 0.0
      %1027 = vmatprep.subr.mxu0 0.0
      %1028 = vmatpush1.msra.mxu0 0.0
      %1029 = vmatprep.subr.mxu0 0.0
      %1030 = vmatpush1.msra.mxu0 0.0
      %1031 = vmatprep.subr.mxu0 0.0
      %1032 = vmatpush1.msra.mxu0 0.0
      %1033 = vmatprep.subr.mxu0 0.0
      %1034 = vmatpush1.msra.mxu0 0.0
      %1035 = vmatprep.subr.mxu0 0.0
      %1036 = vmatpush1.msra.mxu0 0.0
      %1037 = vmatprep.subr.mxu0 0.0
      %1038 = vmatpush1.msra.mxu0 0.0
      %1039 = vmatprep.subr.mxu0 0.0
      %1040 = vmatpush1.msra.mxu0 0.0
      %1041 = vmatprep.subr.mxu0 0.0
      %1042 = vmatpush1.msra.mxu0 0.0
      %1043 = vmatprep.subr.mxu0 0.0
      %1044 = vmatpush1.msra.mxu0 0.0
      %1045 = vmatprep.subr.mxu0 0.0
      %1046 = vmatpush1.msra.mxu0 0.0
      %1047 = vmatprep.subr.mxu0 0.0
      %1048 = vmatpush1.msra.mxu0 0.0
      %1049 = vmatprep.subr.mxu0 0.0
      %1050 = vmatpush1.msra.mxu0 0.0
      %1051 = vmatprep.subr.mxu0 0.0
      %1052 = vmatpush1.msra.mxu0 0.0
      %1053 = vmatprep.subr.mxu0 0.0
      %1054 = vmatpush1.msra.mxu0 0.0
      %1055 = vmatprep.subr.mxu0 0.0
      %1056 = vmatpush1.msra.mxu0 0.0
      %1057 = vmatprep.subr.mxu0 0.0
      %1058 = vmatpush1.msra.mxu0 0.0
      %1059 = vmatprep.subr.mxu0 0.0
      %1060 = vmatpush1.msra.mxu0 0.0
      %1061 = vmatprep.subr.mxu0 0.0
      %1062 = vmatpush1.msra.mxu0 0.0
      %1063 = vmatprep.subr.mxu0 0.0
      %1064 = vmatpush1.msra.mxu0 0.0
      %1065 = vmatprep.subr.mxu0 0.0
      %1066 = vmatpush1.msra.mxu0 0.0
      %1067 = vmatprep.subr.mxu0 0.0
      %1068 = vmatpush1.msra.mxu0 0.0
      %1069 = vmatprep.subr.mxu0 0.0
      %1070 = vmatpush1.msra.mxu0 0.0
      %1071 = vmatprep.mubr.f32.mxu0 0.0
      %1072 = vmatmul.mubr.f32.gmra.mrb[0].mxu0 %v1005
      %v1073 = vpop.f32.mrb[0].mxu0
      %v1074 = vadd.f32 %v380, %v1073
      %v1075 = vpop.f32.mrb[0].mxu0
      %1076 = vdwg.mxu0
      %s1077 = scalar_lea.vmem %s333, 4
      %v1078 = vld [vmem:[%s1077] sm:$0x3]
      %v1079 = vadd.f32 %v1078, %v1074
      %v1080 = vxor.u32 %v1079, 2147483648
      %v1081 = vmul.f32 %v1080, 1.442695
      %v1082 = vpow.pop %v1081
      %v1083 = vadd.f32 %v1082, 1.0
      %v1084 = vrcp.pop %v1083
      %v1085 = vmul.f32 1.0, %v1084
      %1087 = vrot.lane.b32.xlu0 %v1074, 64
      %v1088 = vpop.permute.xlu0 %1087
      %v1090 = vmul.f32 %v1085, %v1088
      %1092 = vrot.lane.b32.xlu0 %v1090, 64
      %v1093 = vpop.permute.xlu0 %1092
      %v1095 = vadd.f32 %v1078, %v1093
      %v1096 = vtanh.pop %v1095
      %v1097 = vsub.f32 1.0, %v1085
      %1099 = vrot.lane.b32.xlu0 %v1096, 96
      %v1100 = vpop.permute.xlu0 %1099
      %v1102 = vmul.f32 %v1097, %v1100
      %1103 = vrot.lane.b32.xlu0 %v1002, 32
      %v1104 = vpop.permute.xlu0 %1103
      %v1106 = vmul.f32 %v1085, %v1104
      %v1107 = vadd.f32 %v1102, %v1106
      %s1108 = scalar_lea.vmem %s345, 4
      %v1109 = vld [vmem:[%s1108] sm:$0x3]
      %1111 = vrot.lane.b32.xlu0 %v1109, 32
      %v1112 = vpop.permute.xlu0 %1111
      %v1114 = vadd.f32 %v1107, %v1112
      %s1115 = scalar_lea.vmem %s339, 4
      %v1116 = vld [vmem:[%s1115] sm:$0x3]
      %1118 = vrot.lane.b32.xlu0 %v1114, 96
      %v1119 = vpop.permute.xlu0 %1118
      %v1120 = vsel %vm382, %v1119, 0
      %1122 = vmatprep.subr.mxu0 0.0
      %1123 = vmatpush1.msra.mxu0 %v370
      %1124 = vmatprep.subr.mxu0 0.0
      %1125 = vmatpush1.msra.mxu0 %v371
      %1126 = vmatprep.subr.mxu0 0.0
      %1127 = vmatpush1.msra.mxu0 %v372
      %1128 = vmatprep.subr.mxu0 0.0
      %1129 = vmatpush1.msra.mxu0 %v373
      %1130 = vmatprep.subr.mxu0 0.0
      %1131 = vmatpush1.msra.mxu0 0.0
      %1132 = vmatprep.subr.mxu0 0.0
      %1133 = vmatpush1.msra.mxu0 0.0
      %1134 = vmatprep.subr.mxu0 0.0
      %1135 = vmatpush1.msra.mxu0 0.0
      %1136 = vmatprep.subr.mxu0 0.0
      %1137 = vmatpush1.msra.mxu0 0.0
      %1138 = vmatprep.subr.mxu0 0.0
      %1139 = vmatpush1.msra.mxu0 0.0
      %1140 = vmatprep.subr.mxu0 0.0
      %1141 = vmatpush1.msra.mxu0 0.0
      %1142 = vmatprep.subr.mxu0 0.0
      %1143 = vmatpush1.msra.mxu0 0.0
      %1144 = vmatprep.subr.mxu0 0.0
      %1145 = vmatpush1.msra.mxu0 0.0
      %1146 = vmatprep.subr.mxu0 0.0
      %1147 = vmatpush1.msra.mxu0 0.0
      %1148 = vmatprep.subr.mxu0 0.0
      %1149 = vmatpush1.msra.mxu0 0.0
      %1150 = vmatprep.subr.mxu0 0.0
      %1151 = vmatpush1.msra.mxu0 0.0
      %1152 = vmatprep.subr.mxu0 0.0
      %1153 = vmatpush1.msra.mxu0 0.0
      %1154 = vmatprep.subr.mxu0 0.0
      %1155 = vmatpush1.msra.mxu0 0.0
      %1156 = vmatprep.subr.mxu0 0.0
      %1157 = vmatpush1.msra.mxu0 0.0
      %1158 = vmatprep.subr.mxu0 0.0
      %1159 = vmatpush1.msra.mxu0 0.0
      %1160 = vmatprep.subr.mxu0 0.0
      %1161 = vmatpush1.msra.mxu0 0.0
      %1162 = vmatprep.subr.mxu0 0.0
      %1163 = vmatpush1.msra.mxu0 0.0
      %1164 = vmatprep.subr.mxu0 0.0
      %1165 = vmatpush1.msra.mxu0 0.0
      %1166 = vmatprep.subr.mxu0 0.0
      %1167 = vmatpush1.msra.mxu0 0.0
      %1168 = vmatprep.subr.mxu0 0.0
      %1169 = vmatpush1.msra.mxu0 0.0
      %1170 = vmatprep.subr.mxu0 0.0
      %1171 = vmatpush1.msra.mxu0 0.0
      %1172 = vmatprep.subr.mxu0 0.0
      %1173 = vmatpush1.msra.mxu0 0.0
      %1174 = vmatprep.subr.mxu0 0.0
      %1175 = vmatpush1.msra.mxu0 0.0
      %1176 = vmatprep.subr.mxu0 0.0
      %1177 = vmatpush1.msra.mxu0 0.0
      %1178 = vmatprep.subr.mxu0 0.0
      %1179 = vmatpush1.msra.mxu0 0.0
      %1180 = vmatprep.subr.mxu0 0.0
      %1181 = vmatpush1.msra.mxu0 0.0
      %1182 = vmatprep.subr.mxu0 0.0
      %1183 = vmatpush1.msra.mxu0 0.0
      %1184 = vmatprep.subr.mxu0 0.0
      %1185 = vmatpush1.msra.mxu0 0.0
      %1186 = vmatprep.mubr.f32.mxu0 0.0
      %1187 = vmatmul.mubr.f32.gmra.mrb[0].mxu0 %v1120
      %v1188 = vpop.f32.mrb[0].mxu0
      %v1189 = vadd.f32 %v1116, %v1188
      %v1190 = vpop.f32.mrb[0].mxu0
      %1191 = vdwg.mxu0
      %v1193 = vsel %vm382, %v1003, 0
      %1195 = vmatprep.subr.mxu0 0.0
      %1196 = vmatpush1.msra.mxu0 %v365
      %1197 = vmatprep.subr.mxu0 0.0
      %1198 = vmatpush1.msra.mxu0 %v366
      %1199 = vmatprep.subr.mxu0 0.0
      %1200 = vmatpush1.msra.mxu0 %v367
      %1201 = vmatprep.subr.mxu0 0.0
      %1202 = vmatpush1.msra.mxu0 %v368
      %1203 = vmatprep.subr.mxu0 0.0
      %1204 = vmatpush1.msra.mxu0 0.0
      %1205 = vmatprep.subr.mxu0 0.0
      %1206 = vmatpush1.msra.mxu0 0.0
      %1207 = vmatprep.subr.mxu0 0.0
      %1208 = vmatpush1.msra.mxu0 0.0
      %1209 = vmatprep.subr.mxu0 0.0
      %1210 = vmatpush1.msra.mxu0 0.0
      %1211 = vmatprep.subr.mxu0 0.0
      %1212 = vmatpush1.msra.mxu0 0.0
      %1213 = vmatprep.subr.mxu0 0.0
      %1214 = vmatpush1.msra.mxu0 0.0
      %1215 = vmatprep.subr.mxu0 0.0
      %1216 = vmatpush1.msra.mxu0 0.0
      %1217 = vmatprep.subr.mxu0 0.0
      %1218 = vmatpush1.msra.mxu0 0.0
      %1219 = vmatprep.subr.mxu0 0.0
      %1220 = vmatpush1.msra.mxu0 0.0
      %1221 = vmatprep.subr.mxu0 0.0
      %1222 = vmatpush1.msra.mxu0 0.0
      %1223 = vmatprep.subr.mxu0 0.0
      %1224 = vmatpush1.msra.mxu0 0.0
      %1225 = vmatprep.subr.mxu0 0.0
      %1226 = vmatpush1.msra.mxu0 0.0
      %1227 = vmatprep.subr.mxu0 0.0
      %1228 = vmatpush1.msra.mxu0 0.0
      %1229 = vmatprep.subr.mxu0 0.0
      %1230 = vmatpush1.msra.mxu0 0.0
      %1231 = vmatprep.subr.mxu0 0.0
      %1232 = vmatpush1.msra.mxu0 0.0
      %1233 = vmatprep.subr.mxu0 0.0
      %1234 = vmatpush1.msra.mxu0 0.0
      %1235 = vmatprep.subr.mxu0 0.0
      %1236 = vmatpush1.msra.mxu0 0.0
      %1237 = vmatprep.subr.mxu0 0.0
      %1238 = vmatpush1.msra.mxu0 0.0
      %1239 = vmatprep.subr.mxu0 0.0
      %1240 = vmatpush1.msra.mxu0 0.0
      %1241 = vmatprep.subr.mxu0 0.0
      %1242 = vmatpush1.msra.mxu0 0.0
      %1243 = vmatprep.subr.mxu0 0.0
      %1244 = vmatpush1.msra.mxu0 0.0
      %1245 = vmatprep.subr.mxu0 0.0
      %1246 = vmatpush1.msra.mxu0 0.0
      %1247 = vmatprep.subr.mxu0 0.0
      %1248 = vmatpush1.msra.mxu0 0.0
      %1249 = vmatprep.subr.mxu0 0.0
      %1250 = vmatpush1.msra.mxu0 0.0
      %1251 = vmatprep.subr.mxu0 0.0
      %1252 = vmatpush1.msra.mxu0 0.0
      %1253 = vmatprep.subr.mxu0 0.0
      %1254 = vmatpush1.msra.mxu0 0.0
      %1255 = vmatprep.subr.mxu0 0.0
      %1256 = vmatpush1.msra.mxu0 0.0
      %1257 = vmatprep.subr.mxu0 0.0
      %1258 = vmatpush1.msra.mxu0 0.0
      %1259 = vmatprep.mubr.f32.mxu0 0.0
      %1260 = vmatmul.mubr.f32.gmra.mrb[0].mxu0 %v1193
      %v1261 = vpop.f32.mrb[0].mxu0
      %v1262 = vadd.f32 %v572, %v1261
      %v1263 = vpop.f32.mrb[0].mxu0
      %1264 = vdwg.mxu0
      %v1265 = vadd.f32 %v1189, %v1262
      %v1266 = vxor.u32 %v1265, 2147483648
      %v1267 = vmul.f32 %v1266, 1.442695
      %v1268 = vpow.pop %v1267
      %v1269 = vadd.f32 %v1268, 1.0
      %v1270 = vrcp.pop %v1269
      %v1271 = vmul.f32 1.0, %v1270
      %1273 = vrot.lane.b32.xlu0 %v1262, 64
      %v1274 = vpop.permute.xlu0 %1273
      %v1276 = vmul.f32 %v1271, %v1274
      %1278 = vrot.lane.b32.xlu0 %v1276, 64
      %v1279 = vpop.permute.xlu0 %1278
      %v1281 = vadd.f32 %v1189, %v1279
      %v1282 = vtanh.pop %v1281
      %v1283 = vsub.f32 1.0, %v1271
      %1285 = vrot.lane.b32.xlu0 %v1282, 96
      %v1286 = vpop.permute.xlu0 %1285
      %v1288 = vmul.f32 %v1283, %v1286
      %1289 = vrot.lane.b32.xlu0 %v1003, 32
      %v1290 = vpop.permute.xlu0 %1289
      %v1292 = vmul.f32 %v1271, %v1290
      %v1293 = vadd.f32 %v1288, %v1292
      %1295 = vrot.lane.b32.xlu0 %v1107, 96
      %v1296 = vpop.permute.xlu0 %1295
      %1298 = vst.msk [vmem:[#allocation2] sm:$0x3] %vm680, %v1296
      %1300 = vrot.lane.b32.xlu0 %v1293, 96
      %v1301 = vpop.permute.xlu0 %1300
      %1303 = vst.msk [vmem:[#allocation3] sm:$0x3] %vm680, %v1301
      %v1304 = vadd.f32 %v1293, %v1114
      %1306 = vrot.lane.b32.xlu0 %v1304, 96
      %v1307 = vpop.permute.xlu0 %1306
      %s1309 = scalar_lea.vmem %s351, 4
      %1310 = vst.msk [vmem:[%s1309] sm:$0x3] %vm680, %v1307
      %v1311 = vld [vmem:[#allocation2] sm:$0x3]
      %v1312 = vld [vmem:[#allocation3] sm:$0x3]
      %v1314 = vsel %vm382, %v1311, 0
      %1316 = vmatprep.subr.mxu0 0.0
      %1317 = vmatpush1.msra.mxu0 %v360
      %1318 = vmatprep.subr.mxu0 0.0
      %1319 = vmatpush1.msra.mxu0 %v361
      %1320 = vmatprep.subr.mxu0 0.0
      %1321 = vmatpush1.msra.mxu0 %v362
      %1322 = vmatprep.subr.mxu0 0.0
      %1323 = vmatpush1.msra.mxu0 %v363
      %1324 = vmatprep.subr.mxu0 0.0
      %1325 = vmatpush1.msra.mxu0 0.0
      %1326 = vmatprep.subr.mxu0 0.0
      %1327 = vmatpush1.msra.mxu0 0.0
      %1328 = vmatprep.subr.mxu0 0.0
      %1329 = vmatpush1.msra.mxu0 0.0
      %1330 = vmatprep.subr.mxu0 0.0
      %1331 = vmatpush1.msra.mxu0 0.0
      %1332 = vmatprep.subr.mxu0 0.0
      %1333 = vmatpush1.msra.mxu0 0.0
      %1334 = vmatprep.subr.mxu0 0.0
      %1335 = vmatpush1.msra.mxu0 0.0
      %1336 = vmatprep.subr.mxu0 0.0
      %1337 = vmatpush1.msra.mxu0 0.0
      %1338 = vmatprep.subr.mxu0 0.0
      %1339 = vmatpush1.msra.mxu0 0.0
      %1340 = vmatprep.subr.mxu0 0.0
      %1341 = vmatpush1.msra.mxu0 0.0
      %1342 = vmatprep.subr.mxu0 0.0
      %1343 = vmatpush1.msra.mxu0 0.0
      %1344 = vmatprep.subr.mxu0 0.0
      %1345 = vmatpush1.msra.mxu0 0.0
      %1346 = vmatprep.subr.mxu0 0.0
      %1347 = vmatpush1.msra.mxu0 0.0
      %1348 = vmatprep.subr.mxu0 0.0
      %1349 = vmatpush1.msra.mxu0 0.0
      %1350 = vmatprep.subr.mxu0 0.0
      %1351 = vmatpush1.msra.mxu0 0.0
      %1352 = vmatprep.subr.mxu0 0.0
      %1353 = vmatpush1.msra.mxu0 0.0
      %1354 = vmatprep.subr.mxu0 0.0
      %1355 = vmatpush1.msra.mxu0 0.0
      %1356 = vmatprep.subr.mxu0 0.0
      %1357 = vmatpush1.msra.mxu0 0.0
      %1358 = vmatprep.subr.mxu0 0.0
      %1359 = vmatpush1.msra.mxu0 0.0
      %1360 = vmatprep.subr.mxu0 0.0
      %1361 = vmatpush1.msra.mxu0 0.0
      %1362 = vmatprep.subr.mxu0 0.0
      %1363 = vmatpush1.msra.mxu0 0.0
      %1364 = vmatprep.subr.mxu0 0.0
      %1365 = vmatpush1.msra.mxu0 0.0
      %1366 = vmatprep.subr.mxu0 0.0
      %1367 = vmatpush1.msra.mxu0 0.0
      %1368 = vmatprep.subr.mxu0 0.0
      %1369 = vmatpush1.msra.mxu0 0.0
      %1370 = vmatprep.subr.mxu0 0.0
      %1371 = vmatpush1.msra.mxu0 0.0
      %1372 = vmatprep.subr.mxu0 0.0
      %1373 = vmatpush1.msra.mxu0 0.0
      %1374 = vmatprep.subr.mxu0 0.0
      %1375 = vmatpush1.msra.mxu0 0.0
      %1376 = vmatprep.subr.mxu0 0.0
      %1377 = vmatpush1.msra.mxu0 0.0
      %1378 = vmatprep.subr.mxu0 0.0
      %1379 = vmatpush1.msra.mxu0 0.0
      %1380 = vmatprep.mubr.f32.mxu0 0.0
      %1381 = vmatmul.mubr.f32.gmra.mrb[0].mxu0 %v1314
      %v1382 = vpop.f32.mrb[0].mxu0
      %v1383 = vadd.f32 %v380, %v1382
      %v1384 = vpop.f32.mrb[0].mxu0
      %1385 = vdwg.mxu0
      %s1386 = scalar_lea.vmem %s333, 6
      %v1387 = vld [vmem:[%s1386] sm:$0x3]
      %v1388 = vadd.f32 %v1387, %v1383
      %v1389 = vxor.u32 %v1388, 2147483648
      %v1390 = vmul.f32 %v1389, 1.442695
      %v1391 = vpow.pop %v1390
      %v1392 = vadd.f32 %v1391, 1.0
      %v1393 = vrcp.pop %v1392
      %v1394 = vmul.f32 1.0, %v1393
      %1396 = vrot.lane.b32.xlu0 %v1383, 64
      %v1397 = vpop.permute.xlu0 %1396
      %v1399 = vmul.f32 %v1394, %v1397
      %1401 = vrot.lane.b32.xlu0 %v1399, 64
      %v1402 = vpop.permute.xlu0 %1401
      %v1404 = vadd.f32 %v1387, %v1402
      %v1405 = vtanh.pop %v1404
      %v1406 = vsub.f32 1.0, %v1394
      %1408 = vrot.lane.b32.xlu0 %v1405, 96
      %v1409 = vpop.permute.xlu0 %1408
      %v1411 = vmul.f32 %v1406, %v1409
      %1412 = vrot.lane.b32.xlu0 %v1311, 32
      %v1413 = vpop.permute.xlu0 %1412
      %v1415 = vmul.f32 %v1394, %v1413
      %v1416 = vadd.f32 %v1411, %v1415
      %s1417 = scalar_lea.vmem %s345, 6
      %v1418 = vld [vmem:[%s1417] sm:$0x3]
      %1420 = vrot.lane.b32.xlu0 %v1418, 32
      %v1421 = vpop.permute.xlu0 %1420
      %v1423 = vadd.f32 %v1416, %v1421
      %s1424 = scalar_lea.vmem %s339, 6
      %v1425 = vld [vmem:[%s1424] sm:$0x3]
      %1427 = vrot.lane.b32.xlu0 %v1423, 96
      %v1428 = vpop.permute.xlu0 %1427
      %v1429 = vsel %vm382, %v1428, 0
      %1431 = vmatprep.subr.mxu0 0.0
      %1432 = vmatpush1.msra.mxu0 %v370
      %1433 = vmatprep.subr.mxu0 0.0
      %1434 = vmatpush1.msra.mxu0 %v371
      %1435 = vmatprep.subr.mxu0 0.0
      %1436 = vmatpush1.msra.mxu0 %v372
      %1437 = vmatprep.subr.mxu0 0.0
      %1438 = vmatpush1.msra.mxu0 %v373
      %1439 = vmatprep.subr.mxu0 0.0
      %1440 = vmatpush1.msra.mxu0 0.0
      %1441 = vmatprep.subr.mxu0 0.0
      %1442 = vmatpush1.msra.mxu0 0.0
      %1443 = vmatprep.subr.mxu0 0.0
      %1444 = vmatpush1.msra.mxu0 0.0
      %1445 = vmatprep.subr.mxu0 0.0
      %1446 = vmatpush1.msra.mxu0 0.0
      %1447 = vmatprep.subr.mxu0 0.0
      %1448 = vmatpush1.msra.mxu0 0.0
      %1449 = vmatprep.subr.mxu0 0.0
      %1450 = vmatpush1.msra.mxu0 0.0
      %1451 = vmatprep.subr.mxu0 0.0
      %1452 = vmatpush1.msra.mxu0 0.0
      %1453 = vmatprep.subr.mxu0 0.0
      %1454 = vmatpush1.msra.mxu0 0.0
      %1455 = vmatprep.subr.mxu0 0.0
      %1456 = vmatpush1.msra.mxu0 0.0
      %1457 = vmatprep.subr.mxu0 0.0
      %1458 = vmatpush1.msra.mxu0 0.0
      %1459 = vmatprep.subr.mxu0 0.0
      %1460 = vmatpush1.msra.mxu0 0.0
      %1461 = vmatprep.subr.mxu0 0.0
      %1462 = vmatpush1.msra.mxu0 0.0
      %1463 = vmatprep.subr.mxu0 0.0
      %1464 = vmatpush1.msra.mxu0 0.0
      %1465 = vmatprep.subr.mxu0 0.0
      %1466 = vmatpush1.msra.mxu0 0.0
      %1467 = vmatprep.subr.mxu0 0.0
      %1468 = vmatpush1.msra.mxu0 0.0
      %1469 = vmatprep.subr.mxu0 0.0
      %1470 = vmatpush1.msra.mxu0 0.0
      %1471 = vmatprep.subr.mxu0 0.0
      %1472 = vmatpush1.msra.mxu0 0.0
      %1473 = vmatprep.subr.mxu0 0.0
      %1474 = vmatpush1.msra.mxu0 0.0
      %1475 = vmatprep.subr.mxu0 0.0
      %1476 = vmatpush1.msra.mxu0 0.0
      %1477 = vmatprep.subr.mxu0 0.0
      %1478 = vmatpush1.msra.mxu0 0.0
      %1479 = vmatprep.subr.mxu0 0.0
      %1480 = vmatpush1.msra.mxu0 0.0
      %1481 = vmatprep.subr.mxu0 0.0
      %1482 = vmatpush1.msra.mxu0 0.0
      %1483 = vmatprep.subr.mxu0 0.0
      %1484 = vmatpush1.msra.mxu0 0.0
      %1485 = vmatprep.subr.mxu0 0.0
      %1486 = vmatpush1.msra.mxu0 0.0
      %1487 = vmatprep.subr.mxu0 0.0
      %1488 = vmatpush1.msra.mxu0 0.0
      %1489 = vmatprep.subr.mxu0 0.0
      %1490 = vmatpush1.msra.mxu0 0.0
      %1491 = vmatprep.subr.mxu0 0.0
      %1492 = vmatpush1.msra.mxu0 0.0
      %1493 = vmatprep.subr.mxu0 0.0
      %1494 = vmatpush1.msra.mxu0 0.0
      %1495 = vmatprep.mubr.f32.mxu0 0.0
      %1496 = vmatmul.mubr.f32.gmra.mrb[0].mxu0 %v1429
      %v1497 = vpop.f32.mrb[0].mxu0
      %v1498 = vadd.f32 %v1425, %v1497
      %v1499 = vpop.f32.mrb[0].mxu0
      %1500 = vdwg.mxu0
      %v1502 = vsel %vm382, %v1312, 0
      %1504 = vmatprep.subr.mxu0 0.0
      %1505 = vmatpush1.msra.mxu0 %v365
      %1506 = vmatprep.subr.mxu0 0.0
      %1507 = vmatpush1.msra.mxu0 %v366
      %1508 = vmatprep.subr.mxu0 0.0
      %1509 = vmatpush1.msra.mxu0 %v367
      %1510 = vmatprep.subr.mxu0 0.0
      %1511 = vmatpush1.msra.mxu0 %v368
      %1512 = vmatprep.subr.mxu0 0.0
      %1513 = vmatpush1.msra.mxu0 0.0
      %1514 = vmatprep.subr.mxu0 0.0
      %1515 = vmatpush1.msra.mxu0 0.0
      %1516 = vmatprep.subr.mxu0 0.0
      %1517 = vmatpush1.msra.mxu0 0.0
      %1518 = vmatprep.subr.mxu0 0.0
      %1519 = vmatpush1.msra.mxu0 0.0
      %1520 = vmatprep.subr.mxu0 0.0
      %1521 = vmatpush1.msra.mxu0 0.0
      %1522 = vmatprep.subr.mxu0 0.0
      %1523 = vmatpush1.msra.mxu0 0.0
      %1524 = vmatprep.subr.mxu0 0.0
      %1525 = vmatpush1.msra.mxu0 0.0
      %1526 = vmatprep.subr.mxu0 0.0
      %1527 = vmatpush1.msra.mxu0 0.0
      %1528 = vmatprep.subr.mxu0 0.0
      %1529 = vmatpush1.msra.mxu0 0.0
      %1530 = vmatprep.subr.mxu0 0.0
      %1531 = vmatpush1.msra.mxu0 0.0
      %1532 = vmatprep.subr.mxu0 0.0
      %1533 = vmatpush1.msra.mxu0 0.0
      %1534 = vmatprep.subr.mxu0 0.0
      %1535 = vmatpush1.msra.mxu0 0.0
      %1536 = vmatprep.subr.mxu0 0.0
      %1537 = vmatpush1.msra.mxu0 0.0
      %1538 = vmatprep.subr.mxu0 0.0
      %1539 = vmatpush1.msra.mxu0 0.0
      %1540 = vmatprep.subr.mxu0 0.0
      %1541 = vmatpush1.msra.mxu0 0.0
      %1542 = vmatprep.subr.mxu0 0.0
      %1543 = vmatpush1.msra.mxu0 0.0
      %1544 = vmatprep.subr.mxu0 0.0
      %1545 = vmatpush1.msra.mxu0 0.0
      %1546 = vmatprep.subr.mxu0 0.0
      %1547 = vmatpush1.msra.mxu0 0.0
      %1548 = vmatprep.subr.mxu0 0.0
      %1549 = vmatpush1.msra.mxu0 0.0
      %1550 = vmatprep.subr.mxu0 0.0
      %1551 = vmatpush1.msra.mxu0 0.0
      %1552 = vmatprep.subr.mxu0 0.0
      %1553 = vmatpush1.msra.mxu0 0.0
      %1554 = vmatprep.subr.mxu0 0.0
      %1555 = vmatpush1.msra.mxu0 0.0
      %1556 = vmatprep.subr.mxu0 0.0
      %1557 = vmatpush1.msra.mxu0 0.0
      %1558 = vmatprep.subr.mxu0 0.0
      %1559 = vmatpush1.msra.mxu0 0.0
      %1560 = vmatprep.subr.mxu0 0.0
      %1561 = vmatpush1.msra.mxu0 0.0
      %1562 = vmatprep.subr.mxu0 0.0
      %1563 = vmatpush1.msra.mxu0 0.0
      %1564 = vmatprep.subr.mxu0 0.0
      %1565 = vmatpush1.msra.mxu0 0.0
      %1566 = vmatprep.subr.mxu0 0.0
      %1567 = vmatpush1.msra.mxu0 0.0
      %1568 = vmatprep.mubr.f32.mxu0 0.0
      %1569 = vmatmul.mubr.f32.gmra.mrb[0].mxu0 %v1502
      %v1570 = vpop.f32.mrb[0].mxu0
      %v1571 = vadd.f32 %v572, %v1570
      %v1572 = vpop.f32.mrb[0].mxu0
      %1573 = vdwg.mxu0
      %v1574 = vadd.f32 %v1498, %v1571
      %v1575 = vxor.u32 %v1574, 2147483648
      %v1576 = vmul.f32 %v1575, 1.442695
      %v1577 = vpow.pop %v1576
      %v1578 = vadd.f32 %v1577, 1.0
      %v1579 = vrcp.pop %v1578
      %v1580 = vmul.f32 1.0, %v1579
      %1582 = vrot.lane.b32.xlu0 %v1571, 64
      %v1583 = vpop.permute.xlu0 %1582
      %v1585 = vmul.f32 %v1580, %v1583
      %1587 = vrot.lane.b32.xlu0 %v1585, 64
      %v1588 = vpop.permute.xlu0 %1587
      %v1590 = vadd.f32 %v1498, %v1588
      %v1591 = vtanh.pop %v1590
      %v1592 = vsub.f32 1.0, %v1580
      %1594 = vrot.lane.b32.xlu0 %v1591, 96
      %v1595 = vpop.permute.xlu0 %1594
      %v1597 = vmul.f32 %v1592, %v1595
      %1598 = vrot.lane.b32.xlu0 %v1312, 32
      %v1599 = vpop.permute.xlu0 %1598
      %v1601 = vmul.f32 %v1580, %v1599
      %v1602 = vadd.f32 %v1597, %v1601
      %1604 = vrot.lane.b32.xlu0 %v1416, 96
      %v1605 = vpop.permute.xlu0 %1604
      %1607 = vst.msk [vmem:[#allocation2] sm:$0x3] %vm680, %v1605
      %1609 = vrot.lane.b32.xlu0 %v1602, 96
      %v1610 = vpop.permute.xlu0 %1609
      %1612 = vst.msk [vmem:[#allocation3] sm:$0x3] %vm680, %v1610
      %v1613 = vadd.f32 %v1602, %v1423
      %1615 = vrot.lane.b32.xlu0 %v1613, 96
      %v1616 = vpop.permute.xlu0 %1615
      %s1618 = scalar_lea.vmem %s351, 6
      %1619 = vst.msk [vmem:[%s1618] sm:$0x3] %vm680, %v1616
      %v1620 = vld [vmem:[#allocation2] sm:$0x3]
      %v1621 = vld [vmem:[#allocation3] sm:$0x3]
      %v1623 = vsel %vm382, %v1620, 0
      %1625 = vmatprep.subr.mxu0 0.0
      %1626 = vmatpush1.msra.mxu0 %v360
      %1627 = vmatprep.subr.mxu0 0.0
      %1628 = vmatpush1.msra.mxu0 %v361
      %1629 = vmatprep.subr.mxu0 0.0
      %1630 = vmatpush1.msra.mxu0 %v362
      %1631 = vmatprep.subr.mxu0 0.0
      %1632 = vmatpush1.msra.mxu0 %v363
      %1633 = vmatprep.subr.mxu0 0.0
      %1634 = vmatpush1.msra.mxu0 0.0
      %1635 = vmatprep.subr.mxu0 0.0
      %1636 = vmatpush1.msra.mxu0 0.0
      %1637 = vmatprep.subr.mxu0 0.0
      %1638 = vmatpush1.msra.mxu0 0.0
      %1639 = vmatprep.subr.mxu0 0.0
      %1640 = vmatpush1.msra.mxu0 0.0
      %1641 = vmatprep.subr.mxu0 0.0
      %1642 = vmatpush1.msra.mxu0 0.0
      %1643 = vmatprep.subr.mxu0 0.0
      %1644 = vmatpush1.msra.mxu0 0.0
      %1645 = vmatprep.subr.mxu0 0.0
      %1646 = vmatpush1.msra.mxu0 0.0
      %1647 = vmatprep.subr.mxu0 0.0
      %1648 = vmatpush1.msra.mxu0 0.0
      %1649 = vmatprep.subr.mxu0 0.0
      %1650 = vmatpush1.msra.mxu0 0.0
      %1651 = vmatprep.subr.mxu0 0.0
      %1652 = vmatpush1.msra.mxu0 0.0
      %1653 = vmatprep.subr.mxu0 0.0
      %1654 = vmatpush1.msra.mxu0 0.0
      %1655 = vmatprep.subr.mxu0 0.0
      %1656 = vmatpush1.msra.mxu0 0.0
      %1657 = vmatprep.subr.mxu0 0.0
      %1658 = vmatpush1.msra.mxu0 0.0
      %1659 = vmatprep.subr.mxu0 0.0
      %1660 = vmatpush1.msra.mxu0 0.0
      %1661 = vmatprep.subr.mxu0 0.0
      %1662 = vmatpush1.msra.mxu0 0.0
      %1663 = vmatprep.subr.mxu0 0.0
      %1664 = vmatpush1.msra.mxu0 0.0
      %1665 = vmatprep.subr.mxu0 0.0
      %1666 = vmatpush1.msra.mxu0 0.0
      %1667 = vmatprep.subr.mxu0 0.0
      %1668 = vmatpush1.msra.mxu0 0.0
      %1669 = vmatprep.subr.mxu0 0.0
      %1670 = vmatpush1.msra.mxu0 0.0
      %1671 = vmatprep.subr.mxu0 0.0
      %1672 = vmatpush1.msra.mxu0 0.0
      %1673 = vmatprep.subr.mxu0 0.0
      %1674 = vmatpush1.msra.mxu0 0.0
      %1675 = vmatprep.subr.mxu0 0.0
      %1676 = vmatpush1.msra.mxu0 0.0
      %1677 = vmatprep.subr.mxu0 0.0
      %1678 = vmatpush1.msra.mxu0 0.0
      %1679 = vmatprep.subr.mxu0 0.0
      %1680 = vmatpush1.msra.mxu0 0.0
      %1681 = vmatprep.subr.mxu0 0.0
      %1682 = vmatpush1.msra.mxu0 0.0
      %1683 = vmatprep.subr.mxu0 0.0
      %1684 = vmatpush1.msra.mxu0 0.0
      %1685 = vmatprep.subr.mxu0 0.0
      %1686 = vmatpush1.msra.mxu0 0.0
      %1687 = vmatprep.subr.mxu0 0.0
      %1688 = vmatpush1.msra.mxu0 0.0
      %1689 = vmatprep.mubr.f32.mxu0 0.0
      %1690 = vmatmul.mubr.f32.gmra.mrb[0].mxu0 %v1623
      %v1691 = vpop.f32.mrb[0].mxu0
      %v1692 = vadd.f32 %v380, %v1691
      %v1693 = vpop.f32.mrb[0].mxu0
      %1694 = vdwg.mxu0
      %s1695 = scalar_lea.vmem %s333, 8
      %v1696 = vld [vmem:[%s1695] sm:$0x3]
      %v1697 = vadd.f32 %v1696, %v1692
      %v1698 = vxor.u32 %v1697, 2147483648
      %v1699 = vmul.f32 %v1698, 1.442695
      %v1700 = vpow.pop %v1699
      %v1701 = vadd.f32 %v1700, 1.0
      %v1702 = vrcp.pop %v1701
      %v1703 = vmul.f32 1.0, %v1702
      %1705 = vrot.lane.b32.xlu0 %v1692, 64
      %v1706 = vpop.permute.xlu0 %1705
      %v1708 = vmul.f32 %v1703, %v1706
      %1710 = vrot.lane.b32.xlu0 %v1708, 64
      %v1711 = vpop.permute.xlu0 %1710
      %v1713 = vadd.f32 %v1696, %v1711
      %v1714 = vtanh.pop %v1713
      %v1715 = vsub.f32 1.0, %v1703
      %1717 = vrot.lane.b32.xlu0 %v1714, 96
      %v1718 = vpop.permute.xlu0 %1717
      %v1720 = vmul.f32 %v1715, %v1718
      %1721 = vrot.lane.b32.xlu0 %v1620, 32
      %v1722 = vpop.permute.xlu0 %1721
      %v1724 = vmul.f32 %v1703, %v1722
      %v1725 = vadd.f32 %v1720, %v1724
      %s1726 = scalar_lea.vmem %s345, 8
      %v1727 = vld [vmem:[%s1726] sm:$0x3]
      %1729 = vrot.lane.b32.xlu0 %v1727, 32
      %v1730 = vpop.permute.xlu0 %1729
      %v1732 = vadd.f32 %v1725, %v1730
      %s1733 = scalar_lea.vmem %s339, 8
      %v1734 = vld [vmem:[%s1733] sm:$0x3]
      %1736 = vrot.lane.b32.xlu0 %v1732, 96
      %v1737 = vpop.permute.xlu0 %1736
      %v1738 = vsel %vm382, %v1737, 0
      %1740 = vmatprep.subr.mxu0 0.0
      %1741 = vmatpush1.msra.mxu0 %v370
      %1742 = vmatprep.subr.mxu0 0.0
      %1743 = vmatpush1.msra.mxu0 %v371
      %1744 = vmatprep.subr.mxu0 0.0
      %1745 = vmatpush1.msra.mxu0 %v372
      %1746 = vmatprep.subr.mxu0 0.0
      %1747 = vmatpush1.msra.mxu0 %v373
      %1748 = vmatprep.subr.mxu0 0.0
      %1749 = vmatpush1.msra.mxu0 0.0
      %1750 = vmatprep.subr.mxu0 0.0
      %1751 = vmatpush1.msra.mxu0 0.0
      %1752 = vmatprep.subr.mxu0 0.0
      %1753 = vmatpush1.msra.mxu0 0.0
      %1754 = vmatprep.subr.mxu0 0.0
      %1755 = vmatpush1.msra.mxu0 0.0
      %1756 = vmatprep.subr.mxu0 0.0
      %1757 = vmatpush1.msra.mxu0 0.0
      %1758 = vmatprep.subr.mxu0 0.0
      %1759 = vmatpush1.msra.mxu0 0.0
      %1760 = vmatprep.subr.mxu0 0.0
      %1761 = vmatpush1.msra.mxu0 0.0
      %1762 = vmatprep.subr.mxu0 0.0
      %1763 = vmatpush1.msra.mxu0 0.0
      %1764 = vmatprep.subr.mxu0 0.0
      %1765 = vmatpush1.msra.mxu0 0.0
      %1766 = vmatprep.subr.mxu0 0.0
      %1767 = vmatpush1.msra.mxu0 0.0
      %1768 = vmatprep.subr.mxu0 0.0
      %1769 = vmatpush1.msra.mxu0 0.0
      %1770 = vmatprep.subr.mxu0 0.0
      %1771 = vmatpush1.msra.mxu0 0.0
      %1772 = vmatprep.subr.mxu0 0.0
      %1773 = vmatpush1.msra.mxu0 0.0
      %1774 = vmatprep.subr.mxu0 0.0
      %1775 = vmatpush1.msra.mxu0 0.0
      %1776 = vmatprep.subr.mxu0 0.0
      %1777 = vmatpush1.msra.mxu0 0.0
      %1778 = vmatprep.subr.mxu0 0.0
      %1779 = vmatpush1.msra.mxu0 0.0
      %1780 = vmatprep.subr.mxu0 0.0
      %1781 = vmatpush1.msra.mxu0 0.0
      %1782 = vmatprep.subr.mxu0 0.0
      %1783 = vmatpush1.msra.mxu0 0.0
      %1784 = vmatprep.subr.mxu0 0.0
      %1785 = vmatpush1.msra.mxu0 0.0
      %1786 = vmatprep.subr.mxu0 0.0
      %1787 = vmatpush1.msra.mxu0 0.0
      %1788 = vmatprep.subr.mxu0 0.0
      %1789 = vmatpush1.msra.mxu0 0.0
      %1790 = vmatprep.subr.mxu0 0.0
      %1791 = vmatpush1.msra.mxu0 0.0
      %1792 = vmatprep.subr.mxu0 0.0
      %1793 = vmatpush1.msra.mxu0 0.0
      %1794 = vmatprep.subr.mxu0 0.0
      %1795 = vmatpush1.msra.mxu0 0.0
      %1796 = vmatprep.subr.mxu0 0.0
      %1797 = vmatpush1.msra.mxu0 0.0
      %1798 = vmatprep.subr.mxu0 0.0
      %1799 = vmatpush1.msra.mxu0 0.0
      %1800 = vmatprep.subr.mxu0 0.0
      %1801 = vmatpush1.msra.mxu0 0.0
      %1802 = vmatprep.subr.mxu0 0.0
      %1803 = vmatpush1.msra.mxu0 0.0
      %1804 = vmatprep.mubr.f32.mxu0 0.0
      %1805 = vmatmul.mubr.f32.gmra.mrb[0].mxu0 %v1738
      %v1806 = vpop.f32.mrb[0].mxu0
      %v1807 = vadd.f32 %v1734, %v1806
      %v1808 = vpop.f32.mrb[0].mxu0
      %1809 = vdwg.mxu0
      %v1811 = vsel %vm382, %v1621, 0
      %1813 = vmatprep.subr.mxu0 0.0
      %1814 = vmatpush1.msra.mxu0 %v365
      %1815 = vmatprep.subr.mxu0 0.0
      %1816 = vmatpush1.msra.mxu0 %v366
      %1817 = vmatprep.subr.mxu0 0.0
      %1818 = vmatpush1.msra.mxu0 %v367
      %1819 = vmatprep.subr.mxu0 0.0
      %1820 = vmatpush1.msra.mxu0 %v368
      %1821 = vmatprep.subr.mxu0 0.0
      %1822 = vmatpush1.msra.mxu0 0.0
      %1823 = vmatprep.subr.mxu0 0.0
      %1824 = vmatpush1.msra.mxu0 0.0
      %1825 = vmatprep.subr.mxu0 0.0
      %1826 = vmatpush1.msra.mxu0 0.0
      %1827 = vmatprep.subr.mxu0 0.0
      %1828 = vmatpush1.msra.mxu0 0.0
      %1829 = vmatprep.subr.mxu0 0.0
      %1830 = vmatpush1.msra.mxu0 0.0
      %1831 = vmatprep.subr.mxu0 0.0
      %1832 = vmatpush1.msra.mxu0 0.0
      %1833 = vmatprep.subr.mxu0 0.0
      %1834 = vmatpush1.msra.mxu0 0.0
      %1835 = vmatprep.subr.mxu0 0.0
      %1836 = vmatpush1.msra.mxu0 0.0
      %1837 = vmatprep.subr.mxu0 0.0
      %1838 = vmatpush1.msra.mxu0 0.0
      %1839 = vmatprep.subr.mxu0 0.0
      %1840 = vmatpush1.msra.mxu0 0.0
      %1841 = vmatprep.subr.mxu0 0.0
      %1842 = vmatpush1.msra.mxu0 0.0
      %1843 = vmatprep.subr.mxu0 0.0
      %1844 = vmatpush1.msra.mxu0 0.0
      %1845 = vmatprep.subr.mxu0 0.0
      %1846 = vmatpush1.msra.mxu0 0.0
      %1847 = vmatprep.subr.mxu0 0.0
      %1848 = vmatpush1.msra.mxu0 0.0
      %1849 = vmatprep.subr.mxu0 0.0
      %1850 = vmatpush1.msra.mxu0 0.0
      %1851 = vmatprep.subr.mxu0 0.0
      %1852 = vmatpush1.msra.mxu0 0.0
      %1853 = vmatprep.subr.mxu0 0.0
      %1854 = vmatpush1.msra.mxu0 0.0
      %1855 = vmatprep.subr.mxu0 0.0
      %1856 = vmatpush1.msra.mxu0 0.0
      %1857 = vmatprep.subr.mxu0 0.0
      %1858 = vmatpush1.msra.mxu0 0.0
      %1859 = vmatprep.subr.mxu0 0.0
      %1860 = vmatpush1.msra.mxu0 0.0
      %1861 = vmatprep.subr.mxu0 0.0
      %1862 = vmatpush1.msra.mxu0 0.0
      %1863 = vmatprep.subr.mxu0 0.0
      %1864 = vmatpush1.msra.mxu0 0.0
      %1865 = vmatprep.subr.mxu0 0.0
      %1866 = vmatpush1.msra.mxu0 0.0
      %1867 = vmatprep.subr.mxu0 0.0
      %1868 = vmatpush1.msra.mxu0 0.0
      %1869 = vmatprep.subr.mxu0 0.0
      %1870 = vmatpush1.msra.mxu0 0.0
      %1871 = vmatprep.subr.mxu0 0.0
      %1872 = vmatpush1.msra.mxu0 0.0
      %1873 = vmatprep.subr.mxu0 0.0
      %1874 = vmatpush1.msra.mxu0 0.0
      %1875 = vmatprep.subr.mxu0 0.0
      %1876 = vmatpush1.msra.mxu0 0.0
      %1877 = vmatprep.mubr.f32.mxu0 0.0
      %1878 = vmatmul.mubr.f32.gmra.mrb[0].mxu0 %v1811
      %v1879 = vpop.f32.mrb[0].mxu0
      %v1880 = vadd.f32 %v572, %v1879
      %v1881 = vpop.f32.mrb[0].mxu0
      %1882 = vdwg.mxu0
      %v1883 = vadd.f32 %v1807, %v1880
      %v1884 = vxor.u32 %v1883, 2147483648
      %v1885 = vmul.f32 %v1884, 1.442695
      %v1886 = vpow.pop %v1885
      %v1887 = vadd.f32 %v1886, 1.0
      %v1888 = vrcp.pop %v1887
      %v1889 = vmul.f32 1.0, %v1888
      %1891 = vrot.lane.b32.xlu0 %v1880, 64
      %v1892 = vpop.permute.xlu0 %1891
      %v1894 = vmul.f32 %v1889, %v1892
      %1896 = vrot.lane.b32.xlu0 %v1894, 64
      %v1897 = vpop.permute.xlu0 %1896
      %v1899 = vadd.f32 %v1807, %v1897
      %v1900 = vtanh.pop %v1899
      %v1901 = vsub.f32 1.0, %v1889
      %1903 = vrot.lane.b32.xlu0 %v1900, 96
      %v1904 = vpop.permute.xlu0 %1903
      %v1906 = vmul.f32 %v1901, %v1904
      %1907 = vrot.lane.b32.xlu0 %v1621, 32
      %v1908 = vpop.permute.xlu0 %1907
      %v1910 = vmul.f32 %v1889, %v1908
      %v1911 = vadd.f32 %v1906, %v1910
      %1913 = vrot.lane.b32.xlu0 %v1725, 96
      %v1914 = vpop.permute.xlu0 %1913
      %1916 = vst.msk [vmem:[#allocation2] sm:$0x3] %vm680, %v1914
      %1918 = vrot.lane.b32.xlu0 %v1911, 96
      %v1919 = vpop.permute.xlu0 %1918
      %1921 = vst.msk [vmem:[#allocation3] sm:$0x3] %vm680, %v1919
      %v1922 = vadd.f32 %v1911, %v1732
      %1924 = vrot.lane.b32.xlu0 %v1922, 96
      %v1925 = vpop.permute.xlu0 %1924
      %s1927 = scalar_lea.vmem %s351, 8
      %1928 = vst.msk [vmem:[%s1927] sm:$0x3] %vm680, %v1925
      %v1929 = vld [vmem:[#allocation2] sm:$0x3]
      %v1930 = vld [vmem:[#allocation3] sm:$0x3]
      %v1932 = vsel %vm382, %v1929, 0
      %1934 = vmatprep.subr.mxu0 0.0
      %1935 = vmatpush1.msra.mxu0 %v360
      %1936 = vmatprep.subr.mxu0 0.0
      %1937 = vmatpush1.msra.mxu0 %v361
      %1938 = vmatprep.subr.mxu0 0.0
      %1939 = vmatpush1.msra.mxu0 %v362
      %1940 = vmatprep.subr.mxu0 0.0
      %1941 = vmatpush1.msra.mxu0 %v363
      %1942 = vmatprep.subr.mxu0 0.0
      %1943 = vmatpush1.msra.mxu0 0.0
      %1944 = vmatprep.subr.mxu0 0.0
      %1945 = vmatpush1.msra.mxu0 0.0
      %1946 = vmatprep.subr.mxu0 0.0
      %1947 = vmatpush1.msra.mxu0 0.0
      %1948 = vmatprep.subr.mxu0 0.0
      %1949 = vmatpush1.msra.mxu0 0.0
      %1950 = vmatprep.subr.mxu0 0.0
      %1951 = vmatpush1.msra.mxu0 0.0
      %1952 = vmatprep.subr.mxu0 0.0
      %1953 = vmatpush1.msra.mxu0 0.0
      %1954 = vmatprep.subr.mxu0 0.0
      %1955 = vmatpush1.msra.mxu0 0.0
      %1956 = vmatprep.subr.mxu0 0.0
      %1957 = vmatpush1.msra.mxu0 0.0
      %1958 = vmatprep.subr.mxu0 0.0
      %1959 = vmatpush1.msra.mxu0 0.0
      %1960 = vmatprep.subr.mxu0 0.0
      %1961 = vmatpush1.msra.mxu0 0.0
      %1962 = vmatprep.subr.mxu0 0.0
      %1963 = vmatpush1.msra.mxu0 0.0
      %1964 = vmatprep.subr.mxu0 0.0
      %1965 = vmatpush1.msra.mxu0 0.0
      %1966 = vmatprep.subr.mxu0 0.0
      %1967 = vmatpush1.msra.mxu0 0.0
      %1968 = vmatprep.subr.mxu0 0.0
      %1969 = vmatpush1.msra.mxu0 0.0
      %1970 = vmatprep.subr.mxu0 0.0
      %1971 = vmatpush1.msra.mxu0 0.0
      %1972 = vmatprep.subr.mxu0 0.0
      %1973 = vmatpush1.msra.mxu0 0.0
      %1974 = vmatprep.subr.mxu0 0.0
      %1975 = vmatpush1.msra.mxu0 0.0
      %1976 = vmatprep.subr.mxu0 0.0
      %1977 = vmatpush1.msra.mxu0 0.0
      %1978 = vmatprep.subr.mxu0 0.0
      %1979 = vmatpush1.msra.mxu0 0.0
      %1980 = vmatprep.subr.mxu0 0.0
      %1981 = vmatpush1.msra.mxu0 0.0
      %1982 = vmatprep.subr.mxu0 0.0
      %1983 = vmatpush1.msra.mxu0 0.0
      %1984 = vmatprep.subr.mxu0 0.0
      %1985 = vmatpush1.msra.mxu0 0.0
      %1986 = vmatprep.subr.mxu0 0.0
      %1987 = vmatpush1.msra.mxu0 0.0
      %1988 = vmatprep.subr.mxu0 0.0
      %1989 = vmatpush1.msra.mxu0 0.0
      %1990 = vmatprep.subr.mxu0 0.0
      %1991 = vmatpush1.msra.mxu0 0.0
      %1992 = vmatprep.subr.mxu0 0.0
      %1993 = vmatpush1.msra.mxu0 0.0
      %1994 = vmatprep.subr.mxu0 0.0
      %1995 = vmatpush1.msra.mxu0 0.0
      %1996 = vmatprep.subr.mxu0 0.0
      %1997 = vmatpush1.msra.mxu0 0.0
      %1998 = vmatprep.mubr.f32.mxu0 0.0
      %1999 = vmatmul.mubr.f32.gmra.mrb[0].mxu0 %v1932
      %v2000 = vpop.f32.mrb[0].mxu0
      %v2001 = vadd.f32 %v380, %v2000
      %v2002 = vpop.f32.mrb[0].mxu0
      %2003 = vdwg.mxu0
      %s2004 = scalar_lea.vmem %s333, 10
      %v2005 = vld [vmem:[%s2004] sm:$0x3]
      %v2006 = vadd.f32 %v2005, %v2001
      %v2007 = vxor.u32 %v2006, 2147483648
      %v2008 = vmul.f32 %v2007, 1.442695
      %v2009 = vpow.pop %v2008
      %v2010 = vadd.f32 %v2009, 1.0
      %v2011 = vrcp.pop %v2010
      %v2012 = vmul.f32 1.0, %v2011
      %2014 = vrot.lane.b32.xlu0 %v2001, 64
      %v2015 = vpop.permute.xlu0 %2014
      %v2017 = vmul.f32 %v2012, %v2015
      %2019 = vrot.lane.b32.xlu0 %v2017, 64
      %v2020 = vpop.permute.xlu0 %2019
      %v2022 = vadd.f32 %v2005, %v2020
      %v2023 = vtanh.pop %v2022
      %v2024 = vsub.f32 1.0, %v2012
      %2026 = vrot.lane.b32.xlu0 %v2023, 96
      %v2027 = vpop.permute.xlu0 %2026
      %v2029 = vmul.f32 %v2024, %v2027
      %2030 = vrot.lane.b32.xlu0 %v1929, 32
      %v2031 = vpop.permute.xlu0 %2030
      %v2033 = vmul.f32 %v2012, %v2031
      %v2034 = vadd.f32 %v2029, %v2033
      %s2035 = scalar_lea.vmem %s345, 10
      %v2036 = vld [vmem:[%s2035] sm:$0x3]
      %2038 = vrot.lane.b32.xlu0 %v2036, 32
      %v2039 = vpop.permute.xlu0 %2038
      %v2041 = vadd.f32 %v2034, %v2039
      %s2042 = scalar_lea.vmem %s339, 10
      %v2043 = vld [vmem:[%s2042] sm:$0x3]
      %2045 = vrot.lane.b32.xlu0 %v2041, 96
      %v2046 = vpop.permute.xlu0 %2045
      %v2047 = vsel %vm382, %v2046, 0
      %2049 = vmatprep.subr.mxu0 0.0
      %2050 = vmatpush1.msra.mxu0 %v370
      %2051 = vmatprep.subr.mxu0 0.0
      %2052 = vmatpush1.msra.mxu0 %v371
      %2053 = vmatprep.subr.mxu0 0.0
      %2054 = vmatpush1.msra.mxu0 %v372
      %2055 = vmatprep.subr.mxu0 0.0
      %2056 = vmatpush1.msra.mxu0 %v373
      %2057 = vmatprep.subr.mxu0 0.0
      %2058 = vmatpush1.msra.mxu0 0.0
      %2059 = vmatprep.subr.mxu0 0.0
      %2060 = vmatpush1.msra.mxu0 0.0
      %2061 = vmatprep.subr.mxu0 0.0
      %2062 = vmatpush1.msra.mxu0 0.0
      %2063 = vmatprep.subr.mxu0 0.0
      %2064 = vmatpush1.msra.mxu0 0.0
      %2065 = vmatprep.subr.mxu0 0.0
      %2066 = vmatpush1.msra.mxu0 0.0
      %2067 = vmatprep.subr.mxu0 0.0
      %2068 = vmatpush1.msra.mxu0 0.0
      %2069 = vmatprep.subr.mxu0 0.0
      %2070 = vmatpush1.msra.mxu0 0.0
      %2071 = vmatprep.subr.mxu0 0.0
      %2072 = vmatpush1.msra.mxu0 0.0
      %2073 = vmatprep.subr.mxu0 0.0
      %2074 = vmatpush1.msra.mxu0 0.0
      %2075 = vmatprep.subr.mxu0 0.0
      %2076 = vmatpush1.msra.mxu0 0.0
      %2077 = vmatprep.subr.mxu0 0.0
      %2078 = vmatpush1.msra.mxu0 0.0
      %2079 = vmatprep.subr.mxu0 0.0
      %2080 = vmatpush1.msra.mxu0 0.0
      %2081 = vmatprep.subr.mxu0 0.0
      %2082 = vmatpush1.msra.mxu0 0.0
      %2083 = vmatprep.subr.mxu0 0.0
      %2084 = vmatpush1.msra.mxu0 0.0
      %2085 = vmatprep.subr.mxu0 0.0
      %2086 = vmatpush1.msra.mxu0 0.0
      %2087 = vmatprep.subr.mxu0 0.0
      %2088 = vmatpush1.msra.mxu0 0.0
      %2089 = vmatprep.subr.mxu0 0.0
      %2090 = vmatpush1.msra.mxu0 0.0
      %2091 = vmatprep.subr.mxu0 0.0
      %2092 = vmatpush1.msra.mxu0 0.0
      %2093 = vmatprep.subr.mxu0 0.0
      %2094 = vmatpush1.msra.mxu0 0.0
      %2095 = vmatprep.subr.mxu0 0.0
      %2096 = vmatpush1.msra.mxu0 0.0
      %2097 = vmatprep.subr.mxu0 0.0
      %2098 = vmatpush1.msra.mxu0 0.0
      %2099 = vmatprep.subr.mxu0 0.0
      %2100 = vmatpush1.msra.mxu0 0.0
      %2101 = vmatprep.subr.mxu0 0.0
      %2102 = vmatpush1.msra.mxu0 0.0
      %2103 = vmatprep.subr.mxu0 0.0
      %2104 = vmatpush1.msra.mxu0 0.0
      %2105 = vmatprep.subr.mxu0 0.0
      %2106 = vmatpush1.msra.mxu0 0.0
      %2107 = vmatprep.subr.mxu0 0.0
      %2108 = vmatpush1.msra.mxu0 0.0
      %2109 = vmatprep.subr.mxu0 0.0
      %2110 = vmatpush1.msra.mxu0 0.0
      %2111 = vmatprep.subr.mxu0 0.0
      %2112 = vmatpush1.msra.mxu0 0.0
      %2113 = vmatprep.mubr.f32.mxu0 0.0
      %2114 = vmatmul.mubr.f32.gmra.mrb[0].mxu0 %v2047
      %v2115 = vpop.f32.mrb[0].mxu0
      %v2116 = vadd.f32 %v2043, %v2115
      %v2117 = vpop.f32.mrb[0].mxu0
      %2118 = vdwg.mxu0
      %v2120 = vsel %vm382, %v1930, 0
      %2122 = vmatprep.subr.mxu0 0.0
      %2123 = vmatpush1.msra.mxu0 %v365
      %2124 = vmatprep.subr.mxu0 0.0
      %2125 = vmatpush1.msra.mxu0 %v366
      %2126 = vmatprep.subr.mxu0 0.0
      %2127 = vmatpush1.msra.mxu0 %v367
      %2128 = vmatprep.subr.mxu0 0.0
      %2129 = vmatpush1.msra.mxu0 %v368
      %2130 = vmatprep.subr.mxu0 0.0
      %2131 = vmatpush1.msra.mxu0 0.0
      %2132 = vmatprep.subr.mxu0 0.0
      %2133 = vmatpush1.msra.mxu0 0.0
      %2134 = vmatprep.subr.mxu0 0.0
      %2135 = vmatpush1.msra.mxu0 0.0
      %2136 = vmatprep.subr.mxu0 0.0
      %2137 = vmatpush1.msra.mxu0 0.0
      %2138 = vmatprep.subr.mxu0 0.0
      %2139 = vmatpush1.msra.mxu0 0.0
      %2140 = vmatprep.subr.mxu0 0.0
      %2141 = vmatpush1.msra.mxu0 0.0
      %2142 = vmatprep.subr.mxu0 0.0
      %2143 = vmatpush1.msra.mxu0 0.0
      %2144 = vmatprep.subr.mxu0 0.0
      %2145 = vmatpush1.msra.mxu0 0.0
      %2146 = vmatprep.subr.mxu0 0.0
      %2147 = vmatpush1.msra.mxu0 0.0
      %2148 = vmatprep.subr.mxu0 0.0
      %2149 = vmatpush1.msra.mxu0 0.0
      %2150 = vmatprep.subr.mxu0 0.0
      %2151 = vmatpush1.msra.mxu0 0.0
      %2152 = vmatprep.subr.mxu0 0.0
      %2153 = vmatpush1.msra.mxu0 0.0
      %2154 = vmatprep.subr.mxu0 0.0
      %2155 = vmatpush1.msra.mxu0 0.0
      %2156 = vmatprep.subr.mxu0 0.0
      %2157 = vmatpush1.msra.mxu0 0.0
      %2158 = vmatprep.subr.mxu0 0.0
      %2159 = vmatpush1.msra.mxu0 0.0
      %2160 = vmatprep.subr.mxu0 0.0
      %2161 = vmatpush1.msra.mxu0 0.0
      %2162 = vmatprep.subr.mxu0 0.0
      %2163 = vmatpush1.msra.mxu0 0.0
      %2164 = vmatprep.subr.mxu0 0.0
      %2165 = vmatpush1.msra.mxu0 0.0
      %2166 = vmatprep.subr.mxu0 0.0
      %2167 = vmatpush1.msra.mxu0 0.0
      %2168 = vmatprep.subr.mxu0 0.0
      %2169 = vmatpush1.msra.mxu0 0.0
      %2170 = vmatprep.subr.mxu0 0.0
      %2171 = vmatpush1.msra.mxu0 0.0
      %2172 = vmatprep.subr.mxu0 0.0
      %2173 = vmatpush1.msra.mxu0 0.0
      %2174 = vmatprep.subr.mxu0 0.0
      %2175 = vmatpush1.msra.mxu0 0.0
      %2176 = vmatprep.subr.mxu0 0.0
      %2177 = vmatpush1.msra.mxu0 0.0
      %2178 = vmatprep.subr.mxu0 0.0
      %2179 = vmatpush1.msra.mxu0 0.0
      %2180 = vmatprep.subr.mxu0 0.0
      %2181 = vmatpush1.msra.mxu0 0.0
      %2182 = vmatprep.subr.mxu0 0.0
      %2183 = vmatpush1.msra.mxu0 0.0
      %2184 = vmatprep.subr.mxu0 0.0
      %2185 = vmatpush1.msra.mxu0 0.0
      %2186 = vmatprep.mubr.f32.mxu0 0.0
      %2187 = vmatmul.mubr.f32.gmra.mrb[0].mxu0 %v2120
      %v2188 = vpop.f32.mrb[0].mxu0
      %v2189 = vadd.f32 %v572, %v2188
      %v2190 = vpop.f32.mrb[0].mxu0
      %2191 = vdwg.mxu0
      %v2192 = vadd.f32 %v2116, %v2189
      %v2193 = vxor.u32 %v2192, 2147483648
      %v2194 = vmul.f32 %v2193, 1.442695
      %v2195 = vpow.pop %v2194
      %v2196 = vadd.f32 %v2195, 1.0
      %v2197 = vrcp.pop %v2196
      %v2198 = vmul.f32 1.0, %v2197
      %2200 = vrot.lane.b32.xlu0 %v2189, 64
      %v2201 = vpop.permute.xlu0 %2200
      %v2203 = vmul.f32 %v2198, %v2201
      %2205 = vrot.lane.b32.xlu0 %v2203, 64
      %v2206 = vpop.permute.xlu0 %2205
      %v2208 = vadd.f32 %v2116, %v2206
      %v2209 = vtanh.pop %v2208
      %v2210 = vsub.f32 1.0, %v2198
      %2212 = vrot.lane.b32.xlu0 %v2209, 96
      %v2213 = vpop.permute.xlu0 %2212
      %v2215 = vmul.f32 %v2210, %v2213
      %2216 = vrot.lane.b32.xlu0 %v1930, 32
      %v2217 = vpop.permute.xlu0 %2216
      %v2219 = vmul.f32 %v2198, %v2217
      %v2220 = vadd.f32 %v2215, %v2219
      %2222 = vrot.lane.b32.xlu0 %v2034, 96
      %v2223 = vpop.permute.xlu0 %2222
      %2225 = vst.msk [vmem:[#allocation2] sm:$0x3] %vm680, %v2223
      %2227 = vrot.lane.b32.xlu0 %v2220, 96
      %v2228 = vpop.permute.xlu0 %2227
      %2230 = vst.msk [vmem:[#allocation3] sm:$0x3] %vm680, %v2228
      %v2231 = vadd.f32 %v2220, %v2041
      %2233 = vrot.lane.b32.xlu0 %v2231, 96
      %v2234 = vpop.permute.xlu0 %2233
      %s2236 = scalar_lea.vmem %s351, 10
      %2237 = vst.msk [vmem:[%s2236] sm:$0x3] %vm680, %v2234
      %v2238 = vld [vmem:[#allocation2] sm:$0x3]
      %v2239 = vld [vmem:[#allocation3] sm:$0x3]
      %v2241 = vsel %vm382, %v2238, 0
      %2243 = vmatprep.subr.mxu0 0.0
      %2244 = vmatpush1.msra.mxu0 %v360
      %2245 = vmatprep.subr.mxu0 0.0
      %2246 = vmatpush1.msra.mxu0 %v361
      %2247 = vmatprep.subr.mxu0 0.0
      %2248 = vmatpush1.msra.mxu0 %v362
      %2249 = vmatprep.subr.mxu0 0.0
      %2250 = vmatpush1.msra.mxu0 %v363
      %2251 = vmatprep.subr.mxu0 0.0
      %2252 = vmatpush1.msra.mxu0 0.0
      %2253 = vmatprep.subr.mxu0 0.0
      %2254 = vmatpush1.msra.mxu0 0.0
      %2255 = vmatprep.subr.mxu0 0.0
      %2256 = vmatpush1.msra.mxu0 0.0
      %2257 = vmatprep.subr.mxu0 0.0
      %2258 = vmatpush1.msra.mxu0 0.0
      %2259 = vmatprep.subr.mxu0 0.0
      %2260 = vmatpush1.msra.mxu0 0.0
      %2261 = vmatprep.subr.mxu0 0.0
      %2262 = vmatpush1.msra.mxu0 0.0
      %2263 = vmatprep.subr.mxu0 0.0
      %2264 = vmatpush1.msra.mxu0 0.0
      %2265 = vmatprep.subr.mxu0 0.0
      %2266 = vmatpush1.msra.mxu0 0.0
      %2267 = vmatprep.subr.mxu0 0.0
      %2268 = vmatpush1.msra.mxu0 0.0
      %2269 = vmatprep.subr.mxu0 0.0
      %2270 = vmatpush1.msra.mxu0 0.0
      %2271 = vmatprep.subr.mxu0 0.0
      %2272 = vmatpush1.msra.mxu0 0.0
      %2273 = vmatprep.subr.mxu0 0.0
      %2274 = vmatpush1.msra.mxu0 0.0
      %2275 = vmatprep.subr.mxu0 0.0
      %2276 = vmatpush1.msra.mxu0 0.0
      %2277 = vmatprep.subr.mxu0 0.0
      %2278 = vmatpush1.msra.mxu0 0.0
      %2279 = vmatprep.subr.mxu0 0.0
      %2280 = vmatpush1.msra.mxu0 0.0
      %2281 = vmatprep.subr.mxu0 0.0
      %2282 = vmatpush1.msra.mxu0 0.0
      %2283 = vmatprep.subr.mxu0 0.0
      %2284 = vmatpush1.msra.mxu0 0.0
      %2285 = vmatprep.subr.mxu0 0.0
      %2286 = vmatpush1.msra.mxu0 0.0
      %2287 = vmatprep.subr.mxu0 0.0
      %2288 = vmatpush1.msra.mxu0 0.0
      %2289 = vmatprep.subr.mxu0 0.0
      %2290 = vmatpush1.msra.mxu0 0.0
      %2291 = vmatprep.subr.mxu0 0.0
      %2292 = vmatpush1.msra.mxu0 0.0
      %2293 = vmatprep.subr.mxu0 0.0
      %2294 = vmatpush1.msra.mxu0 0.0
      %2295 = vmatprep.subr.mxu0 0.0
      %2296 = vmatpush1.msra.mxu0 0.0
      %2297 = vmatprep.subr.mxu0 0.0
      %2298 = vmatpush1.msra.mxu0 0.0
      %2299 = vmatprep.subr.mxu0 0.0
      %2300 = vmatpush1.msra.mxu0 0.0
      %2301 = vmatprep.subr.mxu0 0.0
      %2302 = vmatpush1.msra.mxu0 0.0
      %2303 = vmatprep.subr.mxu0 0.0
      %2304 = vmatpush1.msra.mxu0 0.0
      %2305 = vmatprep.subr.mxu0 0.0
      %2306 = vmatpush1.msra.mxu0 0.0
      %2307 = vmatprep.mubr.f32.mxu0 0.0
      %2308 = vmatmul.mubr.f32.gmra.mrb[0].mxu0 %v2241
      %v2309 = vpop.f32.mrb[0].mxu0
      %v2310 = vadd.f32 %v380, %v2309
      %v2311 = vpop.f32.mrb[0].mxu0
      %2312 = vdwg.mxu0
      %s2313 = scalar_lea.vmem %s333, 12
      %v2314 = vld [vmem:[%s2313] sm:$0x3]
      %v2315 = vadd.f32 %v2314, %v2310
      %v2316 = vxor.u32 %v2315, 2147483648
      %v2317 = vmul.f32 %v2316, 1.442695
      %v2318 = vpow.pop %v2317
      %v2319 = vadd.f32 %v2318, 1.0
      %v2320 = vrcp.pop %v2319
      %v2321 = vmul.f32 1.0, %v2320
      %2323 = vrot.lane.b32.xlu0 %v2310, 64
      %v2324 = vpop.permute.xlu0 %2323
      %v2326 = vmul.f32 %v2321, %v2324
      %2328 = vrot.lane.b32.xlu0 %v2326, 64
      %v2329 = vpop.permute.xlu0 %2328
      %v2331 = vadd.f32 %v2314, %v2329
      %v2332 = vtanh.pop %v2331
      %v2333 = vsub.f32 1.0, %v2321
      %2335 = vrot.lane.b32.xlu0 %v2332, 96
      %v2336 = vpop.permute.xlu0 %2335
      %v2338 = vmul.f32 %v2333, %v2336
      %2339 = vrot.lane.b32.xlu0 %v2238, 32
      %v2340 = vpop.permute.xlu0 %2339
      %v2342 = vmul.f32 %v2321, %v2340
      %v2343 = vadd.f32 %v2338, %v2342
      %s2344 = scalar_lea.vmem %s345, 12
      %v2345 = vld [vmem:[%s2344] sm:$0x3]
      %2347 = vrot.lane.b32.xlu0 %v2345, 32
      %v2348 = vpop.permute.xlu0 %2347
      %v2350 = vadd.f32 %v2343, %v2348
      %s2351 = scalar_lea.vmem %s339, 12
      %v2352 = vld [vmem:[%s2351] sm:$0x3]
      %2354 = vrot.lane.b32.xlu0 %v2350, 96
      %v2355 = vpop.permute.xlu0 %2354
      %v2356 = vsel %vm382, %v2355, 0
      %2358 = vmatprep.subr.mxu0 0.0
      %2359 = vmatpush1.msra.mxu0 %v370
      %2360 = vmatprep.subr.mxu0 0.0
      %2361 = vmatpush1.msra.mxu0 %v371
      %2362 = vmatprep.subr.mxu0 0.0
      %2363 = vmatpush1.msra.mxu0 %v372
      %2364 = vmatprep.subr.mxu0 0.0
      %2365 = vmatpush1.msra.mxu0 %v373
      %2366 = vmatprep.subr.mxu0 0.0
      %2367 = vmatpush1.msra.mxu0 0.0
      %2368 = vmatprep.subr.mxu0 0.0
      %2369 = vmatpush1.msra.mxu0 0.0
      %2370 = vmatprep.subr.mxu0 0.0
      %2371 = vmatpush1.msra.mxu0 0.0
      %2372 = vmatprep.subr.mxu0 0.0
      %2373 = vmatpush1.msra.mxu0 0.0
      %2374 = vmatprep.subr.mxu0 0.0
      %2375 = vmatpush1.msra.mxu0 0.0
      %2376 = vmatprep.subr.mxu0 0.0
      %2377 = vmatpush1.msra.mxu0 0.0
      %2378 = vmatprep.subr.mxu0 0.0
      %2379 = vmatpush1.msra.mxu0 0.0
      %2380 = vmatprep.subr.mxu0 0.0
      %2381 = vmatpush1.msra.mxu0 0.0
      %2382 = vmatprep.subr.mxu0 0.0
      %2383 = vmatpush1.msra.mxu0 0.0
      %2384 = vmatprep.subr.mxu0 0.0
      %2385 = vmatpush1.msra.mxu0 0.0
      %2386 = vmatprep.subr.mxu0 0.0
      %2387 = vmatpush1.msra.mxu0 0.0
      %2388 = vmatprep.subr.mxu0 0.0
      %2389 = vmatpush1.msra.mxu0 0.0
      %2390 = vmatprep.subr.mxu0 0.0
      %2391 = vmatpush1.msra.mxu0 0.0
      %2392 = vmatprep.subr.mxu0 0.0
      %2393 = vmatpush1.msra.mxu0 0.0
      %2394 = vmatprep.subr.mxu0 0.0
      %2395 = vmatpush1.msra.mxu0 0.0
      %2396 = vmatprep.subr.mxu0 0.0
      %2397 = vmatpush1.msra.mxu0 0.0
      %2398 = vmatprep.subr.mxu0 0.0
      %2399 = vmatpush1.msra.mxu0 0.0
      %2400 = vmatprep.subr.mxu0 0.0
      %2401 = vmatpush1.msra.mxu0 0.0
      %2402 = vmatprep.subr.mxu0 0.0
      %2403 = vmatpush1.msra.mxu0 0.0
      %2404 = vmatprep.subr.mxu0 0.0
      %2405 = vmatpush1.msra.mxu0 0.0
      %2406 = vmatprep.subr.mxu0 0.0
      %2407 = vmatpush1.msra.mxu0 0.0
      %2408 = vmatprep.subr.mxu0 0.0
      %2409 = vmatpush1.msra.mxu0 0.0
      %2410 = vmatprep.subr.mxu0 0.0
      %2411 = vmatpush1.msra.mxu0 0.0
      %2412 = vmatprep.subr.mxu0 0.0
      %2413 = vmatpush1.msra.mxu0 0.0
      %2414 = vmatprep.subr.mxu0 0.0
      %2415 = vmatpush1.msra.mxu0 0.0
      %2416 = vmatprep.subr.mxu0 0.0
      %2417 = vmatpush1.msra.mxu0 0.0
      %2418 = vmatprep.subr.mxu0 0.0
      %2419 = vmatpush1.msra.mxu0 0.0
      %2420 = vmatprep.subr.mxu0 0.0
      %2421 = vmatpush1.msra.mxu0 0.0
      %2422 = vmatprep.mubr.f32.mxu0 0.0
      %2423 = vmatmul.mubr.f32.gmra.mrb[0].mxu0 %v2356
      %v2424 = vpop.f32.mrb[0].mxu0
      %v2425 = vadd.f32 %v2352, %v2424
      %v2426 = vpop.f32.mrb[0].mxu0
      %2427 = vdwg.mxu0
      %v2429 = vsel %vm382, %v2239, 0
      %2431 = vmatprep.subr.mxu0 0.0
      %2432 = vmatpush1.msra.mxu0 %v365
      %2433 = vmatprep.subr.mxu0 0.0
      %2434 = vmatpush1.msra.mxu0 %v366
      %2435 = vmatprep.subr.mxu0 0.0
      %2436 = vmatpush1.msra.mxu0 %v367
      %2437 = vmatprep.subr.mxu0 0.0
      %2438 = vmatpush1.msra.mxu0 %v368
      %2439 = vmatprep.subr.mxu0 0.0
      %2440 = vmatpush1.msra.mxu0 0.0
      %2441 = vmatprep.subr.mxu0 0.0
      %2442 = vmatpush1.msra.mxu0 0.0
      %2443 = vmatprep.subr.mxu0 0.0
      %2444 = vmatpush1.msra.mxu0 0.0
      %2445 = vmatprep.subr.mxu0 0.0
      %2446 = vmatpush1.msra.mxu0 0.0
      %2447 = vmatprep.subr.mxu0 0.0
      %2448 = vmatpush1.msra.mxu0 0.0
      %2449 = vmatprep.subr.mxu0 0.0
      %2450 = vmatpush1.msra.mxu0 0.0
      %2451 = vmatprep.subr.mxu0 0.0
      %2452 = vmatpush1.msra.mxu0 0.0
      %2453 = vmatprep.subr.mxu0 0.0
      %2454 = vmatpush1.msra.mxu0 0.0
      %2455 = vmatprep.subr.mxu0 0.0
      %2456 = vmatpush1.msra.mxu0 0.0
      %2457 = vmatprep.subr.mxu0 0.0
      %2458 = vmatpush1.msra.mxu0 0.0
      %2459 = vmatprep.subr.mxu0 0.0
      %2460 = vmatpush1.msra.mxu0 0.0
      %2461 = vmatprep.subr.mxu0 0.0
      %2462 = vmatpush1.msra.mxu0 0.0
      %2463 = vmatprep.subr.mxu0 0.0
      %2464 = vmatpush1.msra.mxu0 0.0
      %2465 = vmatprep.subr.mxu0 0.0
      %2466 = vmatpush1.msra.mxu0 0.0
      %2467 = vmatprep.subr.mxu0 0.0
      %2468 = vmatpush1.msra.mxu0 0.0
      %2469 = vmatprep.subr.mxu0 0.0
      %2470 = vmatpush1.msra.mxu0 0.0
      %2471 = vmatprep.subr.mxu0 0.0
      %2472 = vmatpush1.msra.mxu0 0.0
      %2473 = vmatprep.subr.mxu0 0.0
      %2474 = vmatpush1.msra.mxu0 0.0
      %2475 = vmatprep.subr.mxu0 0.0
      %2476 = vmatpush1.msra.mxu0 0.0
      %2477 = vmatprep.subr.mxu0 0.0
      %2478 = vmatpush1.msra.mxu0 0.0
      %2479 = vmatprep.subr.mxu0 0.0
      %2480 = vmatpush1.msra.mxu0 0.0
      %2481 = vmatprep.subr.mxu0 0.0
      %2482 = vmatpush1.msra.mxu0 0.0
      %2483 = vmatprep.subr.mxu0 0.0
      %2484 = vmatpush1.msra.mxu0 0.0
      %2485 = vmatprep.subr.mxu0 0.0
      %2486 = vmatpush1.msra.mxu0 0.0
      %2487 = vmatprep.subr.mxu0 0.0
      %2488 = vmatpush1.msra.mxu0 0.0
      %2489 = vmatprep.subr.mxu0 0.0
      %2490 = vmatpush1.msra.mxu0 0.0
      %2491 = vmatprep.subr.mxu0 0.0
      %2492 = vmatpush1.msra.mxu0 0.0
      %2493 = vmatprep.subr.mxu0 0.0
      %2494 = vmatpush1.msra.mxu0 0.0
      %2495 = vmatprep.mubr.f32.mxu0 0.0
      %2496 = vmatmul.mubr.f32.gmra.mrb[0].mxu0 %v2429
      %v2497 = vpop.f32.mrb[0].mxu0
      %v2498 = vadd.f32 %v572, %v2497
      %v2499 = vpop.f32.mrb[0].mxu0
      %2500 = vdwg.mxu0
      %v2501 = vadd.f32 %v2425, %v2498
      %v2502 = vxor.u32 %v2501, 2147483648
      %v2503 = vmul.f32 %v2502, 1.442695
      %v2504 = vpow.pop %v2503
      %v2505 = vadd.f32 %v2504, 1.0
      %v2506 = vrcp.pop %v2505
      %v2507 = vmul.f32 1.0, %v2506
      %2509 = vrot.lane.b32.xlu0 %v2498, 64
      %v2510 = vpop.permute.xlu0 %2509
      %v2512 = vmul.f32 %v2507, %v2510
      %2514 = vrot.lane.b32.xlu0 %v2512, 64
      %v2515 = vpop.permute.xlu0 %2514
      %v2517 = vadd.f32 %v2425, %v2515
      %v2518 = vtanh.pop %v2517
      %v2519 = vsub.f32 1.0, %v2507
      %2521 = vrot.lane.b32.xlu0 %v2518, 96
      %v2522 = vpop.permute.xlu0 %2521
      %v2524 = vmul.f32 %v2519, %v2522
      %2525 = vrot.lane.b32.xlu0 %v2239, 32
      %v2526 = vpop.permute.xlu0 %2525
      %v2528 = vmul.f32 %v2507, %v2526
      %v2529 = vadd.f32 %v2524, %v2528
      %2531 = vrot.lane.b32.xlu0 %v2343, 96
      %v2532 = vpop.permute.xlu0 %2531
      %2534 = vst.msk [vmem:[#allocation2] sm:$0x3] %vm680, %v2532
      %2536 = vrot.lane.b32.xlu0 %v2529, 96
      %v2537 = vpop.permute.xlu0 %2536
      %2539 = vst.msk [vmem:[#allocation3] sm:$0x3] %vm680, %v2537
      %v2540 = vadd.f32 %v2529, %v2350
      %2542 = vrot.lane.b32.xlu0 %v2540, 96
      %v2543 = vpop.permute.xlu0 %2542
      %s2545 = scalar_lea.vmem %s351, 12
      %2546 = vst.msk [vmem:[%s2545] sm:$0x3] %vm680, %v2543
      %v2547 = vld [vmem:[#allocation2] sm:$0x3]
      %v2548 = vld [vmem:[#allocation3] sm:$0x3]
      %v2550 = vsel %vm382, %v2547, 0
      %2552 = vmatprep.subr.mxu0 0.0
      %2553 = vmatpush1.msra.mxu0 %v360
      %2554 = vmatprep.subr.mxu0 0.0
      %2555 = vmatpush1.msra.mxu0 %v361
      %2556 = vmatprep.subr.mxu0 0.0
      %2557 = vmatpush1.msra.mxu0 %v362
      %2558 = vmatprep.subr.mxu0 0.0
      %2559 = vmatpush1.msra.mxu0 %v363
      %2560 = vmatprep.subr.mxu0 0.0
      %2561 = vmatpush1.msra.mxu0 0.0
      %2562 = vmatprep.subr.mxu0 0.0
      %2563 = vmatpush1.msra.mxu0 0.0
      %2564 = vmatprep.subr.mxu0 0.0
      %2565 = vmatpush1.msra.mxu0 0.0
      %2566 = vmatprep.subr.mxu0 0.0
      %2567 = vmatpush1.msra.mxu0 0.0
      %2568 = vmatprep.subr.mxu0 0.0
      %2569 = vmatpush1.msra.mxu0 0.0
      %2570 = vmatprep.subr.mxu0 0.0
      %2571 = vmatpush1.msra.mxu0 0.0
      %2572 = vmatprep.subr.mxu0 0.0
      %2573 = vmatpush1.msra.mxu0 0.0
      %2574 = vmatprep.subr.mxu0 0.0
      %2575 = vmatpush1.msra.mxu0 0.0
      %2576 = vmatprep.subr.mxu0 0.0
      %2577 = vmatpush1.msra.mxu0 0.0
      %2578 = vmatprep.subr.mxu0 0.0
      %2579 = vmatpush1.msra.mxu0 0.0
      %2580 = vmatprep.subr.mxu0 0.0
      %2581 = vmatpush1.msra.mxu0 0.0
      %2582 = vmatprep.subr.mxu0 0.0
      %2583 = vmatpush1.msra.mxu0 0.0
      %2584 = vmatprep.subr.mxu0 0.0
      %2585 = vmatpush1.msra.mxu0 0.0
      %2586 = vmatprep.subr.mxu0 0.0
      %2587 = vmatpush1.msra.mxu0 0.0
      %2588 = vmatprep.subr.mxu0 0.0
      %2589 = vmatpush1.msra.mxu0 0.0
      %2590 = vmatprep.subr.mxu0 0.0
      %2591 = vmatpush1.msra.mxu0 0.0
      %2592 = vmatprep.subr.mxu0 0.0
      %2593 = vmatpush1.msra.mxu0 0.0
      %2594 = vmatprep.subr.mxu0 0.0
      %2595 = vmatpush1.msra.mxu0 0.0
      %2596 = vmatprep.subr.mxu0 0.0
      %2597 = vmatpush1.msra.mxu0 0.0
      %2598 = vmatprep.subr.mxu0 0.0
      %2599 = vmatpush1.msra.mxu0 0.0
      %2600 = vmatprep.subr.mxu0 0.0
      %2601 = vmatpush1.msra.mxu0 0.0
      %2602 = vmatprep.subr.mxu0 0.0
      %2603 = vmatpush1.msra.mxu0 0.0
      %2604 = vmatprep.subr.mxu0 0.0
      %2605 = vmatpush1.msra.mxu0 0.0
      %2606 = vmatprep.subr.mxu0 0.0
      %2607 = vmatpush1.msra.mxu0 0.0
      %2608 = vmatprep.subr.mxu0 0.0
      %2609 = vmatpush1.msra.mxu0 0.0
      %2610 = vmatprep.subr.mxu0 0.0
      %2611 = vmatpush1.msra.mxu0 0.0
      %2612 = vmatprep.subr.mxu0 0.0
      %2613 = vmatpush1.msra.mxu0 0.0
      %2614 = vmatprep.subr.mxu0 0.0
      %2615 = vmatpush1.msra.mxu0 0.0
      %2616 = vmatprep.mubr.f32.mxu0 0.0
      %2617 = vmatmul.mubr.f32.gmra.mrb[0].mxu0 %v2550
      %v2618 = vpop.f32.mrb[0].mxu0
      %v2619 = vadd.f32 %v380, %v2618
      %v2620 = vpop.f32.mrb[0].mxu0
      %2621 = vdwg.mxu0
      %s2622 = scalar_lea.vmem %s333, 14
      %v2623 = vld [vmem:[%s2622] sm:$0x3]
      %v2624 = vadd.f32 %v2623, %v2619
      %v2625 = vxor.u32 %v2624, 2147483648
      %v2626 = vmul.f32 %v2625, 1.442695
      %v2627 = vpow.pop %v2626
      %v2628 = vadd.f32 %v2627, 1.0
      %v2629 = vrcp.pop %v2628
      %v2630 = vmul.f32 1.0, %v2629
      %2632 = vrot.lane.b32.xlu0 %v2619, 64
      %v2633 = vpop.permute.xlu0 %2632
      %v2635 = vmul.f32 %v2630, %v2633
      %2637 = vrot.lane.b32.xlu0 %v2635, 64
      %v2638 = vpop.permute.xlu0 %2637
      %v2640 = vadd.f32 %v2623, %v2638
      %v2641 = vtanh.pop %v2640
      %v2642 = vsub.f32 1.0, %v2630
      %2644 = vrot.lane.b32.xlu0 %v2641, 96
      %v2645 = vpop.permute.xlu0 %2644
      %v2647 = vmul.f32 %v2642, %v2645
      %2648 = vrot.lane.b32.xlu0 %v2547, 32
      %v2649 = vpop.permute.xlu0 %2648
      %v2651 = vmul.f32 %v2630, %v2649
      %v2652 = vadd.f32 %v2647, %v2651
      %s2653 = scalar_lea.vmem %s345, 14
      %v2654 = vld [vmem:[%s2653] sm:$0x3]
      %2656 = vrot.lane.b32.xlu0 %v2654, 32
      %v2657 = vpop.permute.xlu0 %2656
      %v2659 = vadd.f32 %v2652, %v2657
      %s2660 = scalar_lea.vmem %s339, 14
      %v2661 = vld [vmem:[%s2660] sm:$0x3]
      %2663 = vrot.lane.b32.xlu0 %v2659, 96
      %v2664 = vpop.permute.xlu0 %2663
      %v2665 = vsel %vm382, %v2664, 0
      %2667 = vmatprep.subr.mxu0 0.0
      %2668 = vmatpush1.msra.mxu0 %v370
      %2669 = vmatprep.subr.mxu0 0.0
      %2670 = vmatpush1.msra.mxu0 %v371
      %2671 = vmatprep.subr.mxu0 0.0
      %2672 = vmatpush1.msra.mxu0 %v372
      %2673 = vmatprep.subr.mxu0 0.0
      %2674 = vmatpush1.msra.mxu0 %v373
      %2675 = vmatprep.subr.mxu0 0.0
      %2676 = vmatpush1.msra.mxu0 0.0
      %2677 = vmatprep.subr.mxu0 0.0
      %2678 = vmatpush1.msra.mxu0 0.0
      %2679 = vmatprep.subr.mxu0 0.0
      %2680 = vmatpush1.msra.mxu0 0.0
      %2681 = vmatprep.subr.mxu0 0.0
      %2682 = vmatpush1.msra.mxu0 0.0
      %2683 = vmatprep.subr.mxu0 0.0
      %2684 = vmatpush1.msra.mxu0 0.0
      %2685 = vmatprep.subr.mxu0 0.0
      %2686 = vmatpush1.msra.mxu0 0.0
      %2687 = vmatprep.subr.mxu0 0.0
      %2688 = vmatpush1.msra.mxu0 0.0
      %2689 = vmatprep.subr.mxu0 0.0
      %2690 = vmatpush1.msra.mxu0 0.0
      %2691 = vmatprep.subr.mxu0 0.0
      %2692 = vmatpush1.msra.mxu0 0.0
      %2693 = vmatprep.subr.mxu0 0.0
      %2694 = vmatpush1.msra.mxu0 0.0
      %2695 = vmatprep.subr.mxu0 0.0
      %2696 = vmatpush1.msra.mxu0 0.0
      %2697 = vmatprep.subr.mxu0 0.0
      %2698 = vmatpush1.msra.mxu0 0.0
      %2699 = vmatprep.subr.mxu0 0.0
      %2700 = vmatpush1.msra.mxu0 0.0
      %2701 = vmatprep.subr.mxu0 0.0
      %2702 = vmatpush1.msra.mxu0 0.0
      %2703 = vmatprep.subr.mxu0 0.0
      %2704 = vmatpush1.msra.mxu0 0.0
      %2705 = vmatprep.subr.mxu0 0.0
      %2706 = vmatpush1.msra.mxu0 0.0
      %2707 = vmatprep.subr.mxu0 0.0
      %2708 = vmatpush1.msra.mxu0 0.0
      %2709 = vmatprep.subr.mxu0 0.0
      %2710 = vmatpush1.msra.mxu0 0.0
      %2711 = vmatprep.subr.mxu0 0.0
      %2712 = vmatpush1.msra.mxu0 0.0
      %2713 = vmatprep.subr.mxu0 0.0
      %2714 = vmatpush1.msra.mxu0 0.0
      %2715 = vmatprep.subr.mxu0 0.0
      %2716 = vmatpush1.msra.mxu0 0.0
      %2717 = vmatprep.subr.mxu0 0.0
      %2718 = vmatpush1.msra.mxu0 0.0
      %2719 = vmatprep.subr.mxu0 0.0
      %2720 = vmatpush1.msra.mxu0 0.0
      %2721 = vmatprep.subr.mxu0 0.0
      %2722 = vmatpush1.msra.mxu0 0.0
      %2723 = vmatprep.subr.mxu0 0.0
      %2724 = vmatpush1.msra.mxu0 0.0
      %2725 = vmatprep.subr.mxu0 0.0
      %2726 = vmatpush1.msra.mxu0 0.0
      %2727 = vmatprep.subr.mxu0 0.0
      %2728 = vmatpush1.msra.mxu0 0.0
      %2729 = vmatprep.subr.mxu0 0.0
      %2730 = vmatpush1.msra.mxu0 0.0
      %2731 = vmatprep.mubr.f32.mxu0 0.0
      %2732 = vmatmul.mubr.f32.gmra.mrb[0].mxu0 %v2665
      %v2733 = vpop.f32.mrb[0].mxu0
      %v2734 = vadd.f32 %v2661, %v2733
      %v2735 = vpop.f32.mrb[0].mxu0
      %2736 = vdwg.mxu0
      %v2738 = vsel %vm382, %v2548, 0
      %2740 = vmatprep.subr.mxu0 0.0
      %2741 = vmatpush1.msra.mxu0 %v365
      %2742 = vmatprep.subr.mxu0 0.0
      %2743 = vmatpush1.msra.mxu0 %v366
      %2744 = vmatprep.subr.mxu0 0.0
      %2745 = vmatpush1.msra.mxu0 %v367
      %2746 = vmatprep.subr.mxu0 0.0
      %2747 = vmatpush1.msra.mxu0 %v368
      %2748 = vmatprep.subr.mxu0 0.0
      %2749 = vmatpush1.msra.mxu0 0.0
      %2750 = vmatprep.subr.mxu0 0.0
      %2751 = vmatpush1.msra.mxu0 0.0
      %2752 = vmatprep.subr.mxu0 0.0
      %2753 = vmatpush1.msra.mxu0 0.0
      %2754 = vmatprep.subr.mxu0 0.0
      %2755 = vmatpush1.msra.mxu0 0.0
      %2756 = vmatprep.subr.mxu0 0.0
      %2757 = vmatpush1.msra.mxu0 0.0
      %2758 = vmatprep.subr.mxu0 0.0
      %2759 = vmatpush1.msra.mxu0 0.0
      %2760 = vmatprep.subr.mxu0 0.0
      %2761 = vmatpush1.msra.mxu0 0.0
      %2762 = vmatprep.subr.mxu0 0.0
      %2763 = vmatpush1.msra.mxu0 0.0
      %2764 = vmatprep.subr.mxu0 0.0
      %2765 = vmatpush1.msra.mxu0 0.0
      %2766 = vmatprep.subr.mxu0 0.0
      %2767 = vmatpush1.msra.mxu0 0.0
      %2768 = vmatprep.subr.mxu0 0.0
      %2769 = vmatpush1.msra.mxu0 0.0
      %2770 = vmatprep.subr.mxu0 0.0
      %2771 = vmatpush1.msra.mxu0 0.0
      %2772 = vmatprep.subr.mxu0 0.0
      %2773 = vmatpush1.msra.mxu0 0.0
      %2774 = vmatprep.subr.mxu0 0.0
      %2775 = vmatpush1.msra.mxu0 0.0
      %2776 = vmatprep.subr.mxu0 0.0
      %2777 = vmatpush1.msra.mxu0 0.0
      %2778 = vmatprep.subr.mxu0 0.0
      %2779 = vmatpush1.msra.mxu0 0.0
      %2780 = vmatprep.subr.mxu0 0.0
      %2781 = vmatpush1.msra.mxu0 0.0
      %2782 = vmatprep.subr.mxu0 0.0
      %2783 = vmatpush1.msra.mxu0 0.0
      %2784 = vmatprep.subr.mxu0 0.0
      %2785 = vmatpush1.msra.mxu0 0.0
      %2786 = vmatprep.subr.mxu0 0.0
      %2787 = vmatpush1.msra.mxu0 0.0
      %2788 = vmatprep.subr.mxu0 0.0
      %2789 = vmatpush1.msra.mxu0 0.0
      %2790 = vmatprep.subr.mxu0 0.0
      %2791 = vmatpush1.msra.mxu0 0.0
      %2792 = vmatprep.subr.mxu0 0.0
      %2793 = vmatpush1.msra.mxu0 0.0
      %2794 = vmatprep.subr.mxu0 0.0
      %2795 = vmatpush1.msra.mxu0 0.0
      %2796 = vmatprep.subr.mxu0 0.0
      %2797 = vmatpush1.msra.mxu0 0.0
      %2798 = vmatprep.subr.mxu0 0.0
      %2799 = vmatpush1.msra.mxu0 0.0
      %2800 = vmatprep.subr.mxu0 0.0
      %2801 = vmatpush1.msra.mxu0 0.0
      %2802 = vmatprep.subr.mxu0 0.0
      %2803 = vmatpush1.msra.mxu0 0.0
      %2804 = vmatprep.mubr.f32.mxu0 0.0
      %2805 = vmatmul.mubr.f32.gmra.mrb[0].mxu0 %v2738
      %v2806 = vpop.f32.mrb[0].mxu0
      %v2807 = vadd.f32 %v572, %v2806
      %v2808 = vpop.f32.mrb[0].mxu0
      %2809 = vdwg.mxu0
      %v2810 = vadd.f32 %v2734, %v2807
      %v2811 = vxor.u32 %v2810, 2147483648
      %v2812 = vmul.f32 %v2811, 1.442695
      %v2813 = vpow.pop %v2812
      %v2814 = vadd.f32 %v2813, 1.0
      %v2815 = vrcp.pop %v2814
      %v2816 = vmul.f32 1.0, %v2815
      %2818 = vrot.lane.b32.xlu0 %v2807, 64
      %v2819 = vpop.permute.xlu0 %2818
      %v2821 = vmul.f32 %v2816, %v2819
      %2823 = vrot.lane.b32.xlu0 %v2821, 64
      %v2824 = vpop.permute.xlu0 %2823
      %v2826 = vadd.f32 %v2734, %v2824
      %v2827 = vtanh.pop %v2826
      %v2828 = vsub.f32 1.0, %v2816
      %2830 = vrot.lane.b32.xlu0 %v2827, 96
      %v2831 = vpop.permute.xlu0 %2830
      %v2833 = vmul.f32 %v2828, %v2831
      %2834 = vrot.lane.b32.xlu0 %v2548, 32
      %v2835 = vpop.permute.xlu0 %2834
      %v2837 = vmul.f32 %v2816, %v2835
      %v2838 = vadd.f32 %v2833, %v2837
      %2840 = vrot.lane.b32.xlu0 %v2652, 96
      %v2841 = vpop.permute.xlu0 %2840
      %2843 = vst.msk [vmem:[#allocation2] sm:$0x3] %vm680, %v2841
      %2845 = vrot.lane.b32.xlu0 %v2838, 96
      %v2846 = vpop.permute.xlu0 %2845
      %2848 = vst.msk [vmem:[#allocation3] sm:$0x3] %vm680, %v2846
      %v2849 = vadd.f32 %v2838, %v2659
      %2851 = vrot.lane.b32.xlu0 %v2849, 96
      %v2852 = vpop.permute.xlu0 %2851
      %s2854 = scalar_lea.vmem %s351, 14
      %2855 = vst.msk [vmem:[%s2854] sm:$0x3] %vm680, %v2852
      %s2856 = smul.u32 8, %s19
      %p2857 = scmp.lt.s32.totalorder %s2856, 31
      %s2858 = scalar_select %p2857, %s2856, 31
      %s2859 = smul.addr %s2858, 2
      %s2860 = scalar_lea.vmem %s8, %s2859
      // Predicated region
      $region57: #{wavernn_forward.6} parent=51 // pred_check
        %p2861 = pneg %p220
      $region58: #{wavernn_forward.6} parent=51 // pred_check_branch
        %2863 = sbr.rel (%p2861) target = $region60
      $region59: #{wavernn_forward.6} parent=51 // pred_region
        %s2864 = smul.u32 8, %s19
      $region60: #{wavernn_forward.6} parent=51 // pred_fallthru
        _
    $region52: #{wavernn_forward.6} parent=5 // pred_fallthru
      _
    %p2865 = scmp.le.s32.totalorder 2, %s14
    // Predicated region
    $region61: #{wavernn_forward.6} parent=5 // pred_check
      %p2866 = pneg %p2865
    $region62: #{wavernn_forward.6} parent=5 // pred_check_branch
      %2868 = sbr.rel (%p2866) target = $region64
    $region63: #{wavernn_forward.6} parent=5 // pred_region
      %s2869 = ssub.s32 %s14, 2
      // Predicated region
      $region65: #{wavernn_forward.6} parent=63 // pred_check
        %p2870 = pneg %p226
      $region66: #{wavernn_forward.6} parent=63 // pred_check_branch
        %2872 = sbr.rel (%p2870) target = $region68
      $region67: #{wavernn_forward.6} parent=63 // pred_region
        %s2873 = smul.u32 8, %s20
        %p2874 = scmp.lt.s32.totalorder %s2873, 31
        %s2875 = scalar_select %p2874, %s2873, 31
        %s2876 = smul.addr %s2875, 2
        %s2877 = scalar_lea.vmem %s8, %s2876
      $region68: #{wavernn_forward.6} parent=63 // pred_fallthru
        _
    $region64: #{wavernn_forward.6} parent=5 // pred_fallthru
      _
  $region6: #{wavernn_forward.6} parent=0 // loop_footer
    %s18 = sadd.s32 1, %s14
  $region7: #{wavernn_forward.6} parent=0 // loop_footer_branch
    %13 = sbr.rel target = $region3
  $region8: #{wavernn_forward.6} parent=0 // loop_exit
    _

</llo_original>
